<compile_context>
chip_gen: v7x
topology: tpu7x:2x2x1
jax: 0.10.0
libtpu: 0.0.40
codegen_flags: <defaults>
</compile_context>

<pallas_src>
import functools

import jax
import jax.numpy as jnp
from jax.experimental import pallas as pl
from jax.experimental.pallas import tpu as pltpu

BN_EPS = 1e-3


def _se_conv_bn_kernel(xse_ref, w1_ref, b1_ref, x_ref, w2_ref,
                       gamma_ref, beta_ref, o_ref):
    # P is the true (unpadded) spatial element count: block == full array here,
    # so BN statistics divide by the exact count.
    p = x_ref.shape[1]
    inv_p = 1.0 / p

    # ---- SE branch first (gates everything): conv2d62 on a 1x1 spatial input
    #      == weighted sum of the 40 columns of w1.  VPU mul + XLU lane-reduce,
    #      keeps the tiny M=1 problem off the MXU critical path.
    se = jnp.sum(w1_ref[...] * xse_ref[...], axis=1, keepdims=True) \
        + b1_ref[...]                                              # [960, 1] f32
    se = jax.nn.sigmoid(se)                                        # EUP

    # ---- broadcast scale over all spatial positions (lane broadcast),
    #      then drop to bf16 for the MXU.
    y = (x_ref[...] * se).astype(jnp.bfloat16)                     # [960, P]

    # ---- conv2d63 (1x1, no bias): [Cb, 960] @ [960, P] on the MXU,
    #      bf16 operands, f32 accumulation.
    z = jnp.dot(w2_ref[...].astype(jnp.bfloat16), y,
                preferred_element_type=jnp.float32)                # [Cb, P] f32

    # ---- BatchNorm2d (training-mode biased batch stats per output channel),
    #      single reduction sweep + one fused scale/shift FMA.
    s1 = jnp.sum(z, axis=1, keepdims=True)                         # [Cb, 1]
    s2 = jnp.sum(z * z, axis=1, keepdims=True)                     # [Cb, 1]
    mean = s1 * inv_p
    var = s2 * inv_p - mean * mean
    scale = gamma_ref[...] * jax.lax.rsqrt(var + BN_EPS)           # [Cb, 1]
    shift = beta_ref[...] - mean * scale                           # [Cb, 1]
    o_ref[...] = z * scale + shift


@functools.partial(jax.jit, static_argnames=("cout_blocks",))
def se_conv_bn(x198, x195, w1, b1, w2, gamma, beta, *, cout_blocks=1):
    """x198: [1,40,1,1], x195: [1,960,14,14] (NCHW, like PyTorch)."""
    N, C_mid, H, W = x195.shape          # (1, 960, 14, 14)
    C_in = x198.shape[1]                 # 40
    C_out = w2.shape[0]                  # 160
    P = H * W                            # 196
    cb = C_out // cout_blocks            # 160 or 80 (both multiples of 8)

    # --- glue: channel-major views.  All of these are contiguous reshapes
    #     (no transpose / HBM relayout).
    xse = x198.reshape(1, C_in)                 # [1, 40]
    x_cm = x195.reshape(C_mid, P)               # [960, 196]
    w1_m = w1.reshape(C_mid, C_in)              # [960, 40]
    b1_c = b1.reshape(C_mid, 1)                 # [960, 1]
    w2_m = w2.reshape(C_out, C_mid)             # [160, 960]
    g_c = gamma.reshape(C_out, 1)               # [160, 1]
    b_c = beta.reshape(C_out, 1)                # [160, 1]

    out_cm = pl.pallas_call(
        _se_conv_bn_kernel,
        out_shape=jax.ShapeDtypeStruct((C_out, P), jnp.float32),
        grid=(cout_blocks,),
        in_specs=[
            pl.BlockSpec((1, C_in), lambda i: (0, 0)),       # x_se
            pl.BlockSpec((C_mid, C_in), lambda i: (0, 0)),   # w1
            pl.BlockSpec((C_mid, 1), lambda i: (0, 0)),      # b1
            pl.BlockSpec((C_mid, P), lambda i: (0, 0)),      # x195 (channel-major)
            pl.BlockSpec((cb, C_mid), lambda i: (i, 0)),     # w2 (split over C_out)
            pl.BlockSpec((cb, 1), lambda i: (i, 0)),         # gamma
            pl.BlockSpec((cb, 1), lambda i: (i, 0)),         # beta
        ],
        out_specs=pl.BlockSpec((cb, P), lambda i: (i, 0)),
        compiler_params=pltpu.CompilerParams(
            dimension_semantics=("parallel",)),
    )(xse, w1_m, b1_c, x_cm, w2_m, g_c, b_c)

    # [160, 196] -> [1, 160, 14, 14]: free reshape, no transpose.
    return out_cm.reshape(N, C_out, H, W)


def _default_cout_blocks():
    """2 output-channel blocks on v7x (2 TensorCores/chip), else 1."""
    try:
        kind = jax.devices()[0].device_kind.lower()
    except Exception:
        return 1
    return 2 if ("v7" in kind or "7x" in kind) else 1


def _reference_f32(x198, x195, w1, b1, w2, gamma, beta):
    """Exact pure-JAX f32 reference of the PyTorch forward (training-mode BN)."""
    N, C_mid, H, W = x195.shape
    se = jnp.einsum('oc,nc->no', w1.reshape(C_mid, -1), x198.reshape(N, -1)) + b1
    se = jax.nn.sigmoid(se)[:, :, None, None]
    y = se * x195
    z = jnp.einsum('oc,nchw->nohw', w2.reshape(w2.shape[0], C_mid), y)
    mean = jnp.mean(z, axis=(0, 2, 3), keepdims=True)
    var = jnp.mean((z - mean) ** 2, axis=(0, 2, 3), keepdims=True)
    z_hat = (z - mean) / jnp.sqrt(var + BN_EPS)
    return z_hat * gamma[None, :, None, None] + beta[None, :, None, None]


def _reference_bf16_mxu(x198, x195, w1, b1, w2, gamma, beta):
    """Reference that mirrors the kernel's bf16-operand / f32-accumulate matmul."""
    N, C_mid, H, W = x195.shape
    C_out = w2.shape[0]
    P = H * W
    se = (w1.reshape(C_mid, -1) @ x198.reshape(-1, 1)) + b1.reshape(C_mid, 1)
    se = jax.nn.sigmoid(se)                                   # [960, 1]
    y = (x195.reshape(C_mid, P) * se).astype(jnp.bfloat16)    # [960, P]
    z = jnp.dot(w2.reshape(C_out, C_mid).astype(jnp.bfloat16), y,
                preferred_element_type=jnp.float32)           # [160, P]
    mean = jnp.mean(z, axis=1, keepdims=True)
    var = jnp.mean((z - mean) ** 2, axis=1, keepdims=True)
    z_hat = (z - mean) * jax.lax.rsqrt(var + BN_EPS)
    out = z_hat * gamma[:, None] + beta[:, None]
    return out.reshape(N, C_out, H, W)


if __name__ == "__main__":
    key = jax.random.PRNGKey(0)
    k_x198, k_x195, k_w1, k_b1, k_w2, k_g, k_b = jax.random.split(key, 7)

    # shapes implied by the module
    x198 = jax.random.normal(k_x198, (1, 40, 1, 1), dtype=jnp.float32)
    x195 = jax.random.normal(k_x195, (1, 960, 14, 14), dtype=jnp.float32)

    # deterministic synthetic parameters (shapes match nn.Conv2d / BatchNorm2d)
    w1 = jax.random.normal(k_w1, (960, 40, 1, 1), dtype=jnp.float32) * 0.05
    b1 = jax.random.normal(k_b1, (960,), dtype=jnp.float32) * 0.05
    w2 = jax.random.normal(k_w2, (160, 960, 1, 1), dtype=jnp.float32) * 0.02
    gamma = 1.0 + 0.1 * jax.random.normal(k_g, (160,), dtype=jnp.float32)
    beta = 0.1 * jax.random.normal(k_b, (160,), dtype=jnp.float32)

    nblk = _default_cout_blocks()
    out = se_conv_bn(x198, x195, w1, b1, w2, gamma, beta, cout_blocks=nblk)
    out = jax.block_until_ready(out)
    assert out.shape == (1, 160, 14, 14), out.shape

    # Tight check against a reference that matches the kernel's bf16 MXU path
    # (validates kernel logic / layout / BN math).
    ref_bf16 = _reference_bf16_mxu(x198, x195, w1, b1, w2, gamma, beta)
    err_tight = float(jnp.max(jnp.abs(out - ref_bf16)))
    assert jnp.allclose(out, ref_bf16, atol=2e-3, rtol=2e-3), err_tight

    # Loose check against the exact f32 reference (bf16 MXU operand rounding).
    ref_f32 = _reference_f32(x198, x195, w1, b1, w2, gamma, beta)
    err_loose = float(jnp.max(jnp.abs(out - ref_f32)))
    assert jnp.allclose(out, ref_f32, atol=5e-2, rtol=5e-2), err_loose

    print("KERNEL_OK")
</pallas_src>

<mosaic_0001>
module attributes {stable_mosaic.version = 11 : i64} {
  func.func @_se_conv_bn_kernel(%arg0: i32, %arg1: memref<1x40xf32, #tpu.memory_space<vmem>>, %arg2: memref<960x40xf32, #tpu.memory_space<vmem>>, %arg3: memref<960x1xf32, #tpu.memory_space<vmem>>, %arg4: memref<960x196xf32, #tpu.memory_space<vmem>>, %arg5: memref<160x960xf32, #tpu.memory_space<vmem>>, %arg6: memref<160x1xf32, #tpu.memory_space<vmem>>, %arg7: memref<160x1xf32, #tpu.memory_space<vmem>>, %arg8: memref<160x196xf32, #tpu.memory_space<vmem>>) attributes {dimension_semantics = [#tpu.dimension_semantics<parallel>], iteration_bounds = array<i64: 1>, scalar_prefetch = 0 : i64, scratch_operands = 0 : i64, tpu.core_type = #tpu.core_type<tc>, window_params = [{pipeline_mode = #tpu.pipeline_mode<synchronous>, transform_indices = @transform_0, window_bounds = array<i64: 1, 40>}, {pipeline_mode = #tpu.pipeline_mode<synchronous>, transform_indices = @transform_1, window_bounds = array<i64: 960, 40>}, {pipeline_mode = #tpu.pipeline_mode<synchronous>, transform_indices = @transform_2, window_bounds = array<i64: 960, 1>}, {pipeline_mode = #tpu.pipeline_mode<synchronous>, transform_indices = @transform_3, window_bounds = array<i64: 960, 196>}, {transform_indices = @transform_4, window_bounds = array<i64: 160, 960>}, {transform_indices = @transform_5, window_bounds = array<i64: 160, 1>}, {transform_indices = @transform_6, window_bounds = array<i64: 160, 1>}, {transform_indices = @transform_7, window_bounds = array<i64: 160, 196>}]} {
    %c0 = arith.constant 0 : index
    %c0_0 = arith.constant 0 : index
    %0 = vector.load %arg2[%c0, %c0_0] : memref<960x40xf32, #tpu.memory_space<vmem>>, vector<960x40xf32>
    %c0_1 = arith.constant 0 : index
    %c0_2 = arith.constant 0 : index
    %1 = vector.load %arg1[%c0_1, %c0_2] : memref<1x40xf32, #tpu.memory_space<vmem>>, vector<1x40xf32>
    %2 = vector.broadcast %1 : vector<1x40xf32> to vector<960x40xf32>
    %3 = arith.mulf %0, %2 : vector<960x40xf32>
    %cst = arith.constant dense<0.000000e+00> : vector<960xf32>
    %4 = vector.multi_reduction <add>, %3, %cst [1] : vector<960x40xf32> to vector<960xf32>
    %5 = vector.shape_cast %4 : vector<960xf32> to vector<960x1xf32>
    %c0_3 = arith.constant 0 : index
    %c0_4 = arith.constant 0 : index
    %6 = vector.load %arg3[%c0_3, %c0_4] : memref<960x1xf32, #tpu.memory_space<vmem>>, vector<960x1xf32>
    %7 = arith.addf %5, %6 : vector<960x1xf32>
    %8 = arith.negf %7 : vector<960x1xf32>
    %9 = math.exp %8 : vector<960x1xf32>
    %cst_5 = arith.constant 1.000000e+00 : f32
    %10 = vector.broadcast %cst_5 : f32 to vector<960x1xf32>
    %11 = arith.addf %10, %9 : vector<960x1xf32>
    %12 = arith.divf %10, %11 : vector<960x1xf32>
    %c0_6 = arith.constant 0 : index
    %c0_7 = arith.constant 0 : index
    %13 = vector.load %arg4[%c0_6, %c0_7] : memref<960x196xf32, #tpu.memory_space<vmem>>, vector<960x196xf32>
    %14 = vector.broadcast %12 : vector<960x1xf32> to vector<960x196xf32>
    %15 = arith.mulf %13, %14 : vector<960x196xf32>
    %16 = arith.truncf %15 : vector<960x196xf32> to vector<960x196xbf16>
    %c0_8 = arith.constant 0 : index
    %c0_9 = arith.constant 0 : index
    %17 = vector.load %arg5[%c0_8, %c0_9] : memref<160x960xf32, #tpu.memory_space<vmem>>, vector<160x960xf32>
    %18 = arith.truncf %17 : vector<160x960xf32> to vector<160x960xbf16>
    %cst_10 = arith.constant dense<0.000000e+00> : vector<160x196xf32>
    %19 = tpu.matmul %18, %16, %cst_10 {dimension_numbers = #tpu.dot_dimension_numbers<[1], [0], [0], [1], [0, 0, 1, 1], [], []>} : vector<160x960xbf16>, vector<960x196xbf16>, vector<160x196xf32> -> vector<160x196xf32>
    %cst_11 = arith.constant dense<0.000000e+00> : vector<160xf32>
    %20 = vector.multi_reduction <add>, %19, %cst_11 [1] : vector<160x196xf32> to vector<160xf32>
    %21 = vector.shape_cast %20 : vector<160xf32> to vector<160x1xf32>
    %22 = arith.mulf %19, %19 : vector<160x196xf32>
    %cst_12 = arith.constant dense<0.000000e+00> : vector<160xf32>
    %23 = vector.multi_reduction <add>, %22, %cst_12 [1] : vector<160x196xf32> to vector<160xf32>
    %24 = vector.shape_cast %23 : vector<160xf32> to vector<160x1xf32>
    %cst_13 = arith.constant 0.00510204071 : f32
    %25 = vector.broadcast %cst_13 : f32 to vector<160x1xf32>
    %26 = arith.mulf %21, %25 : vector<160x1xf32>
    %cst_14 = arith.constant 0.00510204071 : f32
    %27 = vector.broadcast %cst_14 : f32 to vector<160x1xf32>
    %28 = arith.mulf %24, %27 : vector<160x1xf32>
    %29 = arith.mulf %26, %26 : vector<160x1xf32>
    %30 = arith.subf %28, %29 : vector<160x1xf32>
    %c0_15 = arith.constant 0 : index
    %c0_16 = arith.constant 0 : index
    %31 = vector.load %arg6[%c0_15, %c0_16] : memref<160x1xf32, #tpu.memory_space<vmem>>, vector<160x1xf32>
    %cst_17 = arith.constant 1.000000e-03 : f32
    %32 = vector.broadcast %cst_17 : f32 to vector<160x1xf32>
    %33 = arith.addf %30, %32 : vector<160x1xf32>
    %34 = math.rsqrt %33 : vector<160x1xf32>
    %35 = arith.mulf %31, %34 : vector<160x1xf32>
    %c0_18 = arith.constant 0 : index
    %c0_19 = arith.constant 0 : index
    %36 = vector.load %arg7[%c0_18, %c0_19] : memref<160x1xf32, #tpu.memory_space<vmem>>, vector<160x1xf32>
    %37 = arith.mulf %26, %35 : vector<160x1xf32>
    %38 = arith.subf %36, %37 : vector<160x1xf32>
    %39 = vector.broadcast %35 : vector<160x1xf32> to vector<160x196xf32>
    %40 = arith.mulf %19, %39 : vector<160x196xf32>
    %41 = vector.broadcast %38 : vector<160x1xf32> to vector<160x196xf32>
    %42 = arith.addf %40, %41 : vector<160x196xf32>
    %c0_20 = arith.constant 0 : index
    %c0_21 = arith.constant 0 : index
    %43 = vector.load %arg8[%c0_20, %c0_21] : memref<160x196xf32, #tpu.memory_space<vmem>>, vector<160x196xf32>
    tpu.vector_store %arg8[%c0_20, %c0_21], %42 {strides = array<i32>} : memref<160x196xf32, #tpu.memory_space<vmem>>, vector<160x196xf32>,
    return
  }
  func.func @transform_0(%arg0: i32) -> (i32, i32) {
    %c0_i32 = arith.constant 0 : i32
    %c0_i32_0 = arith.constant 0 : i32
    %c0_i32_1 = arith.constant 0 : i32
    return %c0_i32, %c0_i32_0 : i32, i32
  }
  func.func @transform_1(%arg0: i32) -> (i32, i32) {
    %c0_i32 = arith.constant 0 : i32
    %c0_i32_0 = arith.constant 0 : i32
    %c0_i32_1 = arith.constant 0 : i32
    return %c0_i32, %c0_i32_0 : i32, i32
  }
  func.func @transform_2(%arg0: i32) -> (i32, i32) {
    %c0_i32 = arith.constant 0 : i32
    %c0_i32_0 = arith.constant 0 : i32
    %c0_i32_1 = arith.constant 0 : i32
    return %c0_i32, %c0_i32_0 : i32, i32
  }
  func.func @transform_3(%arg0: i32) -> (i32, i32) {
    %c0_i32 = arith.constant 0 : i32
    %c0_i32_0 = arith.constant 0 : i32
    %c0_i32_1 = arith.constant 0 : i32
    return %c0_i32, %c0_i32_0 : i32, i32
  }
  func.func @transform_4(%arg0: i32) -> (i32, i32) {
    %c0_i32 = arith.constant 0 : i32
    %c0_i32_0 = arith.constant 0 : i32
    return %arg0, %c0_i32 : i32, i32
  }
  func.func @transform_5(%arg0: i32) -> (i32, i32) {
    %c0_i32 = arith.constant 0 : i32
    %c0_i32_0 = arith.constant 0 : i32
    return %arg0, %c0_i32 : i32, i32
  }
  func.func @transform_6(%arg0: i32) -> (i32, i32) {
    %c0_i32 = arith.constant 0 : i32
    %c0_i32_0 = arith.constant 0 : i32
    return %arg0, %c0_i32 : i32, i32
  }
  func.func @transform_7(%arg0: i32) -> (i32, i32) {
    %c0_i32 = arith.constant 0 : i32
    %c0_i32_0 = arith.constant 0 : i32
    return %arg0, %c0_i32 : i32, i32
  }
}

</mosaic_0001>

<llo_original>
// kernel: se_conv_bn.1
$region0: #{se_conv_bn.1}
  #allocation0 [shape = 'u32[]', space=smem, size = 0x4, offset = 0x4, fixed_abs, tag = 'smem constant byte address 0x4 - core index']
  #allocation1 [shape = 'u32[144,128]{1,0:T(1,128)}', space=vmem, size = 0x12000, scoped, tag = 'internal scratch']
  %s0 = inlined_call_operand.vmem [shape: f32[1,40], index: 0, kind: input, shape index: {}]
  %s1 = inlined_call_operand.vmem [shape: f32[960,40], index: 1, kind: input, shape index: {}]
  %s2 = inlined_call_operand.vmem [shape: f32[960,1], index: 2, kind: input, shape index: {}]
  %s3 = inlined_call_operand.vmem [shape: f32[960,196], index: 3, kind: input, shape index: {}]
  %s4 = inlined_call_operand.vmem [shape: f32[160,960], index: 4, kind: input, shape index: {}]
  %s5 = inlined_call_operand.vmem [shape: f32[160,1], index: 5, kind: input, shape index: {}]
  %s6 = inlined_call_operand.vmem [shape: f32[160,1], index: 6, kind: input, shape index: {}]
  %s7 = inlined_call_operand.vmem [shape: f32[160,196], index: 7, kind: output, shape index: {}]
  %s8 = sld [smem:[#allocation0]]
  $region38: #{se_conv_bn.1} parent=0
    _
  %s10 = ssub.s32 1, %s8
  %s11 = scalar_select 0, %s10, %s8
  // Predicated region
  $region2: #{se_conv_bn.1} parent=0 // pred_check
    _
  $region3: #{se_conv_bn.1} parent=0 // pred_check_branch
    %13 = sbr.rel (0) target = $region5
  $region4: #{se_conv_bn.1} parent=0 // pred_region
    _
  $region5: #{se_conv_bn.1} parent=0 // pred_fallthru
    _
  // Predicated region
  $region6: #{se_conv_bn.1} parent=0 // pred_check
    _
  $region7: #{se_conv_bn.1} parent=0 // pred_check_branch
    %15 = sbr.rel (0) target = $region9
  $region8: #{se_conv_bn.1} parent=0 // pred_region
    _
  $region9: #{se_conv_bn.1} parent=0 // pred_fallthru
    _
  // Predicated region
  $region10: #{se_conv_bn.1} parent=0 // pred_check
    _
  $region11: #{se_conv_bn.1} parent=0 // pred_check_branch
    %17 = sbr.rel (0) target = $region13
  $region12: #{se_conv_bn.1} parent=0 // pred_region
    _
  $region13: #{se_conv_bn.1} parent=0 // pred_fallthru
    _
  // Predicated region
  $region14: #{se_conv_bn.1} parent=0 // pred_check
    _
  $region15: #{se_conv_bn.1} parent=0 // pred_check_branch
    %19 = sbr.rel (0) target = $region17
  $region16: #{se_conv_bn.1} parent=0 // pred_region
    _
  $region17: #{se_conv_bn.1} parent=0 // pred_fallthru
    _
  // Predicated region
  $region18: #{se_conv_bn.1} parent=0 // pred_check
    _
  $region19: #{se_conv_bn.1} parent=0 // pred_check_branch
    %21 = sbr.rel (0) target = $region21
  $region20: #{se_conv_bn.1} parent=0 // pred_region
    _
  $region21: #{se_conv_bn.1} parent=0 // pred_fallthru
    _
  // Predicated region
  $region22: #{se_conv_bn.1} parent=0 // pred_check
    _
  $region23: #{se_conv_bn.1} parent=0 // pred_check_branch
    %23 = sbr.rel (0) target = $region25
  $region24: #{se_conv_bn.1} parent=0 // pred_region
    _
  $region25: #{se_conv_bn.1} parent=0 // pred_fallthru
    _
  // Predicated region
  $region26: #{se_conv_bn.1} parent=0 // pred_check
    _
  $region27: #{se_conv_bn.1} parent=0 // pred_check_branch
    %25 = sbr.rel (0) target = $region29
  $region28: #{se_conv_bn.1} parent=0 // pred_region
    _
  $region29: #{se_conv_bn.1} parent=0 // pred_fallthru
    _
  %v27 = vld [vmem:[%s1] sm:$0xff]
  %v28 = vld [vmem:[%s1 + $0x8] sm:$0xff]
  %v29 = vld [vmem:[%s1 + $0x10] sm:$0xff]
  %v30 = vld [vmem:[%s1 + $0x18] sm:$0xff]
  %v31 = vld [vmem:[%s1 + $0x20] sm:$0xff]
  %v32 = vld [vmem:[%s1 + $0x28] sm:$0xff]
  %v33 = vld [vmem:[%s1 + $0x30] sm:$0xff]
  %v34 = vld [vmem:[%s1 + $0x38] sm:$0xff]
  %v35 = vld [vmem:[%s1 + $0x40] sm:$0xff]
  %v36 = vld [vmem:[%s1 + $0x48] sm:$0xff]
  %v37 = vld [vmem:[%s1 + $0x50] sm:$0xff]
  %v38 = vld [vmem:[%s1 + $0x58] sm:$0xff]
  %v39 = vld [vmem:[%s1 + $0x60] sm:$0xff]
  %v40 = vld [vmem:[%s1 + $0x68] sm:$0xff]
  %v41 = vld [vmem:[%s1 + $0x70] sm:$0xff]
  %v42 = vld [vmem:[%s1 + $0x78] sm:$0xff]
  %v43 = vld [vmem:[%s1 + $0x80] sm:$0xff]
  %v44 = vld [vmem:[%s1 + $0x88] sm:$0xff]
  %v45 = vld [vmem:[%s1 + $0x90] sm:$0xff]
  %v46 = vld [vmem:[%s1 + $0x98] sm:$0xff]
  %v47 = vld [vmem:[%s1 + $0xa0] sm:$0xff]
  %v48 = vld [vmem:[%s1 + $0xa8] sm:$0xff]
  %v49 = vld [vmem:[%s1 + $0xb0] sm:$0xff]
  %v50 = vld [vmem:[%s1 + $0xb8] sm:$0xff]
  %v51 = vld [vmem:[%s1 + $0xc0] sm:$0xff]
  %v52 = vld [vmem:[%s1 + $0xc8] sm:$0xff]
  %v53 = vld [vmem:[%s1 + $0xd0] sm:$0xff]
  %v54 = vld [vmem:[%s1 + $0xd8] sm:$0xff]
  %v55 = vld [vmem:[%s1 + $0xe0] sm:$0xff]
  %v56 = vld [vmem:[%s1 + $0xe8] sm:$0xff]
  %v57 = vld [vmem:[%s1 + $0xf0] sm:$0xff]
  %v58 = vld [vmem:[%s1 + $0xf8] sm:$0xff]
  %v59 = vld [vmem:[%s1 + $0x100] sm:$0xff]
  %v60 = vld [vmem:[%s1 + $0x108] sm:$0xff]
  %v61 = vld [vmem:[%s1 + $0x110] sm:$0xff]
  %v62 = vld [vmem:[%s1 + $0x118] sm:$0xff]
  %v63 = vld [vmem:[%s1 + $0x120] sm:$0xff]
  %v64 = vld [vmem:[%s1 + $0x128] sm:$0xff]
  %v65 = vld [vmem:[%s1 + $0x130] sm:$0xff]
  %v66 = vld [vmem:[%s1 + $0x138] sm:$0xff]
  %v67 = vld [vmem:[%s1 + $0x140] sm:$0xff]
  %v68 = vld [vmem:[%s1 + $0x148] sm:$0xff]
  %v69 = vld [vmem:[%s1 + $0x150] sm:$0xff]
  %v70 = vld [vmem:[%s1 + $0x158] sm:$0xff]
  %v71 = vld [vmem:[%s1 + $0x160] sm:$0xff]
  %v72 = vld [vmem:[%s1 + $0x168] sm:$0xff]
  %v73 = vld [vmem:[%s1 + $0x170] sm:$0xff]
  %v74 = vld [vmem:[%s1 + $0x178] sm:$0xff]
  %v75 = vld [vmem:[%s1 + $0x180] sm:$0xff]
  %v76 = vld [vmem:[%s1 + $0x188] sm:$0xff]
  %v77 = vld [vmem:[%s1 + $0x190] sm:$0xff]
  %v78 = vld [vmem:[%s1 + $0x198] sm:$0xff]
  %v79 = vld [vmem:[%s1 + $0x1a0] sm:$0xff]
  %v80 = vld [vmem:[%s1 + $0x1a8] sm:$0xff]
  %v81 = vld [vmem:[%s1 + $0x1b0] sm:$0xff]
  %v82 = vld [vmem:[%s1 + $0x1b8] sm:$0xff]
  %v83 = vld [vmem:[%s1 + $0x1c0] sm:$0xff]
  %v84 = vld [vmem:[%s1 + $0x1c8] sm:$0xff]
  %v85 = vld [vmem:[%s1 + $0x1d0] sm:$0xff]
  %v86 = vld [vmem:[%s1 + $0x1d8] sm:$0xff]
  %v87 = vld [vmem:[%s1 + $0x1e0] sm:$0xff]
  %v88 = vld [vmem:[%s1 + $0x1e8] sm:$0xff]
  %v89 = vld [vmem:[%s1 + $0x1f0] sm:$0xff]
  %v90 = vld [vmem:[%s1 + $0x1f8] sm:$0xff]
  %v91 = vld [vmem:[%s1 + $0x200] sm:$0xff]
  %v92 = vld [vmem:[%s1 + $0x208] sm:$0xff]
  %v93 = vld [vmem:[%s1 + $0x210] sm:$0xff]
  %v94 = vld [vmem:[%s1 + $0x218] sm:$0xff]
  %v95 = vld [vmem:[%s1 + $0x220] sm:$0xff]
  %v96 = vld [vmem:[%s1 + $0x228] sm:$0xff]
  %v97 = vld [vmem:[%s1 + $0x230] sm:$0xff]
  %v98 = vld [vmem:[%s1 + $0x238] sm:$0xff]
  %v99 = vld [vmem:[%s1 + $0x240] sm:$0xff]
  %v100 = vld [vmem:[%s1 + $0x248] sm:$0xff]
  %v101 = vld [vmem:[%s1 + $0x250] sm:$0xff]
  %v102 = vld [vmem:[%s1 + $0x258] sm:$0xff]
  %v103 = vld [vmem:[%s1 + $0x260] sm:$0xff]
  %v104 = vld [vmem:[%s1 + $0x268] sm:$0xff]
  %v105 = vld [vmem:[%s1 + $0x270] sm:$0xff]
  %v106 = vld [vmem:[%s1 + $0x278] sm:$0xff]
  %v107 = vld [vmem:[%s1 + $0x280] sm:$0xff]
  %v108 = vld [vmem:[%s1 + $0x288] sm:$0xff]
  %v109 = vld [vmem:[%s1 + $0x290] sm:$0xff]
  %v110 = vld [vmem:[%s1 + $0x298] sm:$0xff]
  %v111 = vld [vmem:[%s1 + $0x2a0] sm:$0xff]
  %v112 = vld [vmem:[%s1 + $0x2a8] sm:$0xff]
  %v113 = vld [vmem:[%s1 + $0x2b0] sm:$0xff]
  %v114 = vld [vmem:[%s1 + $0x2b8] sm:$0xff]
  %v115 = vld [vmem:[%s1 + $0x2c0] sm:$0xff]
  %v116 = vld [vmem:[%s1 + $0x2c8] sm:$0xff]
  %v117 = vld [vmem:[%s1 + $0x2d0] sm:$0xff]
  %v118 = vld [vmem:[%s1 + $0x2d8] sm:$0xff]
  %v119 = vld [vmem:[%s1 + $0x2e0] sm:$0xff]
  %v120 = vld [vmem:[%s1 + $0x2e8] sm:$0xff]
  %v121 = vld [vmem:[%s1 + $0x2f0] sm:$0xff]
  %v122 = vld [vmem:[%s1 + $0x2f8] sm:$0xff]
  %v123 = vld [vmem:[%s1 + $0x300] sm:$0xff]
  %v124 = vld [vmem:[%s1 + $0x308] sm:$0xff]
  %v125 = vld [vmem:[%s1 + $0x310] sm:$0xff]
  %v126 = vld [vmem:[%s1 + $0x318] sm:$0xff]
  %v127 = vld [vmem:[%s1 + $0x320] sm:$0xff]
  %v128 = vld [vmem:[%s1 + $0x328] sm:$0xff]
  %v129 = vld [vmem:[%s1 + $0x330] sm:$0xff]
  %v130 = vld [vmem:[%s1 + $0x338] sm:$0xff]
  %v131 = vld [vmem:[%s1 + $0x340] sm:$0xff]
  %v132 = vld [vmem:[%s1 + $0x348] sm:$0xff]
  %v133 = vld [vmem:[%s1 + $0x350] sm:$0xff]
  %v134 = vld [vmem:[%s1 + $0x358] sm:$0xff]
  %v135 = vld [vmem:[%s1 + $0x360] sm:$0xff]
  %v136 = vld [vmem:[%s1 + $0x368] sm:$0xff]
  %v137 = vld [vmem:[%s1 + $0x370] sm:$0xff]
  %v138 = vld [vmem:[%s1 + $0x378] sm:$0xff]
  %v139 = vld [vmem:[%s1 + $0x380] sm:$0xff]
  %v140 = vld [vmem:[%s1 + $0x388] sm:$0xff]
  %v141 = vld [vmem:[%s1 + $0x390] sm:$0xff]
  %v142 = vld [vmem:[%s1 + $0x398] sm:$0xff]
  %v143 = vld [vmem:[%s1 + $0x3a0] sm:$0xff]
  %v144 = vld [vmem:[%s1 + $0x3a8] sm:$0xff]
  %v145 = vld [vmem:[%s1 + $0x3b0] sm:$0xff]
  %v146 = vld [vmem:[%s1 + $0x3b8] sm:$0xff]
  %v147 = vld [vmem:[%s0] sm:$0x1]
  %v149 = vlaneseq
  %v150 = vshrl.u32 %v149, 7
  %v151 = vsub.s32 0, %v150
  %v152 = vrot.slane %v147, %v151
  %v154 = vmul.f32 %v27, %v152
  %v155 = vmul.f32 %v28, %v152
  %v156 = vmul.f32 %v29, %v152
  %v157 = vmul.f32 %v30, %v152
  %v158 = vmul.f32 %v31, %v152
  %v159 = vmul.f32 %v32, %v152
  %v160 = vmul.f32 %v33, %v152
  %v161 = vmul.f32 %v34, %v152
  %v162 = vmul.f32 %v35, %v152
  %v163 = vmul.f32 %v36, %v152
  %v164 = vmul.f32 %v37, %v152
  %v165 = vmul.f32 %v38, %v152
  %v166 = vmul.f32 %v39, %v152
  %v167 = vmul.f32 %v40, %v152
  %v168 = vmul.f32 %v41, %v152
  %v169 = vmul.f32 %v42, %v152
  %v170 = vmul.f32 %v43, %v152
  %v171 = vmul.f32 %v44, %v152
  %v172 = vmul.f32 %v45, %v152
  %v173 = vmul.f32 %v46, %v152
  %v174 = vmul.f32 %v47, %v152
  %v175 = vmul.f32 %v48, %v152
  %v176 = vmul.f32 %v49, %v152
  %v177 = vmul.f32 %v50, %v152
  %v178 = vmul.f32 %v51, %v152
  %v179 = vmul.f32 %v52, %v152
  %v180 = vmul.f32 %v53, %v152
  %v181 = vmul.f32 %v54, %v152
  %v182 = vmul.f32 %v55, %v152
  %v183 = vmul.f32 %v56, %v152
  %v184 = vmul.f32 %v57, %v152
  %v185 = vmul.f32 %v58, %v152
  %v186 = vmul.f32 %v59, %v152
  %v187 = vmul.f32 %v60, %v152
  %v188 = vmul.f32 %v61, %v152
  %v189 = vmul.f32 %v62, %v152
  %v190 = vmul.f32 %v63, %v152
  %v191 = vmul.f32 %v64, %v152
  %v192 = vmul.f32 %v65, %v152
  %v193 = vmul.f32 %v66, %v152
  %v194 = vmul.f32 %v67, %v152
  %v195 = vmul.f32 %v68, %v152
  %v196 = vmul.f32 %v69, %v152
  %v197 = vmul.f32 %v70, %v152
  %v198 = vmul.f32 %v71, %v152
  %v199 = vmul.f32 %v72, %v152
  %v200 = vmul.f32 %v73, %v152
  %v201 = vmul.f32 %v74, %v152
  %v202 = vmul.f32 %v75, %v152
  %v203 = vmul.f32 %v76, %v152
  %v204 = vmul.f32 %v77, %v152
  %v205 = vmul.f32 %v78, %v152
  %v206 = vmul.f32 %v79, %v152
  %v207 = vmul.f32 %v80, %v152
  %v208 = vmul.f32 %v81, %v152
  %v209 = vmul.f32 %v82, %v152
  %v210 = vmul.f32 %v83, %v152
  %v211 = vmul.f32 %v84, %v152
  %v212 = vmul.f32 %v85, %v152
  %v213 = vmul.f32 %v86, %v152
  %v214 = vmul.f32 %v87, %v152
  %v215 = vmul.f32 %v88, %v152
  %v216 = vmul.f32 %v89, %v152
  %v217 = vmul.f32 %v90, %v152
  %v218 = vmul.f32 %v91, %v152
  %v219 = vmul.f32 %v92, %v152
  %v220 = vmul.f32 %v93, %v152
  %v221 = vmul.f32 %v94, %v152
  %v222 = vmul.f32 %v95, %v152
  %v223 = vmul.f32 %v96, %v152
  %v224 = vmul.f32 %v97, %v152
  %v225 = vmul.f32 %v98, %v152
  %v226 = vmul.f32 %v99, %v152
  %v227 = vmul.f32 %v100, %v152
  %v228 = vmul.f32 %v101, %v152
  %v229 = vmul.f32 %v102, %v152
  %v230 = vmul.f32 %v103, %v152
  %v231 = vmul.f32 %v104, %v152
  %v232 = vmul.f32 %v105, %v152
  %v233 = vmul.f32 %v106, %v152
  %v234 = vmul.f32 %v107, %v152
  %v235 = vmul.f32 %v108, %v152
  %v236 = vmul.f32 %v109, %v152
  %v237 = vmul.f32 %v110, %v152
  %v238 = vmul.f32 %v111, %v152
  %v239 = vmul.f32 %v112, %v152
  %v240 = vmul.f32 %v113, %v152
  %v241 = vmul.f32 %v114, %v152
  %v242 = vmul.f32 %v115, %v152
  %v243 = vmul.f32 %v116, %v152
  %v244 = vmul.f32 %v117, %v152
  %v245 = vmul.f32 %v118, %v152
  %v246 = vmul.f32 %v119, %v152
  %v247 = vmul.f32 %v120, %v152
  %v248 = vmul.f32 %v121, %v152
  %v249 = vmul.f32 %v122, %v152
  %v250 = vmul.f32 %v123, %v152
  %v251 = vmul.f32 %v124, %v152
  %v252 = vmul.f32 %v125, %v152
  %v253 = vmul.f32 %v126, %v152
  %v254 = vmul.f32 %v127, %v152
  %v255 = vmul.f32 %v128, %v152
  %v256 = vmul.f32 %v129, %v152
  %v257 = vmul.f32 %v130, %v152
  %v258 = vmul.f32 %v131, %v152
  %v259 = vmul.f32 %v132, %v152
  %v260 = vmul.f32 %v133, %v152
  %v261 = vmul.f32 %v134, %v152
  %v262 = vmul.f32 %v135, %v152
  %v263 = vmul.f32 %v136, %v152
  %v264 = vmul.f32 %v137, %v152
  %v265 = vmul.f32 %v138, %v152
  %v266 = vmul.f32 %v139, %v152
  %v267 = vmul.f32 %v140, %v152
  %v268 = vmul.f32 %v141, %v152
  %v269 = vmul.f32 %v142, %v152
  %v270 = vmul.f32 %v143, %v152
  %v271 = vmul.f32 %v144, %v152
  %v272 = vmul.f32 %v145, %v152
  %v273 = vmul.f32 %v146, %v152
  %vm274 = vcmask 326656
  %v275 = vsel %vm274, %v154, 0.0
  %276 = vadd.xlane.f32.xlu0 %v275
  %v277 = vpop.xlane.xlu0 %276
  %v278 = vsel %vm274, %v155, 0.0
  %279 = vadd.xlane.f32.xlu0 %v278
  %v280 = vpop.xlane.xlu0 %279
  %v281 = vsel %vm274, %v156, 0.0
  %282 = vadd.xlane.f32.xlu0 %v281
  %v283 = vpop.xlane.xlu0 %282
  %v284 = vsel %vm274, %v157, 0.0
  %285 = vadd.xlane.f32.xlu0 %v284
  %v286 = vpop.xlane.xlu0 %285
  %v287 = vsel %vm274, %v158, 0.0
  %288 = vadd.xlane.f32.xlu0 %v287
  %v289 = vpop.xlane.xlu0 %288
  %v290 = vsel %vm274, %v159, 0.0
  %291 = vadd.xlane.f32.xlu0 %v290
  %v292 = vpop.xlane.xlu0 %291
  %v293 = vsel %vm274, %v160, 0.0
  %294 = vadd.xlane.f32.xlu0 %v293
  %v295 = vpop.xlane.xlu0 %294
  %v296 = vsel %vm274, %v161, 0.0
  %297 = vadd.xlane.f32.xlu0 %v296
  %v298 = vpop.xlane.xlu0 %297
  %v299 = vsel %vm274, %v162, 0.0
  %300 = vadd.xlane.f32.xlu0 %v299
  %v301 = vpop.xlane.xlu0 %300
  %v302 = vsel %vm274, %v163, 0.0
  %303 = vadd.xlane.f32.xlu0 %v302
  %v304 = vpop.xlane.xlu0 %303
  %v305 = vsel %vm274, %v164, 0.0
  %306 = vadd.xlane.f32.xlu0 %v305
  %v307 = vpop.xlane.xlu0 %306
  %v308 = vsel %vm274, %v165, 0.0
  %309 = vadd.xlane.f32.xlu0 %v308
  %v310 = vpop.xlane.xlu0 %309
  %v311 = vsel %vm274, %v166, 0.0
  %312 = vadd.xlane.f32.xlu0 %v311
  %v313 = vpop.xlane.xlu0 %312
  %v314 = vsel %vm274, %v167, 0.0
  %315 = vadd.xlane.f32.xlu0 %v314
  %v316 = vpop.xlane.xlu0 %315
  %v317 = vsel %vm274, %v168, 0.0
  %318 = vadd.xlane.f32.xlu0 %v317
  %v319 = vpop.xlane.xlu0 %318
  %v320 = vsel %vm274, %v169, 0.0
  %321 = vadd.xlane.f32.xlu0 %v320
  %v322 = vpop.xlane.xlu0 %321
  %v323 = vsel %vm274, %v170, 0.0
  %324 = vadd.xlane.f32.xlu0 %v323
  %v325 = vpop.xlane.xlu0 %324
  %v326 = vsel %vm274, %v171, 0.0
  %327 = vadd.xlane.f32.xlu0 %v326
  %v328 = vpop.xlane.xlu0 %327
  %v329 = vsel %vm274, %v172, 0.0
  %330 = vadd.xlane.f32.xlu0 %v329
  %v331 = vpop.xlane.xlu0 %330
  %v332 = vsel %vm274, %v173, 0.0
  %333 = vadd.xlane.f32.xlu0 %v332
  %v334 = vpop.xlane.xlu0 %333
  %v335 = vsel %vm274, %v174, 0.0
  %336 = vadd.xlane.f32.xlu0 %v335
  %v337 = vpop.xlane.xlu0 %336
  %v338 = vsel %vm274, %v175, 0.0
  %339 = vadd.xlane.f32.xlu0 %v338
  %v340 = vpop.xlane.xlu0 %339
  %v341 = vsel %vm274, %v176, 0.0
  %342 = vadd.xlane.f32.xlu0 %v341
  %v343 = vpop.xlane.xlu0 %342
  %v344 = vsel %vm274, %v177, 0.0
  %345 = vadd.xlane.f32.xlu0 %v344
  %v346 = vpop.xlane.xlu0 %345
  %v347 = vsel %vm274, %v178, 0.0
  %348 = vadd.xlane.f32.xlu0 %v347
  %v349 = vpop.xlane.xlu0 %348
  %v350 = vsel %vm274, %v179, 0.0
  %351 = vadd.xlane.f32.xlu0 %v350
  %v352 = vpop.xlane.xlu0 %351
  %v353 = vsel %vm274, %v180, 0.0
  %354 = vadd.xlane.f32.xlu0 %v353
  %v355 = vpop.xlane.xlu0 %354
  %v356 = vsel %vm274, %v181, 0.0
  %357 = vadd.xlane.f32.xlu0 %v356
  %v358 = vpop.xlane.xlu0 %357
  %v359 = vsel %vm274, %v182, 0.0
  %360 = vadd.xlane.f32.xlu0 %v359
  %v361 = vpop.xlane.xlu0 %360
  %v362 = vsel %vm274, %v183, 0.0
  %363 = vadd.xlane.f32.xlu0 %v362
  %v364 = vpop.xlane.xlu0 %363
  %v365 = vsel %vm274, %v184, 0.0
  %366 = vadd.xlane.f32.xlu0 %v365
  %v367 = vpop.xlane.xlu0 %366
  %v368 = vsel %vm274, %v185, 0.0
  %369 = vadd.xlane.f32.xlu0 %v368
  %v370 = vpop.xlane.xlu0 %369
  %v371 = vsel %vm274, %v186, 0.0
  %372 = vadd.xlane.f32.xlu0 %v371
  %v373 = vpop.xlane.xlu0 %372
  %v374 = vsel %vm274, %v187, 0.0
  %375 = vadd.xlane.f32.xlu0 %v374
  %v376 = vpop.xlane.xlu0 %375
  %v377 = vsel %vm274, %v188, 0.0
  %378 = vadd.xlane.f32.xlu0 %v377
  %v379 = vpop.xlane.xlu0 %378
  %v380 = vsel %vm274, %v189, 0.0
  %381 = vadd.xlane.f32.xlu0 %v380
  %v382 = vpop.xlane.xlu0 %381
  %v383 = vsel %vm274, %v190, 0.0
  %384 = vadd.xlane.f32.xlu0 %v383
  %v385 = vpop.xlane.xlu0 %384
  %v386 = vsel %vm274, %v191, 0.0
  %387 = vadd.xlane.f32.xlu0 %v386
  %v388 = vpop.xlane.xlu0 %387
  %v389 = vsel %vm274, %v192, 0.0
  %390 = vadd.xlane.f32.xlu0 %v389
  %v391 = vpop.xlane.xlu0 %390
  %v392 = vsel %vm274, %v193, 0.0
  %393 = vadd.xlane.f32.xlu0 %v392
  %v394 = vpop.xlane.xlu0 %393
  %v395 = vsel %vm274, %v194, 0.0
  %396 = vadd.xlane.f32.xlu0 %v395
  %v397 = vpop.xlane.xlu0 %396
  %v398 = vsel %vm274, %v195, 0.0
  %399 = vadd.xlane.f32.xlu0 %v398
  %v400 = vpop.xlane.xlu0 %399
  %v401 = vsel %vm274, %v196, 0.0
  %402 = vadd.xlane.f32.xlu0 %v401
  %v403 = vpop.xlane.xlu0 %402
  %v404 = vsel %vm274, %v197, 0.0
  %405 = vadd.xlane.f32.xlu0 %v404
  %v406 = vpop.xlane.xlu0 %405
  %v407 = vsel %vm274, %v198, 0.0
  %408 = vadd.xlane.f32.xlu0 %v407
  %v409 = vpop.xlane.xlu0 %408
  %v410 = vsel %vm274, %v199, 0.0
  %411 = vadd.xlane.f32.xlu0 %v410
  %v412 = vpop.xlane.xlu0 %411
  %v413 = vsel %vm274, %v200, 0.0
  %414 = vadd.xlane.f32.xlu0 %v413
  %v415 = vpop.xlane.xlu0 %414
  %v416 = vsel %vm274, %v201, 0.0
  %417 = vadd.xlane.f32.xlu0 %v416
  %v418 = vpop.xlane.xlu0 %417
  %v419 = vsel %vm274, %v202, 0.0
  %420 = vadd.xlane.f32.xlu0 %v419
  %v421 = vpop.xlane.xlu0 %420
  %v422 = vsel %vm274, %v203, 0.0
  %423 = vadd.xlane.f32.xlu0 %v422
  %v424 = vpop.xlane.xlu0 %423
  %v425 = vsel %vm274, %v204, 0.0
  %426 = vadd.xlane.f32.xlu0 %v425
  %v427 = vpop.xlane.xlu0 %426
  %v428 = vsel %vm274, %v205, 0.0
  %429 = vadd.xlane.f32.xlu0 %v428
  %v430 = vpop.xlane.xlu0 %429
  %v431 = vsel %vm274, %v206, 0.0
  %432 = vadd.xlane.f32.xlu0 %v431
  %v433 = vpop.xlane.xlu0 %432
  %v434 = vsel %vm274, %v207, 0.0
  %435 = vadd.xlane.f32.xlu0 %v434
  %v436 = vpop.xlane.xlu0 %435
  %v437 = vsel %vm274, %v208, 0.0
  %438 = vadd.xlane.f32.xlu0 %v437
  %v439 = vpop.xlane.xlu0 %438
  %v440 = vsel %vm274, %v209, 0.0
  %441 = vadd.xlane.f32.xlu0 %v440
  %v442 = vpop.xlane.xlu0 %441
  %v443 = vsel %vm274, %v210, 0.0
  %444 = vadd.xlane.f32.xlu0 %v443
  %v445 = vpop.xlane.xlu0 %444
  %v446 = vsel %vm274, %v211, 0.0
  %447 = vadd.xlane.f32.xlu0 %v446
  %v448 = vpop.xlane.xlu0 %447
  %v449 = vsel %vm274, %v212, 0.0
  %450 = vadd.xlane.f32.xlu0 %v449
  %v451 = vpop.xlane.xlu0 %450
  %v452 = vsel %vm274, %v213, 0.0
  %453 = vadd.xlane.f32.xlu0 %v452
  %v454 = vpop.xlane.xlu0 %453
  %v455 = vsel %vm274, %v214, 0.0
  %456 = vadd.xlane.f32.xlu0 %v455
  %v457 = vpop.xlane.xlu0 %456
  %v458 = vsel %vm274, %v215, 0.0
  %459 = vadd.xlane.f32.xlu0 %v458
  %v460 = vpop.xlane.xlu0 %459
  %v461 = vsel %vm274, %v216, 0.0
  %462 = vadd.xlane.f32.xlu0 %v461
  %v463 = vpop.xlane.xlu0 %462
  %v464 = vsel %vm274, %v217, 0.0
  %465 = vadd.xlane.f32.xlu0 %v464
  %v466 = vpop.xlane.xlu0 %465
  %v467 = vsel %vm274, %v218, 0.0
  %468 = vadd.xlane.f32.xlu0 %v467
  %v469 = vpop.xlane.xlu0 %468
  %v470 = vsel %vm274, %v219, 0.0
  %471 = vadd.xlane.f32.xlu0 %v470
  %v472 = vpop.xlane.xlu0 %471
  %v473 = vsel %vm274, %v220, 0.0
  %474 = vadd.xlane.f32.xlu0 %v473
  %v475 = vpop.xlane.xlu0 %474
  %v476 = vsel %vm274, %v221, 0.0
  %477 = vadd.xlane.f32.xlu0 %v476
  %v478 = vpop.xlane.xlu0 %477
  %v479 = vsel %vm274, %v222, 0.0
  %480 = vadd.xlane.f32.xlu0 %v479
  %v481 = vpop.xlane.xlu0 %480
  %v482 = vsel %vm274, %v223, 0.0
  %483 = vadd.xlane.f32.xlu0 %v482
  %v484 = vpop.xlane.xlu0 %483
  %v485 = vsel %vm274, %v224, 0.0
  %486 = vadd.xlane.f32.xlu0 %v485
  %v487 = vpop.xlane.xlu0 %486
  %v488 = vsel %vm274, %v225, 0.0
  %489 = vadd.xlane.f32.xlu0 %v488
  %v490 = vpop.xlane.xlu0 %489
  %v491 = vsel %vm274, %v226, 0.0
  %492 = vadd.xlane.f32.xlu0 %v491
  %v493 = vpop.xlane.xlu0 %492
  %v494 = vsel %vm274, %v227, 0.0
  %495 = vadd.xlane.f32.xlu0 %v494
  %v496 = vpop.xlane.xlu0 %495
  %v497 = vsel %vm274, %v228, 0.0
  %498 = vadd.xlane.f32.xlu0 %v497
  %v499 = vpop.xlane.xlu0 %498
  %v500 = vsel %vm274, %v229, 0.0
  %501 = vadd.xlane.f32.xlu0 %v500
  %v502 = vpop.xlane.xlu0 %501
  %v503 = vsel %vm274, %v230, 0.0
  %504 = vadd.xlane.f32.xlu0 %v503
  %v505 = vpop.xlane.xlu0 %504
  %v506 = vsel %vm274, %v231, 0.0
  %507 = vadd.xlane.f32.xlu0 %v506
  %v508 = vpop.xlane.xlu0 %507
  %v509 = vsel %vm274, %v232, 0.0
  %510 = vadd.xlane.f32.xlu0 %v509
  %v511 = vpop.xlane.xlu0 %510
  %v512 = vsel %vm274, %v233, 0.0
  %513 = vadd.xlane.f32.xlu0 %v512
  %v514 = vpop.xlane.xlu0 %513
  %v515 = vsel %vm274, %v234, 0.0
  %516 = vadd.xlane.f32.xlu0 %v515
  %v517 = vpop.xlane.xlu0 %516
  %v518 = vsel %vm274, %v235, 0.0
  %519 = vadd.xlane.f32.xlu0 %v518
  %v520 = vpop.xlane.xlu0 %519
  %v521 = vsel %vm274, %v236, 0.0
  %522 = vadd.xlane.f32.xlu0 %v521
  %v523 = vpop.xlane.xlu0 %522
  %v524 = vsel %vm274, %v237, 0.0
  %525 = vadd.xlane.f32.xlu0 %v524
  %v526 = vpop.xlane.xlu0 %525
  %v527 = vsel %vm274, %v238, 0.0
  %528 = vadd.xlane.f32.xlu0 %v527
  %v529 = vpop.xlane.xlu0 %528
  %v530 = vsel %vm274, %v239, 0.0
  %531 = vadd.xlane.f32.xlu0 %v530
  %v532 = vpop.xlane.xlu0 %531
  %v533 = vsel %vm274, %v240, 0.0
  %534 = vadd.xlane.f32.xlu0 %v533
  %v535 = vpop.xlane.xlu0 %534
  %v536 = vsel %vm274, %v241, 0.0
  %537 = vadd.xlane.f32.xlu0 %v536
  %v538 = vpop.xlane.xlu0 %537
  %v539 = vsel %vm274, %v242, 0.0
  %540 = vadd.xlane.f32.xlu0 %v539
  %v541 = vpop.xlane.xlu0 %540
  %v542 = vsel %vm274, %v243, 0.0
  %543 = vadd.xlane.f32.xlu0 %v542
  %v544 = vpop.xlane.xlu0 %543
  %v545 = vsel %vm274, %v244, 0.0
  %546 = vadd.xlane.f32.xlu0 %v545
  %v547 = vpop.xlane.xlu0 %546
  %v548 = vsel %vm274, %v245, 0.0
  %549 = vadd.xlane.f32.xlu0 %v548
  %v550 = vpop.xlane.xlu0 %549
  %v551 = vsel %vm274, %v246, 0.0
  %552 = vadd.xlane.f32.xlu0 %v551
  %v553 = vpop.xlane.xlu0 %552
  %v554 = vsel %vm274, %v247, 0.0
  %555 = vadd.xlane.f32.xlu0 %v554
  %v556 = vpop.xlane.xlu0 %555
  %v557 = vsel %vm274, %v248, 0.0
  %558 = vadd.xlane.f32.xlu0 %v557
  %v559 = vpop.xlane.xlu0 %558
  %v560 = vsel %vm274, %v249, 0.0
  %561 = vadd.xlane.f32.xlu0 %v560
  %v562 = vpop.xlane.xlu0 %561
  %v563 = vsel %vm274, %v250, 0.0
  %564 = vadd.xlane.f32.xlu0 %v563
  %v565 = vpop.xlane.xlu0 %564
  %v566 = vsel %vm274, %v251, 0.0
  %567 = vadd.xlane.f32.xlu0 %v566
  %v568 = vpop.xlane.xlu0 %567
  %v569 = vsel %vm274, %v252, 0.0
  %570 = vadd.xlane.f32.xlu0 %v569
  %v571 = vpop.xlane.xlu0 %570
  %v572 = vsel %vm274, %v253, 0.0
  %573 = vadd.xlane.f32.xlu0 %v572
  %v574 = vpop.xlane.xlu0 %573
  %v575 = vsel %vm274, %v254, 0.0
  %576 = vadd.xlane.f32.xlu0 %v575
  %v577 = vpop.xlane.xlu0 %576
  %v578 = vsel %vm274, %v255, 0.0
  %579 = vadd.xlane.f32.xlu0 %v578
  %v580 = vpop.xlane.xlu0 %579
  %v581 = vsel %vm274, %v256, 0.0
  %582 = vadd.xlane.f32.xlu0 %v581
  %v583 = vpop.xlane.xlu0 %582
  %v584 = vsel %vm274, %v257, 0.0
  %585 = vadd.xlane.f32.xlu0 %v584
  %v586 = vpop.xlane.xlu0 %585
  %v587 = vsel %vm274, %v258, 0.0
  %588 = vadd.xlane.f32.xlu0 %v587
  %v589 = vpop.xlane.xlu0 %588
  %v590 = vsel %vm274, %v259, 0.0
  %591 = vadd.xlane.f32.xlu0 %v590
  %v592 = vpop.xlane.xlu0 %591
  %v593 = vsel %vm274, %v260, 0.0
  %594 = vadd.xlane.f32.xlu0 %v593
  %v595 = vpop.xlane.xlu0 %594
  %v596 = vsel %vm274, %v261, 0.0
  %597 = vadd.xlane.f32.xlu0 %v596
  %v598 = vpop.xlane.xlu0 %597
  %v599 = vsel %vm274, %v262, 0.0
  %600 = vadd.xlane.f32.xlu0 %v599
  %v601 = vpop.xlane.xlu0 %600
  %v602 = vsel %vm274, %v263, 0.0
  %603 = vadd.xlane.f32.xlu0 %v602
  %v604 = vpop.xlane.xlu0 %603
  %v605 = vsel %vm274, %v264, 0.0
  %606 = vadd.xlane.f32.xlu0 %v605
  %v607 = vpop.xlane.xlu0 %606
  %v608 = vsel %vm274, %v265, 0.0
  %609 = vadd.xlane.f32.xlu0 %v608
  %v610 = vpop.xlane.xlu0 %609
  %v611 = vsel %vm274, %v266, 0.0
  %612 = vadd.xlane.f32.xlu0 %v611
  %v613 = vpop.xlane.xlu0 %612
  %v614 = vsel %vm274, %v267, 0.0
  %615 = vadd.xlane.f32.xlu0 %v614
  %v616 = vpop.xlane.xlu0 %615
  %v617 = vsel %vm274, %v268, 0.0
  %618 = vadd.xlane.f32.xlu0 %v617
  %v619 = vpop.xlane.xlu0 %618
  %v620 = vsel %vm274, %v269, 0.0
  %621 = vadd.xlane.f32.xlu0 %v620
  %v622 = vpop.xlane.xlu0 %621
  %v623 = vsel %vm274, %v270, 0.0
  %624 = vadd.xlane.f32.xlu0 %v623
  %v625 = vpop.xlane.xlu0 %624
  %v626 = vsel %vm274, %v271, 0.0
  %627 = vadd.xlane.f32.xlu0 %v626
  %v628 = vpop.xlane.xlu0 %627
  %v629 = vsel %vm274, %v272, 0.0
  %630 = vadd.xlane.f32.xlu0 %v629
  %v631 = vpop.xlane.xlu0 %630
  %v632 = vsel %vm274, %v273, 0.0
  %633 = vadd.xlane.f32.xlu0 %v632
  %v634 = vpop.xlane.xlu0 %633
  %v635 = vld [vmem:[%s2] sm:$0xff]
  %v636 = vld [vmem:[%s2 + $0x8] sm:$0xff]
  %v637 = vld [vmem:[%s2 + $0x10] sm:$0xff]
  %v638 = vld [vmem:[%s2 + $0x18] sm:$0xff]
  %v639 = vld [vmem:[%s2 + $0x20] sm:$0xff]
  %v640 = vld [vmem:[%s2 + $0x28] sm:$0xff]
  %v641 = vld [vmem:[%s2 + $0x30] sm:$0xff]
  %v642 = vld [vmem:[%s2 + $0x38] sm:$0xff]
  %v643 = vld [vmem:[%s2 + $0x40] sm:$0xff]
  %v644 = vld [vmem:[%s2 + $0x48] sm:$0xff]
  %v645 = vld [vmem:[%s2 + $0x50] sm:$0xff]
  %v646 = vld [vmem:[%s2 + $0x58] sm:$0xff]
  %v647 = vld [vmem:[%s2 + $0x60] sm:$0xff]
  %v648 = vld [vmem:[%s2 + $0x68] sm:$0xff]
  %v649 = vld [vmem:[%s2 + $0x70] sm:$0xff]
  %v650 = vld [vmem:[%s2 + $0x78] sm:$0xff]
  %v651 = vld [vmem:[%s2 + $0x80] sm:$0xff]
  %v652 = vld [vmem:[%s2 + $0x88] sm:$0xff]
  %v653 = vld [vmem:[%s2 + $0x90] sm:$0xff]
  %v654 = vld [vmem:[%s2 + $0x98] sm:$0xff]
  %v655 = vld [vmem:[%s2 + $0xa0] sm:$0xff]
  %v656 = vld [vmem:[%s2 + $0xa8] sm:$0xff]
  %v657 = vld [vmem:[%s2 + $0xb0] sm:$0xff]
  %v658 = vld [vmem:[%s2 + $0xb8] sm:$0xff]
  %v659 = vld [vmem:[%s2 + $0xc0] sm:$0xff]
  %v660 = vld [vmem:[%s2 + $0xc8] sm:$0xff]
  %v661 = vld [vmem:[%s2 + $0xd0] sm:$0xff]
  %v662 = vld [vmem:[%s2 + $0xd8] sm:$0xff]
  %v663 = vld [vmem:[%s2 + $0xe0] sm:$0xff]
  %v664 = vld [vmem:[%s2 + $0xe8] sm:$0xff]
  %v665 = vld [vmem:[%s2 + $0xf0] sm:$0xff]
  %v666 = vld [vmem:[%s2 + $0xf8] sm:$0xff]
  %v667 = vld [vmem:[%s2 + $0x100] sm:$0xff]
  %v668 = vld [vmem:[%s2 + $0x108] sm:$0xff]
  %v669 = vld [vmem:[%s2 + $0x110] sm:$0xff]
  %v670 = vld [vmem:[%s2 + $0x118] sm:$0xff]
  %v671 = vld [vmem:[%s2 + $0x120] sm:$0xff]
  %v672 = vld [vmem:[%s2 + $0x128] sm:$0xff]
  %v673 = vld [vmem:[%s2 + $0x130] sm:$0xff]
  %v674 = vld [vmem:[%s2 + $0x138] sm:$0xff]
  %v675 = vld [vmem:[%s2 + $0x140] sm:$0xff]
  %v676 = vld [vmem:[%s2 + $0x148] sm:$0xff]
  %v677 = vld [vmem:[%s2 + $0x150] sm:$0xff]
  %v678 = vld [vmem:[%s2 + $0x158] sm:$0xff]
  %v679 = vld [vmem:[%s2 + $0x160] sm:$0xff]
  %v680 = vld [vmem:[%s2 + $0x168] sm:$0xff]
  %v681 = vld [vmem:[%s2 + $0x170] sm:$0xff]
  %v682 = vld [vmem:[%s2 + $0x178] sm:$0xff]
  %v683 = vld [vmem:[%s2 + $0x180] sm:$0xff]
  %v684 = vld [vmem:[%s2 + $0x188] sm:$0xff]
  %v685 = vld [vmem:[%s2 + $0x190] sm:$0xff]
  %v686 = vld [vmem:[%s2 + $0x198] sm:$0xff]
  %v687 = vld [vmem:[%s2 + $0x1a0] sm:$0xff]
  %v688 = vld [vmem:[%s2 + $0x1a8] sm:$0xff]
  %v689 = vld [vmem:[%s2 + $0x1b0] sm:$0xff]
  %v690 = vld [vmem:[%s2 + $0x1b8] sm:$0xff]
  %v691 = vld [vmem:[%s2 + $0x1c0] sm:$0xff]
  %v692 = vld [vmem:[%s2 + $0x1c8] sm:$0xff]
  %v693 = vld [vmem:[%s2 + $0x1d0] sm:$0xff]
  %v694 = vld [vmem:[%s2 + $0x1d8] sm:$0xff]
  %v695 = vld [vmem:[%s2 + $0x1e0] sm:$0xff]
  %v696 = vld [vmem:[%s2 + $0x1e8] sm:$0xff]
  %v697 = vld [vmem:[%s2 + $0x1f0] sm:$0xff]
  %v698 = vld [vmem:[%s2 + $0x1f8] sm:$0xff]
  %v699 = vld [vmem:[%s2 + $0x200] sm:$0xff]
  %v700 = vld [vmem:[%s2 + $0x208] sm:$0xff]
  %v701 = vld [vmem:[%s2 + $0x210] sm:$0xff]
  %v702 = vld [vmem:[%s2 + $0x218] sm:$0xff]
  %v703 = vld [vmem:[%s2 + $0x220] sm:$0xff]
  %v704 = vld [vmem:[%s2 + $0x228] sm:$0xff]
  %v705 = vld [vmem:[%s2 + $0x230] sm:$0xff]
  %v706 = vld [vmem:[%s2 + $0x238] sm:$0xff]
  %v707 = vld [vmem:[%s2 + $0x240] sm:$0xff]
  %v708 = vld [vmem:[%s2 + $0x248] sm:$0xff]
  %v709 = vld [vmem:[%s2 + $0x250] sm:$0xff]
  %v710 = vld [vmem:[%s2 + $0x258] sm:$0xff]
  %v711 = vld [vmem:[%s2 + $0x260] sm:$0xff]
  %v712 = vld [vmem:[%s2 + $0x268] sm:$0xff]
  %v713 = vld [vmem:[%s2 + $0x270] sm:$0xff]
  %v714 = vld [vmem:[%s2 + $0x278] sm:$0xff]
  %v715 = vld [vmem:[%s2 + $0x280] sm:$0xff]
  %v716 = vld [vmem:[%s2 + $0x288] sm:$0xff]
  %v717 = vld [vmem:[%s2 + $0x290] sm:$0xff]
  %v718 = vld [vmem:[%s2 + $0x298] sm:$0xff]
  %v719 = vld [vmem:[%s2 + $0x2a0] sm:$0xff]
  %v720 = vld [vmem:[%s2 + $0x2a8] sm:$0xff]
  %v721 = vld [vmem:[%s2 + $0x2b0] sm:$0xff]
  %v722 = vld [vmem:[%s2 + $0x2b8] sm:$0xff]
  %v723 = vld [vmem:[%s2 + $0x2c0] sm:$0xff]
  %v724 = vld [vmem:[%s2 + $0x2c8] sm:$0xff]
  %v725 = vld [vmem:[%s2 + $0x2d0] sm:$0xff]
  %v726 = vld [vmem:[%s2 + $0x2d8] sm:$0xff]
  %v727 = vld [vmem:[%s2 + $0x2e0] sm:$0xff]
  %v728 = vld [vmem:[%s2 + $0x2e8] sm:$0xff]
  %v729 = vld [vmem:[%s2 + $0x2f0] sm:$0xff]
  %v730 = vld [vmem:[%s2 + $0x2f8] sm:$0xff]
  %v731 = vld [vmem:[%s2 + $0x300] sm:$0xff]
  %v732 = vld [vmem:[%s2 + $0x308] sm:$0xff]
  %v733 = vld [vmem:[%s2 + $0x310] sm:$0xff]
  %v734 = vld [vmem:[%s2 + $0x318] sm:$0xff]
  %v735 = vld [vmem:[%s2 + $0x320] sm:$0xff]
  %v736 = vld [vmem:[%s2 + $0x328] sm:$0xff]
  %v737 = vld [vmem:[%s2 + $0x330] sm:$0xff]
  %v738 = vld [vmem:[%s2 + $0x338] sm:$0xff]
  %v739 = vld [vmem:[%s2 + $0x340] sm:$0xff]
  %v740 = vld [vmem:[%s2 + $0x348] sm:$0xff]
  %v741 = vld [vmem:[%s2 + $0x350] sm:$0xff]
  %v742 = vld [vmem:[%s2 + $0x358] sm:$0xff]
  %v743 = vld [vmem:[%s2 + $0x360] sm:$0xff]
  %v744 = vld [vmem:[%s2 + $0x368] sm:$0xff]
  %v745 = vld [vmem:[%s2 + $0x370] sm:$0xff]
  %v746 = vld [vmem:[%s2 + $0x378] sm:$0xff]
  %v747 = vld [vmem:[%s2 + $0x380] sm:$0xff]
  %v748 = vld [vmem:[%s2 + $0x388] sm:$0xff]
  %v749 = vld [vmem:[%s2 + $0x390] sm:$0xff]
  %v750 = vld [vmem:[%s2 + $0x398] sm:$0xff]
  %v751 = vld [vmem:[%s2 + $0x3a0] sm:$0xff]
  %v752 = vld [vmem:[%s2 + $0x3a8] sm:$0xff]
  %v753 = vld [vmem:[%s2 + $0x3b0] sm:$0xff]
  %v754 = vld [vmem:[%s2 + $0x3b8] sm:$0xff]
  %v755 = vadd.f32 %v277, %v635
  %v756 = vadd.f32 %v280, %v636
  %v757 = vadd.f32 %v283, %v637
  %v758 = vadd.f32 %v286, %v638
  %v759 = vadd.f32 %v289, %v639
  %v760 = vadd.f32 %v292, %v640
  %v761 = vadd.f32 %v295, %v641
  %v762 = vadd.f32 %v298, %v642
  %v763 = vadd.f32 %v301, %v643
  %v764 = vadd.f32 %v304, %v644
  %v765 = vadd.f32 %v307, %v645
  %v766 = vadd.f32 %v310, %v646
  %v767 = vadd.f32 %v313, %v647
  %v768 = vadd.f32 %v316, %v648
  %v769 = vadd.f32 %v319, %v649
  %v770 = vadd.f32 %v322, %v650
  %v771 = vadd.f32 %v325, %v651
  %v772 = vadd.f32 %v328, %v652
  %v773 = vadd.f32 %v331, %v653
  %v774 = vadd.f32 %v334, %v654
  %v775 = vadd.f32 %v337, %v655
  %v776 = vadd.f32 %v340, %v656
  %v777 = vadd.f32 %v343, %v657
  %v778 = vadd.f32 %v346, %v658
  %v779 = vadd.f32 %v349, %v659
  %v780 = vadd.f32 %v352, %v660
  %v781 = vadd.f32 %v355, %v661
  %v782 = vadd.f32 %v358, %v662
  %v783 = vadd.f32 %v361, %v663
  %v784 = vadd.f32 %v364, %v664
  %v785 = vadd.f32 %v367, %v665
  %v786 = vadd.f32 %v370, %v666
  %v787 = vadd.f32 %v373, %v667
  %v788 = vadd.f32 %v376, %v668
  %v789 = vadd.f32 %v379, %v669
  %v790 = vadd.f32 %v382, %v670
  %v791 = vadd.f32 %v385, %v671
  %v792 = vadd.f32 %v388, %v672
  %v793 = vadd.f32 %v391, %v673
  %v794 = vadd.f32 %v394, %v674
  %v795 = vadd.f32 %v397, %v675
  %v796 = vadd.f32 %v400, %v676
  %v797 = vadd.f32 %v403, %v677
  %v798 = vadd.f32 %v406, %v678
  %v799 = vadd.f32 %v409, %v679
  %v800 = vadd.f32 %v412, %v680
  %v801 = vadd.f32 %v415, %v681
  %v802 = vadd.f32 %v418, %v682
  %v803 = vadd.f32 %v421, %v683
  %v804 = vadd.f32 %v424, %v684
  %v805 = vadd.f32 %v427, %v685
  %v806 = vadd.f32 %v430, %v686
  %v807 = vadd.f32 %v433, %v687
  %v808 = vadd.f32 %v436, %v688
  %v809 = vadd.f32 %v439, %v689
  %v810 = vadd.f32 %v442, %v690
  %v811 = vadd.f32 %v445, %v691
  %v812 = vadd.f32 %v448, %v692
  %v813 = vadd.f32 %v451, %v693
  %v814 = vadd.f32 %v454, %v694
  %v815 = vadd.f32 %v457, %v695
  %v816 = vadd.f32 %v460, %v696
  %v817 = vadd.f32 %v463, %v697
  %v818 = vadd.f32 %v466, %v698
  %v819 = vadd.f32 %v469, %v699
  %v820 = vadd.f32 %v472, %v700
  %v821 = vadd.f32 %v475, %v701
  %v822 = vadd.f32 %v478, %v702
  %v823 = vadd.f32 %v481, %v703
  %v824 = vadd.f32 %v484, %v704
  %v825 = vadd.f32 %v487, %v705
  %v826 = vadd.f32 %v490, %v706
  %v827 = vadd.f32 %v493, %v707
  %v828 = vadd.f32 %v496, %v708
  %v829 = vadd.f32 %v499, %v709
  %v830 = vadd.f32 %v502, %v710
  %v831 = vadd.f32 %v505, %v711
  %v832 = vadd.f32 %v508, %v712
  %v833 = vadd.f32 %v511, %v713
  %v834 = vadd.f32 %v514, %v714
  %v835 = vadd.f32 %v517, %v715
  %v836 = vadd.f32 %v520, %v716
  %v837 = vadd.f32 %v523, %v717
  %v838 = vadd.f32 %v526, %v718
  %v839 = vadd.f32 %v529, %v719
  %v840 = vadd.f32 %v532, %v720
  %v841 = vadd.f32 %v535, %v721
  %v842 = vadd.f32 %v538, %v722
  %v843 = vadd.f32 %v541, %v723
  %v844 = vadd.f32 %v544, %v724
  %v845 = vadd.f32 %v547, %v725
  %v846 = vadd.f32 %v550, %v726
  %v847 = vadd.f32 %v553, %v727
  %v848 = vadd.f32 %v556, %v728
  %v849 = vadd.f32 %v559, %v729
  %v850 = vadd.f32 %v562, %v730
  %v851 = vadd.f32 %v565, %v731
  %v852 = vadd.f32 %v568, %v732
  %v853 = vadd.f32 %v571, %v733
  %v854 = vadd.f32 %v574, %v734
  %v855 = vadd.f32 %v577, %v735
  %v856 = vadd.f32 %v580, %v736
  %v857 = vadd.f32 %v583, %v737
  %v858 = vadd.f32 %v586, %v738
  %v859 = vadd.f32 %v589, %v739
  %v860 = vadd.f32 %v592, %v740
  %v861 = vadd.f32 %v595, %v741
  %v862 = vadd.f32 %v598, %v742
  %v863 = vadd.f32 %v601, %v743
  %v864 = vadd.f32 %v604, %v744
  %v865 = vadd.f32 %v607, %v745
  %v866 = vadd.f32 %v610, %v746
  %v867 = vadd.f32 %v613, %v747
  %v868 = vadd.f32 %v616, %v748
  %v869 = vadd.f32 %v619, %v749
  %v870 = vadd.f32 %v622, %v750
  %v871 = vadd.f32 %v625, %v751
  %v872 = vadd.f32 %v628, %v752
  %v873 = vadd.f32 %v631, %v753
  %v874 = vadd.f32 %v634, %v754
  %v875 = vxor.u32 %v755, 2147483648
  %v876 = vxor.u32 %v756, 2147483648
  %v877 = vxor.u32 %v757, 2147483648
  %v878 = vxor.u32 %v758, 2147483648
  %v879 = vxor.u32 %v759, 2147483648
  %v880 = vxor.u32 %v760, 2147483648
  %v881 = vxor.u32 %v761, 2147483648
  %v882 = vxor.u32 %v762, 2147483648
  %v883 = vxor.u32 %v763, 2147483648
  %v884 = vxor.u32 %v764, 2147483648
  %v885 = vxor.u32 %v765, 2147483648
  %v886 = vxor.u32 %v766, 2147483648
  %v887 = vxor.u32 %v767, 2147483648
  %v888 = vxor.u32 %v768, 2147483648
  %v889 = vxor.u32 %v769, 2147483648
  %v890 = vxor.u32 %v770, 2147483648
  %v891 = vxor.u32 %v771, 2147483648
  %v892 = vxor.u32 %v772, 2147483648
  %v893 = vxor.u32 %v773, 2147483648
  %v894 = vxor.u32 %v774, 2147483648
  %v895 = vxor.u32 %v775, 2147483648
  %v896 = vxor.u32 %v776, 2147483648
  %v897 = vxor.u32 %v777, 2147483648
  %v898 = vxor.u32 %v778, 2147483648
  %v899 = vxor.u32 %v779, 2147483648
  %v900 = vxor.u32 %v780, 2147483648
  %v901 = vxor.u32 %v781, 2147483648
  %v902 = vxor.u32 %v782, 2147483648
  %v903 = vxor.u32 %v783, 2147483648
  %v904 = vxor.u32 %v784, 2147483648
  %v905 = vxor.u32 %v785, 2147483648
  %v906 = vxor.u32 %v786, 2147483648
  %v907 = vxor.u32 %v787, 2147483648
  %v908 = vxor.u32 %v788, 2147483648
  %v909 = vxor.u32 %v789, 2147483648
  %v910 = vxor.u32 %v790, 2147483648
  %v911 = vxor.u32 %v791, 2147483648
  %v912 = vxor.u32 %v792, 2147483648
  %v913 = vxor.u32 %v793, 2147483648
  %v914 = vxor.u32 %v794, 2147483648
  %v915 = vxor.u32 %v795, 2147483648
  %v916 = vxor.u32 %v796, 2147483648
  %v917 = vxor.u32 %v797, 2147483648
  %v918 = vxor.u32 %v798, 2147483648
  %v919 = vxor.u32 %v799, 2147483648
  %v920 = vxor.u32 %v800, 2147483648
  %v921 = vxor.u32 %v801, 2147483648
  %v922 = vxor.u32 %v802, 2147483648
  %v923 = vxor.u32 %v803, 2147483648
  %v924 = vxor.u32 %v804, 2147483648
  %v925 = vxor.u32 %v805, 2147483648
  %v926 = vxor.u32 %v806, 2147483648
  %v927 = vxor.u32 %v807, 2147483648
  %v928 = vxor.u32 %v808, 2147483648
  %v929 = vxor.u32 %v809, 2147483648
  %v930 = vxor.u32 %v810, 2147483648
  %v931 = vxor.u32 %v811, 2147483648
  %v932 = vxor.u32 %v812, 2147483648
  %v933 = vxor.u32 %v813, 2147483648
  %v934 = vxor.u32 %v814, 2147483648
  %v935 = vxor.u32 %v815, 2147483648
  %v936 = vxor.u32 %v816, 2147483648
  %v937 = vxor.u32 %v817, 2147483648
  %v938 = vxor.u32 %v818, 2147483648
  %v939 = vxor.u32 %v819, 2147483648
  %v940 = vxor.u32 %v820, 2147483648
  %v941 = vxor.u32 %v821, 2147483648
  %v942 = vxor.u32 %v822, 2147483648
  %v943 = vxor.u32 %v823, 2147483648
  %v944 = vxor.u32 %v824, 2147483648
  %v945 = vxor.u32 %v825, 2147483648
  %v946 = vxor.u32 %v826, 2147483648
  %v947 = vxor.u32 %v827, 2147483648
  %v948 = vxor.u32 %v828, 2147483648
  %v949 = vxor.u32 %v829, 2147483648
  %v950 = vxor.u32 %v830, 2147483648
  %v951 = vxor.u32 %v831, 2147483648
  %v952 = vxor.u32 %v832, 2147483648
  %v953 = vxor.u32 %v833, 2147483648
  %v954 = vxor.u32 %v834, 2147483648
  %v955 = vxor.u32 %v835, 2147483648
  %v956 = vxor.u32 %v836, 2147483648
  %v957 = vxor.u32 %v837, 2147483648
  %v958 = vxor.u32 %v838, 2147483648
  %v959 = vxor.u32 %v839, 2147483648
  %v960 = vxor.u32 %v840, 2147483648
  %v961 = vxor.u32 %v841, 2147483648
  %v962 = vxor.u32 %v842, 2147483648
  %v963 = vxor.u32 %v843, 2147483648
  %v964 = vxor.u32 %v844, 2147483648
  %v965 = vxor.u32 %v845, 2147483648
  %v966 = vxor.u32 %v846, 2147483648
  %v967 = vxor.u32 %v847, 2147483648
  %v968 = vxor.u32 %v848, 2147483648
  %v969 = vxor.u32 %v849, 2147483648
  %v970 = vxor.u32 %v850, 2147483648
  %v971 = vxor.u32 %v851, 2147483648
  %v972 = vxor.u32 %v852, 2147483648
  %v973 = vxor.u32 %v853, 2147483648
  %v974 = vxor.u32 %v854, 2147483648
  %v975 = vxor.u32 %v855, 2147483648
  %v976 = vxor.u32 %v856, 2147483648
  %v977 = vxor.u32 %v857, 2147483648
  %v978 = vxor.u32 %v858, 2147483648
  %v979 = vxor.u32 %v859, 2147483648
  %v980 = vxor.u32 %v860, 2147483648
  %v981 = vxor.u32 %v861, 2147483648
  %v982 = vxor.u32 %v862, 2147483648
  %v983 = vxor.u32 %v863, 2147483648
  %v984 = vxor.u32 %v864, 2147483648
  %v985 = vxor.u32 %v865, 2147483648
  %v986 = vxor.u32 %v866, 2147483648
  %v987 = vxor.u32 %v867, 2147483648
  %v988 = vxor.u32 %v868, 2147483648
  %v989 = vxor.u32 %v869, 2147483648
  %v990 = vxor.u32 %v870, 2147483648
  %v991 = vxor.u32 %v871, 2147483648
  %v992 = vxor.u32 %v872, 2147483648
  %v993 = vxor.u32 %v873, 2147483648
  %v994 = vxor.u32 %v874, 2147483648
  %v995 = vmul.f32 %v875, 1.442695
  %v996 = vpow.pop %v995
  %v997 = vmul.f32 %v876, 1.442695
  %v998 = vpow.pop %v997
  %v999 = vmul.f32 %v877, 1.442695
  %v1000 = vpow.pop %v999
  %v1001 = vmul.f32 %v878, 1.442695
  %v1002 = vpow.pop %v1001
  %v1003 = vmul.f32 %v879, 1.442695
  %v1004 = vpow.pop %v1003
  %v1005 = vmul.f32 %v880, 1.442695
  %v1006 = vpow.pop %v1005
  %v1007 = vmul.f32 %v881, 1.442695
  %v1008 = vpow.pop %v1007
  %v1009 = vmul.f32 %v882, 1.442695
  %v1010 = vpow.pop %v1009
  %v1011 = vmul.f32 %v883, 1.442695
  %v1012 = vpow.pop %v1011
  %v1013 = vmul.f32 %v884, 1.442695
  %v1014 = vpow.pop %v1013
  %v1015 = vmul.f32 %v885, 1.442695
  %v1016 = vpow.pop %v1015
  %v1017 = vmul.f32 %v886, 1.442695
  %v1018 = vpow.pop %v1017
  %v1019 = vmul.f32 %v887, 1.442695
  %v1020 = vpow.pop %v1019
  %v1021 = vmul.f32 %v888, 1.442695
  %v1022 = vpow.pop %v1021
  %v1023 = vmul.f32 %v889, 1.442695
  %v1024 = vpow.pop %v1023
  %v1025 = vmul.f32 %v890, 1.442695
  %v1026 = vpow.pop %v1025
  %v1027 = vmul.f32 %v891, 1.442695
  %v1028 = vpow.pop %v1027
  %v1029 = vmul.f32 %v892, 1.442695
  %v1030 = vpow.pop %v1029
  %v1031 = vmul.f32 %v893, 1.442695
  %v1032 = vpow.pop %v1031
  %v1033 = vmul.f32 %v894, 1.442695
  %v1034 = vpow.pop %v1033
  %v1035 = vmul.f32 %v895, 1.442695
  %v1036 = vpow.pop %v1035
  %v1037 = vmul.f32 %v896, 1.442695
  %v1038 = vpow.pop %v1037
  %v1039 = vmul.f32 %v897, 1.442695
  %v1040 = vpow.pop %v1039
  %v1041 = vmul.f32 %v898, 1.442695
  %v1042 = vpow.pop %v1041
  %v1043 = vmul.f32 %v899, 1.442695
  %v1044 = vpow.pop %v1043
  %v1045 = vmul.f32 %v900, 1.442695
  %v1046 = vpow.pop %v1045
  %v1047 = vmul.f32 %v901, 1.442695
  %v1048 = vpow.pop %v1047
  %v1049 = vmul.f32 %v902, 1.442695
  %v1050 = vpow.pop %v1049
  %v1051 = vmul.f32 %v903, 1.442695
  %v1052 = vpow.pop %v1051
  %v1053 = vmul.f32 %v904, 1.442695
  %v1054 = vpow.pop %v1053
  %v1055 = vmul.f32 %v905, 1.442695
  %v1056 = vpow.pop %v1055
  %v1057 = vmul.f32 %v906, 1.442695
  %v1058 = vpow.pop %v1057
  %v1059 = vmul.f32 %v907, 1.442695
  %v1060 = vpow.pop %v1059
  %v1061 = vmul.f32 %v908, 1.442695
  %v1062 = vpow.pop %v1061
  %v1063 = vmul.f32 %v909, 1.442695
  %v1064 = vpow.pop %v1063
  %v1065 = vmul.f32 %v910, 1.442695
  %v1066 = vpow.pop %v1065
  %v1067 = vmul.f32 %v911, 1.442695
  %v1068 = vpow.pop %v1067
  %v1069 = vmul.f32 %v912, 1.442695
  %v1070 = vpow.pop %v1069
  %v1071 = vmul.f32 %v913, 1.442695
  %v1072 = vpow.pop %v1071
  %v1073 = vmul.f32 %v914, 1.442695
  %v1074 = vpow.pop %v1073
  %v1075 = vmul.f32 %v915, 1.442695
  %v1076 = vpow.pop %v1075
  %v1077 = vmul.f32 %v916, 1.442695
  %v1078 = vpow.pop %v1077
  %v1079 = vmul.f32 %v917, 1.442695
  %v1080 = vpow.pop %v1079
  %v1081 = vmul.f32 %v918, 1.442695
  %v1082 = vpow.pop %v1081
  %v1083 = vmul.f32 %v919, 1.442695
  %v1084 = vpow.pop %v1083
  %v1085 = vmul.f32 %v920, 1.442695
  %v1086 = vpow.pop %v1085
  %v1087 = vmul.f32 %v921, 1.442695
  %v1088 = vpow.pop %v1087
  %v1089 = vmul.f32 %v922, 1.442695
  %v1090 = vpow.pop %v1089
  %v1091 = vmul.f32 %v923, 1.442695
  %v1092 = vpow.pop %v1091
  %v1093 = vmul.f32 %v924, 1.442695
  %v1094 = vpow.pop %v1093
  %v1095 = vmul.f32 %v925, 1.442695
  %v1096 = vpow.pop %v1095
  %v1097 = vmul.f32 %v926, 1.442695
  %v1098 = vpow.pop %v1097
  %v1099 = vmul.f32 %v927, 1.442695
  %v1100 = vpow.pop %v1099
  %v1101 = vmul.f32 %v928, 1.442695
  %v1102 = vpow.pop %v1101
  %v1103 = vmul.f32 %v929, 1.442695
  %v1104 = vpow.pop %v1103
  %v1105 = vmul.f32 %v930, 1.442695
  %v1106 = vpow.pop %v1105
  %v1107 = vmul.f32 %v931, 1.442695
  %v1108 = vpow.pop %v1107
  %v1109 = vmul.f32 %v932, 1.442695
  %v1110 = vpow.pop %v1109
  %v1111 = vmul.f32 %v933, 1.442695
  %v1112 = vpow.pop %v1111
  %v1113 = vmul.f32 %v934, 1.442695
  %v1114 = vpow.pop %v1113
  %v1115 = vmul.f32 %v935, 1.442695
  %v1116 = vpow.pop %v1115
  %v1117 = vmul.f32 %v936, 1.442695
  %v1118 = vpow.pop %v1117
  %v1119 = vmul.f32 %v937, 1.442695
  %v1120 = vpow.pop %v1119
  %v1121 = vmul.f32 %v938, 1.442695
  %v1122 = vpow.pop %v1121
  %v1123 = vmul.f32 %v939, 1.442695
  %v1124 = vpow.pop %v1123
  %v1125 = vmul.f32 %v940, 1.442695
  %v1126 = vpow.pop %v1125
  %v1127 = vmul.f32 %v941, 1.442695
  %v1128 = vpow.pop %v1127
  %v1129 = vmul.f32 %v942, 1.442695
  %v1130 = vpow.pop %v1129
  %v1131 = vmul.f32 %v943, 1.442695
  %v1132 = vpow.pop %v1131
  %v1133 = vmul.f32 %v944, 1.442695
  %v1134 = vpow.pop %v1133
  %v1135 = vmul.f32 %v945, 1.442695
  %v1136 = vpow.pop %v1135
  %v1137 = vmul.f32 %v946, 1.442695
  %v1138 = vpow.pop %v1137
  %v1139 = vmul.f32 %v947, 1.442695
  %v1140 = vpow.pop %v1139
  %v1141 = vmul.f32 %v948, 1.442695
  %v1142 = vpow.pop %v1141
  %v1143 = vmul.f32 %v949, 1.442695
  %v1144 = vpow.pop %v1143
  %v1145 = vmul.f32 %v950, 1.442695
  %v1146 = vpow.pop %v1145
  %v1147 = vmul.f32 %v951, 1.442695
  %v1148 = vpow.pop %v1147
  %v1149 = vmul.f32 %v952, 1.442695
  %v1150 = vpow.pop %v1149
  %v1151 = vmul.f32 %v953, 1.442695
  %v1152 = vpow.pop %v1151
  %v1153 = vmul.f32 %v954, 1.442695
  %v1154 = vpow.pop %v1153
  %v1155 = vmul.f32 %v955, 1.442695
  %v1156 = vpow.pop %v1155
  %v1157 = vmul.f32 %v956, 1.442695
  %v1158 = vpow.pop %v1157
  %v1159 = vmul.f32 %v957, 1.442695
  %v1160 = vpow.pop %v1159
  %v1161 = vmul.f32 %v958, 1.442695
  %v1162 = vpow.pop %v1161
  %v1163 = vmul.f32 %v959, 1.442695
  %v1164 = vpow.pop %v1163
  %v1165 = vmul.f32 %v960, 1.442695
  %v1166 = vpow.pop %v1165
  %v1167 = vmul.f32 %v961, 1.442695
  %v1168 = vpow.pop %v1167
  %v1169 = vmul.f32 %v962, 1.442695
  %v1170 = vpow.pop %v1169
  %v1171 = vmul.f32 %v963, 1.442695
  %v1172 = vpow.pop %v1171
  %v1173 = vmul.f32 %v964, 1.442695
  %v1174 = vpow.pop %v1173
  %v1175 = vmul.f32 %v965, 1.442695
  %v1176 = vpow.pop %v1175
  %v1177 = vmul.f32 %v966, 1.442695
  %v1178 = vpow.pop %v1177
  %v1179 = vmul.f32 %v967, 1.442695
  %v1180 = vpow.pop %v1179
  %v1181 = vmul.f32 %v968, 1.442695
  %v1182 = vpow.pop %v1181
  %v1183 = vmul.f32 %v969, 1.442695
  %v1184 = vpow.pop %v1183
  %v1185 = vmul.f32 %v970, 1.442695
  %v1186 = vpow.pop %v1185
  %v1187 = vmul.f32 %v971, 1.442695
  %v1188 = vpow.pop %v1187
  %v1189 = vmul.f32 %v972, 1.442695
  %v1190 = vpow.pop %v1189
  %v1191 = vmul.f32 %v973, 1.442695
  %v1192 = vpow.pop %v1191
  %v1193 = vmul.f32 %v974, 1.442695
  %v1194 = vpow.pop %v1193
  %v1195 = vmul.f32 %v975, 1.442695
  %v1196 = vpow.pop %v1195
  %v1197 = vmul.f32 %v976, 1.442695
  %v1198 = vpow.pop %v1197
  %v1199 = vmul.f32 %v977, 1.442695
  %v1200 = vpow.pop %v1199
  %v1201 = vmul.f32 %v978, 1.442695
  %v1202 = vpow.pop %v1201
  %v1203 = vmul.f32 %v979, 1.442695
  %v1204 = vpow.pop %v1203
  %v1205 = vmul.f32 %v980, 1.442695
  %v1206 = vpow.pop %v1205
  %v1207 = vmul.f32 %v981, 1.442695
  %v1208 = vpow.pop %v1207
  %v1209 = vmul.f32 %v982, 1.442695
  %v1210 = vpow.pop %v1209
  %v1211 = vmul.f32 %v983, 1.442695
  %v1212 = vpow.pop %v1211
  %v1213 = vmul.f32 %v984, 1.442695
  %v1214 = vpow.pop %v1213
  %v1215 = vmul.f32 %v985, 1.442695
  %v1216 = vpow.pop %v1215
  %v1217 = vmul.f32 %v986, 1.442695
  %v1218 = vpow.pop %v1217
  %v1219 = vmul.f32 %v987, 1.442695
  %v1220 = vpow.pop %v1219
  %v1221 = vmul.f32 %v988, 1.442695
  %v1222 = vpow.pop %v1221
  %v1223 = vmul.f32 %v989, 1.442695
  %v1224 = vpow.pop %v1223
  %v1225 = vmul.f32 %v990, 1.442695
  %v1226 = vpow.pop %v1225
  %v1227 = vmul.f32 %v991, 1.442695
  %v1228 = vpow.pop %v1227
  %v1229 = vmul.f32 %v992, 1.442695
  %v1230 = vpow.pop %v1229
  %v1231 = vmul.f32 %v993, 1.442695
  %v1232 = vpow.pop %v1231
  %v1233 = vmul.f32 %v994, 1.442695
  %v1234 = vpow.pop %v1233
  %v1235 = vadd.f32 %v996, 1.0
  %v1236 = vadd.f32 %v998, 1.0
  %v1237 = vadd.f32 %v1000, 1.0
  %v1238 = vadd.f32 %v1002, 1.0
  %v1239 = vadd.f32 %v1004, 1.0
  %v1240 = vadd.f32 %v1006, 1.0
  %v1241 = vadd.f32 %v1008, 1.0
  %v1242 = vadd.f32 %v1010, 1.0
  %v1243 = vadd.f32 %v1012, 1.0
  %v1244 = vadd.f32 %v1014, 1.0
  %v1245 = vadd.f32 %v1016, 1.0
  %v1246 = vadd.f32 %v1018, 1.0
  %v1247 = vadd.f32 %v1020, 1.0
  %v1248 = vadd.f32 %v1022, 1.0
  %v1249 = vadd.f32 %v1024, 1.0
  %v1250 = vadd.f32 %v1026, 1.0
  %v1251 = vadd.f32 %v1028, 1.0
  %v1252 = vadd.f32 %v1030, 1.0
  %v1253 = vadd.f32 %v1032, 1.0
  %v1254 = vadd.f32 %v1034, 1.0
  %v1255 = vadd.f32 %v1036, 1.0
  %v1256 = vadd.f32 %v1038, 1.0
  %v1257 = vadd.f32 %v1040, 1.0
  %v1258 = vadd.f32 %v1042, 1.0
  %v1259 = vadd.f32 %v1044, 1.0
  %v1260 = vadd.f32 %v1046, 1.0
  %v1261 = vadd.f32 %v1048, 1.0
  %v1262 = vadd.f32 %v1050, 1.0
  %v1263 = vadd.f32 %v1052, 1.0
  %v1264 = vadd.f32 %v1054, 1.0
  %v1265 = vadd.f32 %v1056, 1.0
  %v1266 = vadd.f32 %v1058, 1.0
  %v1267 = vadd.f32 %v1060, 1.0
  %v1268 = vadd.f32 %v1062, 1.0
  %v1269 = vadd.f32 %v1064, 1.0
  %v1270 = vadd.f32 %v1066, 1.0
  %v1271 = vadd.f32 %v1068, 1.0
  %v1272 = vadd.f32 %v1070, 1.0
  %v1273 = vadd.f32 %v1072, 1.0
  %v1274 = vadd.f32 %v1074, 1.0
  %v1275 = vadd.f32 %v1076, 1.0
  %v1276 = vadd.f32 %v1078, 1.0
  %v1277 = vadd.f32 %v1080, 1.0
  %v1278 = vadd.f32 %v1082, 1.0
  %v1279 = vadd.f32 %v1084, 1.0
  %v1280 = vadd.f32 %v1086, 1.0
  %v1281 = vadd.f32 %v1088, 1.0
  %v1282 = vadd.f32 %v1090, 1.0
  %v1283 = vadd.f32 %v1092, 1.0
  %v1284 = vadd.f32 %v1094, 1.0
  %v1285 = vadd.f32 %v1096, 1.0
  %v1286 = vadd.f32 %v1098, 1.0
  %v1287 = vadd.f32 %v1100, 1.0
  %v1288 = vadd.f32 %v1102, 1.0
  %v1289 = vadd.f32 %v1104, 1.0
  %v1290 = vadd.f32 %v1106, 1.0
  %v1291 = vadd.f32 %v1108, 1.0
  %v1292 = vadd.f32 %v1110, 1.0
  %v1293 = vadd.f32 %v1112, 1.0
  %v1294 = vadd.f32 %v1114, 1.0
  %v1295 = vadd.f32 %v1116, 1.0
  %v1296 = vadd.f32 %v1118, 1.0
  %v1297 = vadd.f32 %v1120, 1.0
  %v1298 = vadd.f32 %v1122, 1.0
  %v1299 = vadd.f32 %v1124, 1.0
  %v1300 = vadd.f32 %v1126, 1.0
  %v1301 = vadd.f32 %v1128, 1.0
  %v1302 = vadd.f32 %v1130, 1.0
  %v1303 = vadd.f32 %v1132, 1.0
  %v1304 = vadd.f32 %v1134, 1.0
  %v1305 = vadd.f32 %v1136, 1.0
  %v1306 = vadd.f32 %v1138, 1.0
  %v1307 = vadd.f32 %v1140, 1.0
  %v1308 = vadd.f32 %v1142, 1.0
  %v1309 = vadd.f32 %v1144, 1.0
  %v1310 = vadd.f32 %v1146, 1.0
  %v1311 = vadd.f32 %v1148, 1.0
  %v1312 = vadd.f32 %v1150, 1.0
  %v1313 = vadd.f32 %v1152, 1.0
  %v1314 = vadd.f32 %v1154, 1.0
  %v1315 = vadd.f32 %v1156, 1.0
  %v1316 = vadd.f32 %v1158, 1.0
  %v1317 = vadd.f32 %v1160, 1.0
  %v1318 = vadd.f32 %v1162, 1.0
  %v1319 = vadd.f32 %v1164, 1.0
  %v1320 = vadd.f32 %v1166, 1.0
  %v1321 = vadd.f32 %v1168, 1.0
  %v1322 = vadd.f32 %v1170, 1.0
  %v1323 = vadd.f32 %v1172, 1.0
  %v1324 = vadd.f32 %v1174, 1.0
  %v1325 = vadd.f32 %v1176, 1.0
  %v1326 = vadd.f32 %v1178, 1.0
  %v1327 = vadd.f32 %v1180, 1.0
  %v1328 = vadd.f32 %v1182, 1.0
  %v1329 = vadd.f32 %v1184, 1.0
  %v1330 = vadd.f32 %v1186, 1.0
  %v1331 = vadd.f32 %v1188, 1.0
  %v1332 = vadd.f32 %v1190, 1.0
  %v1333 = vadd.f32 %v1192, 1.0
  %v1334 = vadd.f32 %v1194, 1.0
  %v1335 = vadd.f32 %v1196, 1.0
  %v1336 = vadd.f32 %v1198, 1.0
  %v1337 = vadd.f32 %v1200, 1.0
  %v1338 = vadd.f32 %v1202, 1.0
  %v1339 = vadd.f32 %v1204, 1.0
  %v1340 = vadd.f32 %v1206, 1.0
  %v1341 = vadd.f32 %v1208, 1.0
  %v1342 = vadd.f32 %v1210, 1.0
  %v1343 = vadd.f32 %v1212, 1.0
  %v1344 = vadd.f32 %v1214, 1.0
  %v1345 = vadd.f32 %v1216, 1.0
  %v1346 = vadd.f32 %v1218, 1.0
  %v1347 = vadd.f32 %v1220, 1.0
  %v1348 = vadd.f32 %v1222, 1.0
  %v1349 = vadd.f32 %v1224, 1.0
  %v1350 = vadd.f32 %v1226, 1.0
  %v1351 = vadd.f32 %v1228, 1.0
  %v1352 = vadd.f32 %v1230, 1.0
  %v1353 = vadd.f32 %v1232, 1.0
  %v1354 = vadd.f32 %v1234, 1.0
  %v1355 = vrcp.pop %v1235
  %v1356 = vmul.f32 1.0, %v1355
  %v1357 = vrcp.pop %v1236
  %v1358 = vmul.f32 1.0, %v1357
  %v1359 = vrcp.pop %v1237
  %v1360 = vmul.f32 1.0, %v1359
  %v1361 = vrcp.pop %v1238
  %v1362 = vmul.f32 1.0, %v1361
  %v1363 = vrcp.pop %v1239
  %v1364 = vmul.f32 1.0, %v1363
  %v1365 = vrcp.pop %v1240
  %v1366 = vmul.f32 1.0, %v1365
  %v1367 = vrcp.pop %v1241
  %v1368 = vmul.f32 1.0, %v1367
  %v1369 = vrcp.pop %v1242
  %v1370 = vmul.f32 1.0, %v1369
  %v1371 = vrcp.pop %v1243
  %v1372 = vmul.f32 1.0, %v1371
  %v1373 = vrcp.pop %v1244
  %v1374 = vmul.f32 1.0, %v1373
  %v1375 = vrcp.pop %v1245
  %v1376 = vmul.f32 1.0, %v1375
  %v1377 = vrcp.pop %v1246
  %v1378 = vmul.f32 1.0, %v1377
  %v1379 = vrcp.pop %v1247
  %v1380 = vmul.f32 1.0, %v1379
  %v1381 = vrcp.pop %v1248
  %v1382 = vmul.f32 1.0, %v1381
  %v1383 = vrcp.pop %v1249
  %v1384 = vmul.f32 1.0, %v1383
  %v1385 = vrcp.pop %v1250
  %v1386 = vmul.f32 1.0, %v1385
  %v1387 = vrcp.pop %v1251
  %v1388 = vmul.f32 1.0, %v1387
  %v1389 = vrcp.pop %v1252
  %v1390 = vmul.f32 1.0, %v1389
  %v1391 = vrcp.pop %v1253
  %v1392 = vmul.f32 1.0, %v1391
  %v1393 = vrcp.pop %v1254
  %v1394 = vmul.f32 1.0, %v1393
  %v1395 = vrcp.pop %v1255
  %v1396 = vmul.f32 1.0, %v1395
  %v1397 = vrcp.pop %v1256
  %v1398 = vmul.f32 1.0, %v1397
  %v1399 = vrcp.pop %v1257
  %v1400 = vmul.f32 1.0, %v1399
  %v1401 = vrcp.pop %v1258
  %v1402 = vmul.f32 1.0, %v1401
  %v1403 = vrcp.pop %v1259
  %v1404 = vmul.f32 1.0, %v1403
  %v1405 = vrcp.pop %v1260
  %v1406 = vmul.f32 1.0, %v1405
  %v1407 = vrcp.pop %v1261
  %v1408 = vmul.f32 1.0, %v1407
  %v1409 = vrcp.pop %v1262
  %v1410 = vmul.f32 1.0, %v1409
  %v1411 = vrcp.pop %v1263
  %v1412 = vmul.f32 1.0, %v1411
  %v1413 = vrcp.pop %v1264
  %v1414 = vmul.f32 1.0, %v1413
  %v1415 = vrcp.pop %v1265
  %v1416 = vmul.f32 1.0, %v1415
  %v1417 = vrcp.pop %v1266
  %v1418 = vmul.f32 1.0, %v1417
  %v1419 = vrcp.pop %v1267
  %v1420 = vmul.f32 1.0, %v1419
  %v1421 = vrcp.pop %v1268
  %v1422 = vmul.f32 1.0, %v1421
  %v1423 = vrcp.pop %v1269
  %v1424 = vmul.f32 1.0, %v1423
  %v1425 = vrcp.pop %v1270
  %v1426 = vmul.f32 1.0, %v1425
  %v1427 = vrcp.pop %v1271
  %v1428 = vmul.f32 1.0, %v1427
  %v1429 = vrcp.pop %v1272
  %v1430 = vmul.f32 1.0, %v1429
  %v1431 = vrcp.pop %v1273
  %v1432 = vmul.f32 1.0, %v1431
  %v1433 = vrcp.pop %v1274
  %v1434 = vmul.f32 1.0, %v1433
  %v1435 = vrcp.pop %v1275
  %v1436 = vmul.f32 1.0, %v1435
  %v1437 = vrcp.pop %v1276
  %v1438 = vmul.f32 1.0, %v1437
  %v1439 = vrcp.pop %v1277
  %v1440 = vmul.f32 1.0, %v1439
  %v1441 = vrcp.pop %v1278
  %v1442 = vmul.f32 1.0, %v1441
  %v1443 = vrcp.pop %v1279
  %v1444 = vmul.f32 1.0, %v1443
  %v1445 = vrcp.pop %v1280
  %v1446 = vmul.f32 1.0, %v1445
  %v1447 = vrcp.pop %v1281
  %v1448 = vmul.f32 1.0, %v1447
  %v1449 = vrcp.pop %v1282
  %v1450 = vmul.f32 1.0, %v1449
  %v1451 = vrcp.pop %v1283
  %v1452 = vmul.f32 1.0, %v1451
  %v1453 = vrcp.pop %v1284
  %v1454 = vmul.f32 1.0, %v1453
  %v1455 = vrcp.pop %v1285
  %v1456 = vmul.f32 1.0, %v1455
  %v1457 = vrcp.pop %v1286
  %v1458 = vmul.f32 1.0, %v1457
  %v1459 = vrcp.pop %v1287
  %v1460 = vmul.f32 1.0, %v1459
  %v1461 = vrcp.pop %v1288
  %v1462 = vmul.f32 1.0, %v1461
  %v1463 = vrcp.pop %v1289
  %v1464 = vmul.f32 1.0, %v1463
  %v1465 = vrcp.pop %v1290
  %v1466 = vmul.f32 1.0, %v1465
  %v1467 = vrcp.pop %v1291
  %v1468 = vmul.f32 1.0, %v1467
  %v1469 = vrcp.pop %v1292
  %v1470 = vmul.f32 1.0, %v1469
  %v1471 = vrcp.pop %v1293
  %v1472 = vmul.f32 1.0, %v1471
  %v1473 = vrcp.pop %v1294
  %v1474 = vmul.f32 1.0, %v1473
  %v1475 = vrcp.pop %v1295
  %v1476 = vmul.f32 1.0, %v1475
  %v1477 = vrcp.pop %v1296
  %v1478 = vmul.f32 1.0, %v1477
  %v1479 = vrcp.pop %v1297
  %v1480 = vmul.f32 1.0, %v1479
  %v1481 = vrcp.pop %v1298
  %v1482 = vmul.f32 1.0, %v1481
  %v1483 = vrcp.pop %v1299
  %v1484 = vmul.f32 1.0, %v1483
  %v1485 = vrcp.pop %v1300
  %v1486 = vmul.f32 1.0, %v1485
  %v1487 = vrcp.pop %v1301
  %v1488 = vmul.f32 1.0, %v1487
  %v1489 = vrcp.pop %v1302
  %v1490 = vmul.f32 1.0, %v1489
  %v1491 = vrcp.pop %v1303
  %v1492 = vmul.f32 1.0, %v1491
  %v1493 = vrcp.pop %v1304
  %v1494 = vmul.f32 1.0, %v1493
  %v1495 = vrcp.pop %v1305
  %v1496 = vmul.f32 1.0, %v1495
  %v1497 = vrcp.pop %v1306
  %v1498 = vmul.f32 1.0, %v1497
  %v1499 = vrcp.pop %v1307
  %v1500 = vmul.f32 1.0, %v1499
  %v1501 = vrcp.pop %v1308
  %v1502 = vmul.f32 1.0, %v1501
  %v1503 = vrcp.pop %v1309
  %v1504 = vmul.f32 1.0, %v1503
  %v1505 = vrcp.pop %v1310
  %v1506 = vmul.f32 1.0, %v1505
  %v1507 = vrcp.pop %v1311
  %v1508 = vmul.f32 1.0, %v1507
  %v1509 = vrcp.pop %v1312
  %v1510 = vmul.f32 1.0, %v1509
  %v1511 = vrcp.pop %v1313
  %v1512 = vmul.f32 1.0, %v1511
  %v1513 = vrcp.pop %v1314
  %v1514 = vmul.f32 1.0, %v1513
  %v1515 = vrcp.pop %v1315
  %v1516 = vmul.f32 1.0, %v1515
  %v1517 = vrcp.pop %v1316
  %v1518 = vmul.f32 1.0, %v1517
  %v1519 = vrcp.pop %v1317
  %v1520 = vmul.f32 1.0, %v1519
  %v1521 = vrcp.pop %v1318
  %v1522 = vmul.f32 1.0, %v1521
  %v1523 = vrcp.pop %v1319
  %v1524 = vmul.f32 1.0, %v1523
  %v1525 = vrcp.pop %v1320
  %v1526 = vmul.f32 1.0, %v1525
  %v1527 = vrcp.pop %v1321
  %v1528 = vmul.f32 1.0, %v1527
  %v1529 = vrcp.pop %v1322
  %v1530 = vmul.f32 1.0, %v1529
  %v1531 = vrcp.pop %v1323
  %v1532 = vmul.f32 1.0, %v1531
  %v1533 = vrcp.pop %v1324
  %v1534 = vmul.f32 1.0, %v1533
  %v1535 = vrcp.pop %v1325
  %v1536 = vmul.f32 1.0, %v1535
  %v1537 = vrcp.pop %v1326
  %v1538 = vmul.f32 1.0, %v1537
  %v1539 = vrcp.pop %v1327
  %v1540 = vmul.f32 1.0, %v1539
  %v1541 = vrcp.pop %v1328
  %v1542 = vmul.f32 1.0, %v1541
  %v1543 = vrcp.pop %v1329
  %v1544 = vmul.f32 1.0, %v1543
  %v1545 = vrcp.pop %v1330
  %v1546 = vmul.f32 1.0, %v1545
  %v1547 = vrcp.pop %v1331
  %v1548 = vmul.f32 1.0, %v1547
  %v1549 = vrcp.pop %v1332
  %v1550 = vmul.f32 1.0, %v1549
  %v1551 = vrcp.pop %v1333
  %v1552 = vmul.f32 1.0, %v1551
  %v1553 = vrcp.pop %v1334
  %v1554 = vmul.f32 1.0, %v1553
  %v1555 = vrcp.pop %v1335
  %v1556 = vmul.f32 1.0, %v1555
  %v1557 = vrcp.pop %v1336
  %v1558 = vmul.f32 1.0, %v1557
  %v1559 = vrcp.pop %v1337
  %v1560 = vmul.f32 1.0, %v1559
  %v1561 = vrcp.pop %v1338
  %v1562 = vmul.f32 1.0, %v1561
  %v1563 = vrcp.pop %v1339
  %v1564 = vmul.f32 1.0, %v1563
  %v1565 = vrcp.pop %v1340
  %v1566 = vmul.f32 1.0, %v1565
  %v1567 = vrcp.pop %v1341
  %v1568 = vmul.f32 1.0, %v1567
  %v1569 = vrcp.pop %v1342
  %v1570 = vmul.f32 1.0, %v1569
  %v1571 = vrcp.pop %v1343
  %v1572 = vmul.f32 1.0, %v1571
  %v1573 = vrcp.pop %v1344
  %v1574 = vmul.f32 1.0, %v1573
  %v1575 = vrcp.pop %v1345
  %v1576 = vmul.f32 1.0, %v1575
  %v1577 = vrcp.pop %v1346
  %v1578 = vmul.f32 1.0, %v1577
  %v1579 = vrcp.pop %v1347
  %v1580 = vmul.f32 1.0, %v1579
  %v1581 = vrcp.pop %v1348
  %v1582 = vmul.f32 1.0, %v1581
  %v1583 = vrcp.pop %v1349
  %v1584 = vmul.f32 1.0, %v1583
  %v1585 = vrcp.pop %v1350
  %v1586 = vmul.f32 1.0, %v1585
  %v1587 = vrcp.pop %v1351
  %v1588 = vmul.f32 1.0, %v1587
  %v1589 = vrcp.pop %v1352
  %v1590 = vmul.f32 1.0, %v1589
  %v1591 = vrcp.pop %v1353
  %v1592 = vmul.f32 1.0, %v1591
  %v1593 = vrcp.pop %v1354
  %v1594 = vmul.f32 1.0, %v1593
  %v1595 = vld [vmem:[%s3] sm:$0xff]
  %v1596 = vld [vmem:[%s3 + $0x8] sm:$0xff]
  %v1597 = vld [vmem:[%s3 + $0x10] sm:$0xff]
  %v1598 = vld [vmem:[%s3 + $0x18] sm:$0xff]
  %v1599 = vld [vmem:[%s3 + $0x20] sm:$0xff]
  %v1600 = vld [vmem:[%s3 + $0x28] sm:$0xff]
  %v1601 = vld [vmem:[%s3 + $0x30] sm:$0xff]
  %v1602 = vld [vmem:[%s3 + $0x38] sm:$0xff]
  %v1603 = vld [vmem:[%s3 + $0x40] sm:$0xff]
  %v1604 = vld [vmem:[%s3 + $0x48] sm:$0xff]
  %v1605 = vld [vmem:[%s3 + $0x50] sm:$0xff]
  %v1606 = vld [vmem:[%s3 + $0x58] sm:$0xff]
  %v1607 = vld [vmem:[%s3 + $0x60] sm:$0xff]
  %v1608 = vld [vmem:[%s3 + $0x68] sm:$0xff]
  %v1609 = vld [vmem:[%s3 + $0x70] sm:$0xff]
  %v1610 = vld [vmem:[%s3 + $0x78] sm:$0xff]
  %v1611 = vld [vmem:[%s3 + $0x80] sm:$0xff]
  %v1612 = vld [vmem:[%s3 + $0x88] sm:$0xff]
  %v1613 = vld [vmem:[%s3 + $0x90] sm:$0xff]
  %v1614 = vld [vmem:[%s3 + $0x98] sm:$0xff]
  %v1615 = vld [vmem:[%s3 + $0xa0] sm:$0xff]
  %v1616 = vld [vmem:[%s3 + $0xa8] sm:$0xff]
  %v1617 = vld [vmem:[%s3 + $0xb0] sm:$0xff]
  %v1618 = vld [vmem:[%s3 + $0xb8] sm:$0xff]
  %v1619 = vld [vmem:[%s3 + $0xc0] sm:$0xff]
  %v1620 = vld [vmem:[%s3 + $0xc8] sm:$0xff]
  %v1621 = vld [vmem:[%s3 + $0xd0] sm:$0xff]
  %v1622 = vld [vmem:[%s3 + $0xd8] sm:$0xff]
  %v1623 = vld [vmem:[%s3 + $0xe0] sm:$0xff]
  %v1624 = vld [vmem:[%s3 + $0xe8] sm:$0xff]
  %v1625 = vld [vmem:[%s3 + $0xf0] sm:$0xff]
  %v1626 = vld [vmem:[%s3 + $0xf8] sm:$0xff]
  %v1627 = vld [vmem:[%s3 + $0x100] sm:$0xff]
  %v1628 = vld [vmem:[%s3 + $0x108] sm:$0xff]
  %v1629 = vld [vmem:[%s3 + $0x110] sm:$0xff]
  %v1630 = vld [vmem:[%s3 + $0x118] sm:$0xff]
  %v1631 = vld [vmem:[%s3 + $0x120] sm:$0xff]
  %v1632 = vld [vmem:[%s3 + $0x128] sm:$0xff]
  %v1633 = vld [vmem:[%s3 + $0x130] sm:$0xff]
  %v1634 = vld [vmem:[%s3 + $0x138] sm:$0xff]
  %v1635 = vld [vmem:[%s3 + $0x140] sm:$0xff]
  %v1636 = vld [vmem:[%s3 + $0x148] sm:$0xff]
  %v1637 = vld [vmem:[%s3 + $0x150] sm:$0xff]
  %v1638 = vld [vmem:[%s3 + $0x158] sm:$0xff]
  %v1639 = vld [vmem:[%s3 + $0x160] sm:$0xff]
  %v1640 = vld [vmem:[%s3 + $0x168] sm:$0xff]
  %v1641 = vld [vmem:[%s3 + $0x170] sm:$0xff]
  %v1642 = vld [vmem:[%s3 + $0x178] sm:$0xff]
  %v1643 = vld [vmem:[%s3 + $0x180] sm:$0xff]
  %v1644 = vld [vmem:[%s3 + $0x188] sm:$0xff]
  %v1645 = vld [vmem:[%s3 + $0x190] sm:$0xff]
  %v1646 = vld [vmem:[%s3 + $0x198] sm:$0xff]
  %v1647 = vld [vmem:[%s3 + $0x1a0] sm:$0xff]
  %v1648 = vld [vmem:[%s3 + $0x1a8] sm:$0xff]
  %v1649 = vld [vmem:[%s3 + $0x1b0] sm:$0xff]
  %v1650 = vld [vmem:[%s3 + $0x1b8] sm:$0xff]
  %v1651 = vld [vmem:[%s3 + $0x1c0] sm:$0xff]
  %v1652 = vld [vmem:[%s3 + $0x1c8] sm:$0xff]
  %v1653 = vld [vmem:[%s3 + $0x1d0] sm:$0xff]
  %v1654 = vld [vmem:[%s3 + $0x1d8] sm:$0xff]
  %v1655 = vld [vmem:[%s3 + $0x1e0] sm:$0xff]
  %v1656 = vld [vmem:[%s3 + $0x1e8] sm:$0xff]
  %v1657 = vld [vmem:[%s3 + $0x1f0] sm:$0xff]
  %v1658 = vld [vmem:[%s3 + $0x1f8] sm:$0xff]
  %v1659 = vld [vmem:[%s3 + $0x200] sm:$0xff]
  %v1660 = vld [vmem:[%s3 + $0x208] sm:$0xff]
  %v1661 = vld [vmem:[%s3 + $0x210] sm:$0xff]
  %v1662 = vld [vmem:[%s3 + $0x218] sm:$0xff]
  %v1663 = vld [vmem:[%s3 + $0x220] sm:$0xff]
  %v1664 = vld [vmem:[%s3 + $0x228] sm:$0xff]
  %v1665 = vld [vmem:[%s3 + $0x230] sm:$0xff]
  %v1666 = vld [vmem:[%s3 + $0x238] sm:$0xff]
  %v1667 = vld [vmem:[%s3 + $0x240] sm:$0xff]
  %v1668 = vld [vmem:[%s3 + $0x248] sm:$0xff]
  %v1669 = vld [vmem:[%s3 + $0x250] sm:$0xff]
  %v1670 = vld [vmem:[%s3 + $0x258] sm:$0xff]
  %v1671 = vld [vmem:[%s3 + $0x260] sm:$0xff]
  %v1672 = vld [vmem:[%s3 + $0x268] sm:$0xff]
  %v1673 = vld [vmem:[%s3 + $0x270] sm:$0xff]
  %v1674 = vld [vmem:[%s3 + $0x278] sm:$0xff]
  %v1675 = vld [vmem:[%s3 + $0x280] sm:$0xff]
  %v1676 = vld [vmem:[%s3 + $0x288] sm:$0xff]
  %v1677 = vld [vmem:[%s3 + $0x290] sm:$0xff]
  %v1678 = vld [vmem:[%s3 + $0x298] sm:$0xff]
  %v1679 = vld [vmem:[%s3 + $0x2a0] sm:$0xff]
  %v1680 = vld [vmem:[%s3 + $0x2a8] sm:$0xff]
  %v1681 = vld [vmem:[%s3 + $0x2b0] sm:$0xff]
  %v1682 = vld [vmem:[%s3 + $0x2b8] sm:$0xff]
  %v1683 = vld [vmem:[%s3 + $0x2c0] sm:$0xff]
  %v1684 = vld [vmem:[%s3 + $0x2c8] sm:$0xff]
  %v1685 = vld [vmem:[%s3 + $0x2d0] sm:$0xff]
  %v1686 = vld [vmem:[%s3 + $0x2d8] sm:$0xff]
  %v1687 = vld [vmem:[%s3 + $0x2e0] sm:$0xff]
  %v1688 = vld [vmem:[%s3 + $0x2e8] sm:$0xff]
  %v1689 = vld [vmem:[%s3 + $0x2f0] sm:$0xff]
  %v1690 = vld [vmem:[%s3 + $0x2f8] sm:$0xff]
  %v1691 = vld [vmem:[%s3 + $0x300] sm:$0xff]
  %v1692 = vld [vmem:[%s3 + $0x308] sm:$0xff]
  %v1693 = vld [vmem:[%s3 + $0x310] sm:$0xff]
  %v1694 = vld [vmem:[%s3 + $0x318] sm:$0xff]
  %v1695 = vld [vmem:[%s3 + $0x320] sm:$0xff]
  %v1696 = vld [vmem:[%s3 + $0x328] sm:$0xff]
  %v1697 = vld [vmem:[%s3 + $0x330] sm:$0xff]
  %v1698 = vld [vmem:[%s3 + $0x338] sm:$0xff]
  %v1699 = vld [vmem:[%s3 + $0x340] sm:$0xff]
  %v1700 = vld [vmem:[%s3 + $0x348] sm:$0xff]
  %v1701 = vld [vmem:[%s3 + $0x350] sm:$0xff]
  %v1702 = vld [vmem:[%s3 + $0x358] sm:$0xff]
  %v1703 = vld [vmem:[%s3 + $0x360] sm:$0xff]
  %v1704 = vld [vmem:[%s3 + $0x368] sm:$0xff]
  %v1705 = vld [vmem:[%s3 + $0x370] sm:$0xff]
  %v1706 = vld [vmem:[%s3 + $0x378] sm:$0xff]
  %v1707 = vld [vmem:[%s3 + $0x380] sm:$0xff]
  %v1708 = vld [vmem:[%s3 + $0x388] sm:$0xff]
  %v1709 = vld [vmem:[%s3 + $0x390] sm:$0xff]
  %v1710 = vld [vmem:[%s3 + $0x398] sm:$0xff]
  %v1711 = vld [vmem:[%s3 + $0x3a0] sm:$0xff]
  %v1712 = vld [vmem:[%s3 + $0x3a8] sm:$0xff]
  %v1713 = vld [vmem:[%s3 + $0x3b0] sm:$0xff]
  %v1714 = vld [vmem:[%s3 + $0x3b8] sm:$0xff]
  %v1715 = vld [vmem:[%s3 + $0x3c0] sm:$0xff]
  %v1716 = vld [vmem:[%s3 + $0x3c8] sm:$0xff]
  %v1717 = vld [vmem:[%s3 + $0x3d0] sm:$0xff]
  %v1718 = vld [vmem:[%s3 + $0x3d8] sm:$0xff]
  %v1719 = vld [vmem:[%s3 + $0x3e0] sm:$0xff]
  %v1720 = vld [vmem:[%s3 + $0x3e8] sm:$0xff]
  %v1721 = vld [vmem:[%s3 + $0x3f0] sm:$0xff]
  %v1722 = vld [vmem:[%s3 + $0x3f8] sm:$0xff]
  %v1723 = vld [vmem:[%s3 + $0x400] sm:$0xff]
  %v1724 = vld [vmem:[%s3 + $0x408] sm:$0xff]
  %v1725 = vld [vmem:[%s3 + $0x410] sm:$0xff]
  %v1726 = vld [vmem:[%s3 + $0x418] sm:$0xff]
  %v1727 = vld [vmem:[%s3 + $0x420] sm:$0xff]
  %v1728 = vld [vmem:[%s3 + $0x428] sm:$0xff]
  %v1729 = vld [vmem:[%s3 + $0x430] sm:$0xff]
  %v1730 = vld [vmem:[%s3 + $0x438] sm:$0xff]
  %v1731 = vld [vmem:[%s3 + $0x440] sm:$0xff]
  %v1732 = vld [vmem:[%s3 + $0x448] sm:$0xff]
  %v1733 = vld [vmem:[%s3 + $0x450] sm:$0xff]
  %v1734 = vld [vmem:[%s3 + $0x458] sm:$0xff]
  %v1735 = vld [vmem:[%s3 + $0x460] sm:$0xff]
  %v1736 = vld [vmem:[%s3 + $0x468] sm:$0xff]
  %v1737 = vld [vmem:[%s3 + $0x470] sm:$0xff]
  %v1738 = vld [vmem:[%s3 + $0x478] sm:$0xff]
  %v1739 = vld [vmem:[%s3 + $0x480] sm:$0xff]
  %v1740 = vld [vmem:[%s3 + $0x488] sm:$0xff]
  %v1741 = vld [vmem:[%s3 + $0x490] sm:$0xff]
  %v1742 = vld [vmem:[%s3 + $0x498] sm:$0xff]
  %v1743 = vld [vmem:[%s3 + $0x4a0] sm:$0xff]
  %v1744 = vld [vmem:[%s3 + $0x4a8] sm:$0xff]
  %v1745 = vld [vmem:[%s3 + $0x4b0] sm:$0xff]
  %v1746 = vld [vmem:[%s3 + $0x4b8] sm:$0xff]
  %v1747 = vld [vmem:[%s3 + $0x4c0] sm:$0xff]
  %v1748 = vld [vmem:[%s3 + $0x4c8] sm:$0xff]
  %v1749 = vld [vmem:[%s3 + $0x4d0] sm:$0xff]
  %v1750 = vld [vmem:[%s3 + $0x4d8] sm:$0xff]
  %v1751 = vld [vmem:[%s3 + $0x4e0] sm:$0xff]
  %v1752 = vld [vmem:[%s3 + $0x4e8] sm:$0xff]
  %v1753 = vld [vmem:[%s3 + $0x4f0] sm:$0xff]
  %v1754 = vld [vmem:[%s3 + $0x4f8] sm:$0xff]
  %v1755 = vld [vmem:[%s3 + $0x500] sm:$0xff]
  %v1756 = vld [vmem:[%s3 + $0x508] sm:$0xff]
  %v1757 = vld [vmem:[%s3 + $0x510] sm:$0xff]
  %v1758 = vld [vmem:[%s3 + $0x518] sm:$0xff]
  %v1759 = vld [vmem:[%s3 + $0x520] sm:$0xff]
  %v1760 = vld [vmem:[%s3 + $0x528] sm:$0xff]
  %v1761 = vld [vmem:[%s3 + $0x530] sm:$0xff]
  %v1762 = vld [vmem:[%s3 + $0x538] sm:$0xff]
  %v1763 = vld [vmem:[%s3 + $0x540] sm:$0xff]
  %v1764 = vld [vmem:[%s3 + $0x548] sm:$0xff]
  %v1765 = vld [vmem:[%s3 + $0x550] sm:$0xff]
  %v1766 = vld [vmem:[%s3 + $0x558] sm:$0xff]
  %v1767 = vld [vmem:[%s3 + $0x560] sm:$0xff]
  %v1768 = vld [vmem:[%s3 + $0x568] sm:$0xff]
  %v1769 = vld [vmem:[%s3 + $0x570] sm:$0xff]
  %v1770 = vld [vmem:[%s3 + $0x578] sm:$0xff]
  %v1771 = vld [vmem:[%s3 + $0x580] sm:$0xff]
  %v1772 = vld [vmem:[%s3 + $0x588] sm:$0xff]
  %v1773 = vld [vmem:[%s3 + $0x590] sm:$0xff]
  %v1774 = vld [vmem:[%s3 + $0x598] sm:$0xff]
  %v1775 = vld [vmem:[%s3 + $0x5a0] sm:$0xff]
  %v1776 = vld [vmem:[%s3 + $0x5a8] sm:$0xff]
  %v1777 = vld [vmem:[%s3 + $0x5b0] sm:$0xff]
  %v1778 = vld [vmem:[%s3 + $0x5b8] sm:$0xff]
  %v1779 = vld [vmem:[%s3 + $0x5c0] sm:$0xff]
  %v1780 = vld [vmem:[%s3 + $0x5c8] sm:$0xff]
  %v1781 = vld [vmem:[%s3 + $0x5d0] sm:$0xff]
  %v1782 = vld [vmem:[%s3 + $0x5d8] sm:$0xff]
  %v1783 = vld [vmem:[%s3 + $0x5e0] sm:$0xff]
  %v1784 = vld [vmem:[%s3 + $0x5e8] sm:$0xff]
  %v1785 = vld [vmem:[%s3 + $0x5f0] sm:$0xff]
  %v1786 = vld [vmem:[%s3 + $0x5f8] sm:$0xff]
  %v1787 = vld [vmem:[%s3 + $0x600] sm:$0xff]
  %v1788 = vld [vmem:[%s3 + $0x608] sm:$0xff]
  %v1789 = vld [vmem:[%s3 + $0x610] sm:$0xff]
  %v1790 = vld [vmem:[%s3 + $0x618] sm:$0xff]
  %v1791 = vld [vmem:[%s3 + $0x620] sm:$0xff]
  %v1792 = vld [vmem:[%s3 + $0x628] sm:$0xff]
  %v1793 = vld [vmem:[%s3 + $0x630] sm:$0xff]
  %v1794 = vld [vmem:[%s3 + $0x638] sm:$0xff]
  %v1795 = vld [vmem:[%s3 + $0x640] sm:$0xff]
  %v1796 = vld [vmem:[%s3 + $0x648] sm:$0xff]
  %v1797 = vld [vmem:[%s3 + $0x650] sm:$0xff]
  %v1798 = vld [vmem:[%s3 + $0x658] sm:$0xff]
  %v1799 = vld [vmem:[%s3 + $0x660] sm:$0xff]
  %v1800 = vld [vmem:[%s3 + $0x668] sm:$0xff]
  %v1801 = vld [vmem:[%s3 + $0x670] sm:$0xff]
  %v1802 = vld [vmem:[%s3 + $0x678] sm:$0xff]
  %v1803 = vld [vmem:[%s3 + $0x680] sm:$0xff]
  %v1804 = vld [vmem:[%s3 + $0x688] sm:$0xff]
  %v1805 = vld [vmem:[%s3 + $0x690] sm:$0xff]
  %v1806 = vld [vmem:[%s3 + $0x698] sm:$0xff]
  %v1807 = vld [vmem:[%s3 + $0x6a0] sm:$0xff]
  %v1808 = vld [vmem:[%s3 + $0x6a8] sm:$0xff]
  %v1809 = vld [vmem:[%s3 + $0x6b0] sm:$0xff]
  %v1810 = vld [vmem:[%s3 + $0x6b8] sm:$0xff]
  %v1811 = vld [vmem:[%s3 + $0x6c0] sm:$0xff]
  %v1812 = vld [vmem:[%s3 + $0x6c8] sm:$0xff]
  %v1813 = vld [vmem:[%s3 + $0x6d0] sm:$0xff]
  %v1814 = vld [vmem:[%s3 + $0x6d8] sm:$0xff]
  %v1815 = vld [vmem:[%s3 + $0x6e0] sm:$0xff]
  %v1816 = vld [vmem:[%s3 + $0x6e8] sm:$0xff]
  %v1817 = vld [vmem:[%s3 + $0x6f0] sm:$0xff]
  %v1818 = vld [vmem:[%s3 + $0x6f8] sm:$0xff]
  %v1819 = vld [vmem:[%s3 + $0x700] sm:$0xff]
  %v1820 = vld [vmem:[%s3 + $0x708] sm:$0xff]
  %v1821 = vld [vmem:[%s3 + $0x710] sm:$0xff]
  %v1822 = vld [vmem:[%s3 + $0x718] sm:$0xff]
  %v1823 = vld [vmem:[%s3 + $0x720] sm:$0xff]
  %v1824 = vld [vmem:[%s3 + $0x728] sm:$0xff]
  %v1825 = vld [vmem:[%s3 + $0x730] sm:$0xff]
  %v1826 = vld [vmem:[%s3 + $0x738] sm:$0xff]
  %v1827 = vld [vmem:[%s3 + $0x740] sm:$0xff]
  %v1828 = vld [vmem:[%s3 + $0x748] sm:$0xff]
  %v1829 = vld [vmem:[%s3 + $0x750] sm:$0xff]
  %v1830 = vld [vmem:[%s3 + $0x758] sm:$0xff]
  %v1831 = vld [vmem:[%s3 + $0x760] sm:$0xff]
  %v1832 = vld [vmem:[%s3 + $0x768] sm:$0xff]
  %v1833 = vld [vmem:[%s3 + $0x770] sm:$0xff]
  %v1834 = vld [vmem:[%s3 + $0x778] sm:$0xff]
  %1836 = vset.pattern.permute.xlu0 0
  %1837 = vperm.xlu0 %1836, %v1356
  %v1838 = vpop.permute.xlu0 %1837
  %1841 = vset.pattern.permute.xlu0 0
  %1842 = vperm.xlu0 %1841, %v1358
  %v1843 = vpop.permute.xlu0 %1842
  %1846 = vset.pattern.permute.xlu0 0
  %1847 = vperm.xlu0 %1846, %v1360
  %v1848 = vpop.permute.xlu0 %1847
  %1851 = vset.pattern.permute.xlu0 0
  %1852 = vperm.xlu0 %1851, %v1362
  %v1853 = vpop.permute.xlu0 %1852
  %1856 = vset.pattern.permute.xlu0 0
  %1857 = vperm.xlu0 %1856, %v1364
  %v1858 = vpop.permute.xlu0 %1857
  %1861 = vset.pattern.permute.xlu0 0
  %1862 = vperm.xlu0 %1861, %v1366
  %v1863 = vpop.permute.xlu0 %1862
  %1866 = vset.pattern.permute.xlu0 0
  %1867 = vperm.xlu0 %1866, %v1368
  %v1868 = vpop.permute.xlu0 %1867
  %1871 = vset.pattern.permute.xlu0 0
  %1872 = vperm.xlu0 %1871, %v1370
  %v1873 = vpop.permute.xlu0 %1872
  %1876 = vset.pattern.permute.xlu0 0
  %1877 = vperm.xlu0 %1876, %v1372
  %v1878 = vpop.permute.xlu0 %1877
  %1881 = vset.pattern.permute.xlu0 0
  %1882 = vperm.xlu0 %1881, %v1374
  %v1883 = vpop.permute.xlu0 %1882
  %1886 = vset.pattern.permute.xlu0 0
  %1887 = vperm.xlu0 %1886, %v1376
  %v1888 = vpop.permute.xlu0 %1887
  %1891 = vset.pattern.permute.xlu0 0
  %1892 = vperm.xlu0 %1891, %v1378
  %v1893 = vpop.permute.xlu0 %1892
  %1896 = vset.pattern.permute.xlu0 0
  %1897 = vperm.xlu0 %1896, %v1380
  %v1898 = vpop.permute.xlu0 %1897
  %1901 = vset.pattern.permute.xlu0 0
  %1902 = vperm.xlu0 %1901, %v1382
  %v1903 = vpop.permute.xlu0 %1902
  %1906 = vset.pattern.permute.xlu0 0
  %1907 = vperm.xlu0 %1906, %v1384
  %v1908 = vpop.permute.xlu0 %1907
  %1911 = vset.pattern.permute.xlu0 0
  %1912 = vperm.xlu0 %1911, %v1386
  %v1913 = vpop.permute.xlu0 %1912
  %1916 = vset.pattern.permute.xlu0 0
  %1917 = vperm.xlu0 %1916, %v1388
  %v1918 = vpop.permute.xlu0 %1917
  %1921 = vset.pattern.permute.xlu0 0
  %1922 = vperm.xlu0 %1921, %v1390
  %v1923 = vpop.permute.xlu0 %1922
  %1926 = vset.pattern.permute.xlu0 0
  %1927 = vperm.xlu0 %1926, %v1392
  %v1928 = vpop.permute.xlu0 %1927
  %1931 = vset.pattern.permute.xlu0 0
  %1932 = vperm.xlu0 %1931, %v1394
  %v1933 = vpop.permute.xlu0 %1932
  %1936 = vset.pattern.permute.xlu0 0
  %1937 = vperm.xlu0 %1936, %v1396
  %v1938 = vpop.permute.xlu0 %1937
  %1941 = vset.pattern.permute.xlu0 0
  %1942 = vperm.xlu0 %1941, %v1398
  %v1943 = vpop.permute.xlu0 %1942
  %1946 = vset.pattern.permute.xlu0 0
  %1947 = vperm.xlu0 %1946, %v1400
  %v1948 = vpop.permute.xlu0 %1947
  %1951 = vset.pattern.permute.xlu0 0
  %1952 = vperm.xlu0 %1951, %v1402
  %v1953 = vpop.permute.xlu0 %1952
  %1956 = vset.pattern.permute.xlu0 0
  %1957 = vperm.xlu0 %1956, %v1404
  %v1958 = vpop.permute.xlu0 %1957
  %1961 = vset.pattern.permute.xlu0 0
  %1962 = vperm.xlu0 %1961, %v1406
  %v1963 = vpop.permute.xlu0 %1962
  %1966 = vset.pattern.permute.xlu0 0
  %1967 = vperm.xlu0 %1966, %v1408
  %v1968 = vpop.permute.xlu0 %1967
  %1971 = vset.pattern.permute.xlu0 0
  %1972 = vperm.xlu0 %1971, %v1410
  %v1973 = vpop.permute.xlu0 %1972
  %1976 = vset.pattern.permute.xlu0 0
  %1977 = vperm.xlu0 %1976, %v1412
  %v1978 = vpop.permute.xlu0 %1977
  %1981 = vset.pattern.permute.xlu0 0
  %1982 = vperm.xlu0 %1981, %v1414
  %v1983 = vpop.permute.xlu0 %1982
  %1986 = vset.pattern.permute.xlu0 0
  %1987 = vperm.xlu0 %1986, %v1416
  %v1988 = vpop.permute.xlu0 %1987
  %1991 = vset.pattern.permute.xlu0 0
  %1992 = vperm.xlu0 %1991, %v1418
  %v1993 = vpop.permute.xlu0 %1992
  %1996 = vset.pattern.permute.xlu0 0
  %1997 = vperm.xlu0 %1996, %v1420
  %v1998 = vpop.permute.xlu0 %1997
  %2001 = vset.pattern.permute.xlu0 0
  %2002 = vperm.xlu0 %2001, %v1422
  %v2003 = vpop.permute.xlu0 %2002
  %2006 = vset.pattern.permute.xlu0 0
  %2007 = vperm.xlu0 %2006, %v1424
  %v2008 = vpop.permute.xlu0 %2007
  %2011 = vset.pattern.permute.xlu0 0
  %2012 = vperm.xlu0 %2011, %v1426
  %v2013 = vpop.permute.xlu0 %2012
  %2016 = vset.pattern.permute.xlu0 0
  %2017 = vperm.xlu0 %2016, %v1428
  %v2018 = vpop.permute.xlu0 %2017
  %2021 = vset.pattern.permute.xlu0 0
  %2022 = vperm.xlu0 %2021, %v1430
  %v2023 = vpop.permute.xlu0 %2022
  %2026 = vset.pattern.permute.xlu0 0
  %2027 = vperm.xlu0 %2026, %v1432
  %v2028 = vpop.permute.xlu0 %2027
  %2031 = vset.pattern.permute.xlu0 0
  %2032 = vperm.xlu0 %2031, %v1434
  %v2033 = vpop.permute.xlu0 %2032
  %2036 = vset.pattern.permute.xlu0 0
  %2037 = vperm.xlu0 %2036, %v1436
  %v2038 = vpop.permute.xlu0 %2037
  %2041 = vset.pattern.permute.xlu0 0
  %2042 = vperm.xlu0 %2041, %v1438
  %v2043 = vpop.permute.xlu0 %2042
  %2046 = vset.pattern.permute.xlu0 0
  %2047 = vperm.xlu0 %2046, %v1440
  %v2048 = vpop.permute.xlu0 %2047
  %2051 = vset.pattern.permute.xlu0 0
  %2052 = vperm.xlu0 %2051, %v1442
  %v2053 = vpop.permute.xlu0 %2052
  %2056 = vset.pattern.permute.xlu0 0
  %2057 = vperm.xlu0 %2056, %v1444
  %v2058 = vpop.permute.xlu0 %2057
  %2061 = vset.pattern.permute.xlu0 0
  %2062 = vperm.xlu0 %2061, %v1446
  %v2063 = vpop.permute.xlu0 %2062
  %2066 = vset.pattern.permute.xlu0 0
  %2067 = vperm.xlu0 %2066, %v1448
  %v2068 = vpop.permute.xlu0 %2067
  %2071 = vset.pattern.permute.xlu0 0
  %2072 = vperm.xlu0 %2071, %v1450
  %v2073 = vpop.permute.xlu0 %2072
  %2076 = vset.pattern.permute.xlu0 0
  %2077 = vperm.xlu0 %2076, %v1452
  %v2078 = vpop.permute.xlu0 %2077
  %2081 = vset.pattern.permute.xlu0 0
  %2082 = vperm.xlu0 %2081, %v1454
  %v2083 = vpop.permute.xlu0 %2082
  %2086 = vset.pattern.permute.xlu0 0
  %2087 = vperm.xlu0 %2086, %v1456
  %v2088 = vpop.permute.xlu0 %2087
  %2091 = vset.pattern.permute.xlu0 0
  %2092 = vperm.xlu0 %2091, %v1458
  %v2093 = vpop.permute.xlu0 %2092
  %2096 = vset.pattern.permute.xlu0 0
  %2097 = vperm.xlu0 %2096, %v1460
  %v2098 = vpop.permute.xlu0 %2097
  %2101 = vset.pattern.permute.xlu0 0
  %2102 = vperm.xlu0 %2101, %v1462
  %v2103 = vpop.permute.xlu0 %2102
  %2106 = vset.pattern.permute.xlu0 0
  %2107 = vperm.xlu0 %2106, %v1464
  %v2108 = vpop.permute.xlu0 %2107
  %2111 = vset.pattern.permute.xlu0 0
  %2112 = vperm.xlu0 %2111, %v1466
  %v2113 = vpop.permute.xlu0 %2112
  %2116 = vset.pattern.permute.xlu0 0
  %2117 = vperm.xlu0 %2116, %v1468
  %v2118 = vpop.permute.xlu0 %2117
  %2121 = vset.pattern.permute.xlu0 0
  %2122 = vperm.xlu0 %2121, %v1470
  %v2123 = vpop.permute.xlu0 %2122
  %2126 = vset.pattern.permute.xlu0 0
  %2127 = vperm.xlu0 %2126, %v1472
  %v2128 = vpop.permute.xlu0 %2127
  %2131 = vset.pattern.permute.xlu0 0
  %2132 = vperm.xlu0 %2131, %v1474
  %v2133 = vpop.permute.xlu0 %2132
  %2136 = vset.pattern.permute.xlu0 0
  %2137 = vperm.xlu0 %2136, %v1476
  %v2138 = vpop.permute.xlu0 %2137
  %2141 = vset.pattern.permute.xlu0 0
  %2142 = vperm.xlu0 %2141, %v1478
  %v2143 = vpop.permute.xlu0 %2142
  %2146 = vset.pattern.permute.xlu0 0
  %2147 = vperm.xlu0 %2146, %v1480
  %v2148 = vpop.permute.xlu0 %2147
  %2151 = vset.pattern.permute.xlu0 0
  %2152 = vperm.xlu0 %2151, %v1482
  %v2153 = vpop.permute.xlu0 %2152
  %2156 = vset.pattern.permute.xlu0 0
  %2157 = vperm.xlu0 %2156, %v1484
  %v2158 = vpop.permute.xlu0 %2157
  %2161 = vset.pattern.permute.xlu0 0
  %2162 = vperm.xlu0 %2161, %v1486
  %v2163 = vpop.permute.xlu0 %2162
  %2166 = vset.pattern.permute.xlu0 0
  %2167 = vperm.xlu0 %2166, %v1488
  %v2168 = vpop.permute.xlu0 %2167
  %2171 = vset.pattern.permute.xlu0 0
  %2172 = vperm.xlu0 %2171, %v1490
  %v2173 = vpop.permute.xlu0 %2172
  %2176 = vset.pattern.permute.xlu0 0
  %2177 = vperm.xlu0 %2176, %v1492
  %v2178 = vpop.permute.xlu0 %2177
  %2181 = vset.pattern.permute.xlu0 0
  %2182 = vperm.xlu0 %2181, %v1494
  %v2183 = vpop.permute.xlu0 %2182
  %2186 = vset.pattern.permute.xlu0 0
  %2187 = vperm.xlu0 %2186, %v1496
  %v2188 = vpop.permute.xlu0 %2187
  %2191 = vset.pattern.permute.xlu0 0
  %2192 = vperm.xlu0 %2191, %v1498
  %v2193 = vpop.permute.xlu0 %2192
  %2196 = vset.pattern.permute.xlu0 0
  %2197 = vperm.xlu0 %2196, %v1500
  %v2198 = vpop.permute.xlu0 %2197
  %2201 = vset.pattern.permute.xlu0 0
  %2202 = vperm.xlu0 %2201, %v1502
  %v2203 = vpop.permute.xlu0 %2202
  %2206 = vset.pattern.permute.xlu0 0
  %2207 = vperm.xlu0 %2206, %v1504
  %v2208 = vpop.permute.xlu0 %2207
  %2211 = vset.pattern.permute.xlu0 0
  %2212 = vperm.xlu0 %2211, %v1506
  %v2213 = vpop.permute.xlu0 %2212
  %2216 = vset.pattern.permute.xlu0 0
  %2217 = vperm.xlu0 %2216, %v1508
  %v2218 = vpop.permute.xlu0 %2217
  %2221 = vset.pattern.permute.xlu0 0
  %2222 = vperm.xlu0 %2221, %v1510
  %v2223 = vpop.permute.xlu0 %2222
  %2226 = vset.pattern.permute.xlu0 0
  %2227 = vperm.xlu0 %2226, %v1512
  %v2228 = vpop.permute.xlu0 %2227
  %2231 = vset.pattern.permute.xlu0 0
  %2232 = vperm.xlu0 %2231, %v1514
  %v2233 = vpop.permute.xlu0 %2232
  %2236 = vset.pattern.permute.xlu0 0
  %2237 = vperm.xlu0 %2236, %v1516
  %v2238 = vpop.permute.xlu0 %2237
  %2241 = vset.pattern.permute.xlu0 0
  %2242 = vperm.xlu0 %2241, %v1518
  %v2243 = vpop.permute.xlu0 %2242
  %2246 = vset.pattern.permute.xlu0 0
  %2247 = vperm.xlu0 %2246, %v1520
  %v2248 = vpop.permute.xlu0 %2247
  %2251 = vset.pattern.permute.xlu0 0
  %2252 = vperm.xlu0 %2251, %v1522
  %v2253 = vpop.permute.xlu0 %2252
  %2256 = vset.pattern.permute.xlu0 0
  %2257 = vperm.xlu0 %2256, %v1524
  %v2258 = vpop.permute.xlu0 %2257
  %2261 = vset.pattern.permute.xlu0 0
  %2262 = vperm.xlu0 %2261, %v1526
  %v2263 = vpop.permute.xlu0 %2262
  %2266 = vset.pattern.permute.xlu0 0
  %2267 = vperm.xlu0 %2266, %v1528
  %v2268 = vpop.permute.xlu0 %2267
  %2271 = vset.pattern.permute.xlu0 0
  %2272 = vperm.xlu0 %2271, %v1530
  %v2273 = vpop.permute.xlu0 %2272
  %2276 = vset.pattern.permute.xlu0 0
  %2277 = vperm.xlu0 %2276, %v1532
  %v2278 = vpop.permute.xlu0 %2277
  %2281 = vset.pattern.permute.xlu0 0
  %2282 = vperm.xlu0 %2281, %v1534
  %v2283 = vpop.permute.xlu0 %2282
  %2286 = vset.pattern.permute.xlu0 0
  %2287 = vperm.xlu0 %2286, %v1536
  %v2288 = vpop.permute.xlu0 %2287
  %2291 = vset.pattern.permute.xlu0 0
  %2292 = vperm.xlu0 %2291, %v1538
  %v2293 = vpop.permute.xlu0 %2292
  %2296 = vset.pattern.permute.xlu0 0
  %2297 = vperm.xlu0 %2296, %v1540
  %v2298 = vpop.permute.xlu0 %2297
  %2301 = vset.pattern.permute.xlu0 0
  %2302 = vperm.xlu0 %2301, %v1542
  %v2303 = vpop.permute.xlu0 %2302
  %2306 = vset.pattern.permute.xlu0 0
  %2307 = vperm.xlu0 %2306, %v1544
  %v2308 = vpop.permute.xlu0 %2307
  %2311 = vset.pattern.permute.xlu0 0
  %2312 = vperm.xlu0 %2311, %v1546
  %v2313 = vpop.permute.xlu0 %2312
  %2316 = vset.pattern.permute.xlu0 0
  %2317 = vperm.xlu0 %2316, %v1548
  %v2318 = vpop.permute.xlu0 %2317
  %2321 = vset.pattern.permute.xlu0 0
  %2322 = vperm.xlu0 %2321, %v1550
  %v2323 = vpop.permute.xlu0 %2322
  %2326 = vset.pattern.permute.xlu0 0
  %2327 = vperm.xlu0 %2326, %v1552
  %v2328 = vpop.permute.xlu0 %2327
  %2331 = vset.pattern.permute.xlu0 0
  %2332 = vperm.xlu0 %2331, %v1554
  %v2333 = vpop.permute.xlu0 %2332
  %2336 = vset.pattern.permute.xlu0 0
  %2337 = vperm.xlu0 %2336, %v1556
  %v2338 = vpop.permute.xlu0 %2337
  %2341 = vset.pattern.permute.xlu0 0
  %2342 = vperm.xlu0 %2341, %v1558
  %v2343 = vpop.permute.xlu0 %2342
  %2346 = vset.pattern.permute.xlu0 0
  %2347 = vperm.xlu0 %2346, %v1560
  %v2348 = vpop.permute.xlu0 %2347
  %2351 = vset.pattern.permute.xlu0 0
  %2352 = vperm.xlu0 %2351, %v1562
  %v2353 = vpop.permute.xlu0 %2352
  %2356 = vset.pattern.permute.xlu0 0
  %2357 = vperm.xlu0 %2356, %v1564
  %v2358 = vpop.permute.xlu0 %2357
  %2361 = vset.pattern.permute.xlu0 0
  %2362 = vperm.xlu0 %2361, %v1566
  %v2363 = vpop.permute.xlu0 %2362
  %2366 = vset.pattern.permute.xlu0 0
  %2367 = vperm.xlu0 %2366, %v1568
  %v2368 = vpop.permute.xlu0 %2367
  %2371 = vset.pattern.permute.xlu0 0
  %2372 = vperm.xlu0 %2371, %v1570
  %v2373 = vpop.permute.xlu0 %2372
  %2376 = vset.pattern.permute.xlu0 0
  %2377 = vperm.xlu0 %2376, %v1572
  %v2378 = vpop.permute.xlu0 %2377
  %2381 = vset.pattern.permute.xlu0 0
  %2382 = vperm.xlu0 %2381, %v1574
  %v2383 = vpop.permute.xlu0 %2382
  %2386 = vset.pattern.permute.xlu0 0
  %2387 = vperm.xlu0 %2386, %v1576
  %v2388 = vpop.permute.xlu0 %2387
  %2391 = vset.pattern.permute.xlu0 0
  %2392 = vperm.xlu0 %2391, %v1578
  %v2393 = vpop.permute.xlu0 %2392
  %2396 = vset.pattern.permute.xlu0 0
  %2397 = vperm.xlu0 %2396, %v1580
  %v2398 = vpop.permute.xlu0 %2397
  %2401 = vset.pattern.permute.xlu0 0
  %2402 = vperm.xlu0 %2401, %v1582
  %v2403 = vpop.permute.xlu0 %2402
  %2406 = vset.pattern.permute.xlu0 0
  %2407 = vperm.xlu0 %2406, %v1584
  %v2408 = vpop.permute.xlu0 %2407
  %2411 = vset.pattern.permute.xlu0 0
  %2412 = vperm.xlu0 %2411, %v1586
  %v2413 = vpop.permute.xlu0 %2412
  %2416 = vset.pattern.permute.xlu0 0
  %2417 = vperm.xlu0 %2416, %v1588
  %v2418 = vpop.permute.xlu0 %2417
  %2421 = vset.pattern.permute.xlu0 0
  %2422 = vperm.xlu0 %2421, %v1590
  %v2423 = vpop.permute.xlu0 %2422
  %2426 = vset.pattern.permute.xlu0 0
  %2427 = vperm.xlu0 %2426, %v1592
  %v2428 = vpop.permute.xlu0 %2427
  %2431 = vset.pattern.permute.xlu0 0
  %2432 = vperm.xlu0 %2431, %v1594
  %v2433 = vpop.permute.xlu0 %2432
  %v2435 = vmul.f32 %v1595, %v1838
  %v2436 = vmul.f32 %v1596, %v1838
  %v2437 = vmul.f32 %v1597, %v1843
  %v2438 = vmul.f32 %v1598, %v1843
  %v2439 = vmul.f32 %v1599, %v1848
  %v2440 = vmul.f32 %v1600, %v1848
  %v2441 = vmul.f32 %v1601, %v1853
  %v2442 = vmul.f32 %v1602, %v1853
  %v2443 = vmul.f32 %v1603, %v1858
  %v2444 = vmul.f32 %v1604, %v1858
  %v2445 = vmul.f32 %v1605, %v1863
  %v2446 = vmul.f32 %v1606, %v1863
  %v2447 = vmul.f32 %v1607, %v1868
  %v2448 = vmul.f32 %v1608, %v1868
  %v2449 = vmul.f32 %v1609, %v1873
  %v2450 = vmul.f32 %v1610, %v1873
  %v2451 = vmul.f32 %v1611, %v1878
  %v2452 = vmul.f32 %v1612, %v1878
  %v2453 = vmul.f32 %v1613, %v1883
  %v2454 = vmul.f32 %v1614, %v1883
  %v2455 = vmul.f32 %v1615, %v1888
  %v2456 = vmul.f32 %v1616, %v1888
  %v2457 = vmul.f32 %v1617, %v1893
  %v2458 = vmul.f32 %v1618, %v1893
  %v2459 = vmul.f32 %v1619, %v1898
  %v2460 = vmul.f32 %v1620, %v1898
  %v2461 = vmul.f32 %v1621, %v1903
  %v2462 = vmul.f32 %v1622, %v1903
  %v2463 = vmul.f32 %v1623, %v1908
  %v2464 = vmul.f32 %v1624, %v1908
  %v2465 = vmul.f32 %v1625, %v1913
  %v2466 = vmul.f32 %v1626, %v1913
  %v2467 = vmul.f32 %v1627, %v1918
  %v2468 = vmul.f32 %v1628, %v1918
  %v2469 = vmul.f32 %v1629, %v1923
  %v2470 = vmul.f32 %v1630, %v1923
  %v2471 = vmul.f32 %v1631, %v1928
  %v2472 = vmul.f32 %v1632, %v1928
  %v2473 = vmul.f32 %v1633, %v1933
  %v2474 = vmul.f32 %v1634, %v1933
  %v2475 = vmul.f32 %v1635, %v1938
  %v2476 = vmul.f32 %v1636, %v1938
  %v2477 = vmul.f32 %v1637, %v1943
  %v2478 = vmul.f32 %v1638, %v1943
  %v2479 = vmul.f32 %v1639, %v1948
  %v2480 = vmul.f32 %v1640, %v1948
  %v2481 = vmul.f32 %v1641, %v1953
  %v2482 = vmul.f32 %v1642, %v1953
  %v2483 = vmul.f32 %v1643, %v1958
  %v2484 = vmul.f32 %v1644, %v1958
  %v2485 = vmul.f32 %v1645, %v1963
  %v2486 = vmul.f32 %v1646, %v1963
  %v2487 = vmul.f32 %v1647, %v1968
  %v2488 = vmul.f32 %v1648, %v1968
  %v2489 = vmul.f32 %v1649, %v1973
  %v2490 = vmul.f32 %v1650, %v1973
  %v2491 = vmul.f32 %v1651, %v1978
  %v2492 = vmul.f32 %v1652, %v1978
  %v2493 = vmul.f32 %v1653, %v1983
  %v2494 = vmul.f32 %v1654, %v1983
  %v2495 = vmul.f32 %v1655, %v1988
  %v2496 = vmul.f32 %v1656, %v1988
  %v2497 = vmul.f32 %v1657, %v1993
  %v2498 = vmul.f32 %v1658, %v1993
  %v2499 = vmul.f32 %v1659, %v1998
  %v2500 = vmul.f32 %v1660, %v1998
  %v2501 = vmul.f32 %v1661, %v2003
  %v2502 = vmul.f32 %v1662, %v2003
  %v2503 = vmul.f32 %v1663, %v2008
  %v2504 = vmul.f32 %v1664, %v2008
  %v2505 = vmul.f32 %v1665, %v2013
  %v2506 = vmul.f32 %v1666, %v2013
  %v2507 = vmul.f32 %v1667, %v2018
  %v2508 = vmul.f32 %v1668, %v2018
  %v2509 = vmul.f32 %v1669, %v2023
  %v2510 = vmul.f32 %v1670, %v2023
  %v2511 = vmul.f32 %v1671, %v2028
  %v2512 = vmul.f32 %v1672, %v2028
  %v2513 = vmul.f32 %v1673, %v2033
  %v2514 = vmul.f32 %v1674, %v2033
  %v2515 = vmul.f32 %v1675, %v2038
  %v2516 = vmul.f32 %v1676, %v2038
  %v2517 = vmul.f32 %v1677, %v2043
  %v2518 = vmul.f32 %v1678, %v2043
  %v2519 = vmul.f32 %v1679, %v2048
  %v2520 = vmul.f32 %v1680, %v2048
  %v2521 = vmul.f32 %v1681, %v2053
  %v2522 = vmul.f32 %v1682, %v2053
  %v2523 = vmul.f32 %v1683, %v2058
  %v2524 = vmul.f32 %v1684, %v2058
  %v2525 = vmul.f32 %v1685, %v2063
  %v2526 = vmul.f32 %v1686, %v2063
  %v2527 = vmul.f32 %v1687, %v2068
  %v2528 = vmul.f32 %v1688, %v2068
  %v2529 = vmul.f32 %v1689, %v2073
  %v2530 = vmul.f32 %v1690, %v2073
  %v2531 = vmul.f32 %v1691, %v2078
  %v2532 = vmul.f32 %v1692, %v2078
  %v2533 = vmul.f32 %v1693, %v2083
  %v2534 = vmul.f32 %v1694, %v2083
  %v2535 = vmul.f32 %v1695, %v2088
  %v2536 = vmul.f32 %v1696, %v2088
  %v2537 = vmul.f32 %v1697, %v2093
  %v2538 = vmul.f32 %v1698, %v2093
  %v2539 = vmul.f32 %v1699, %v2098
  %v2540 = vmul.f32 %v1700, %v2098
  %v2541 = vmul.f32 %v1701, %v2103
  %v2542 = vmul.f32 %v1702, %v2103
  %v2543 = vmul.f32 %v1703, %v2108
  %v2544 = vmul.f32 %v1704, %v2108
  %v2545 = vmul.f32 %v1705, %v2113
  %v2546 = vmul.f32 %v1706, %v2113
  %v2547 = vmul.f32 %v1707, %v2118
  %v2548 = vmul.f32 %v1708, %v2118
  %v2549 = vmul.f32 %v1709, %v2123
  %v2550 = vmul.f32 %v1710, %v2123
  %v2551 = vmul.f32 %v1711, %v2128
  %v2552 = vmul.f32 %v1712, %v2128
  %v2553 = vmul.f32 %v1713, %v2133
  %v2554 = vmul.f32 %v1714, %v2133
  %v2555 = vmul.f32 %v1715, %v2138
  %v2556 = vmul.f32 %v1716, %v2138
  %v2557 = vmul.f32 %v1717, %v2143
  %v2558 = vmul.f32 %v1718, %v2143
  %v2559 = vmul.f32 %v1719, %v2148
  %v2560 = vmul.f32 %v1720, %v2148
  %v2561 = vmul.f32 %v1721, %v2153
  %v2562 = vmul.f32 %v1722, %v2153
  %v2563 = vmul.f32 %v1723, %v2158
  %v2564 = vmul.f32 %v1724, %v2158
  %v2565 = vmul.f32 %v1725, %v2163
  %v2566 = vmul.f32 %v1726, %v2163
  %v2567 = vmul.f32 %v1727, %v2168
  %v2568 = vmul.f32 %v1728, %v2168
  %v2569 = vmul.f32 %v1729, %v2173
  %v2570 = vmul.f32 %v1730, %v2173
  %v2571 = vmul.f32 %v1731, %v2178
  %v2572 = vmul.f32 %v1732, %v2178
  %v2573 = vmul.f32 %v1733, %v2183
  %v2574 = vmul.f32 %v1734, %v2183
  %v2575 = vmul.f32 %v1735, %v2188
  %v2576 = vmul.f32 %v1736, %v2188
  %v2577 = vmul.f32 %v1737, %v2193
  %v2578 = vmul.f32 %v1738, %v2193
  %v2579 = vmul.f32 %v1739, %v2198
  %v2580 = vmul.f32 %v1740, %v2198
  %v2581 = vmul.f32 %v1741, %v2203
  %v2582 = vmul.f32 %v1742, %v2203
  %v2583 = vmul.f32 %v1743, %v2208
  %v2584 = vmul.f32 %v1744, %v2208
  %v2585 = vmul.f32 %v1745, %v2213
  %v2586 = vmul.f32 %v1746, %v2213
  %v2587 = vmul.f32 %v1747, %v2218
  %v2588 = vmul.f32 %v1748, %v2218
  %v2589 = vmul.f32 %v1749, %v2223
  %v2590 = vmul.f32 %v1750, %v2223
  %v2591 = vmul.f32 %v1751, %v2228
  %v2592 = vmul.f32 %v1752, %v2228
  %v2593 = vmul.f32 %v1753, %v2233
  %v2594 = vmul.f32 %v1754, %v2233
  %v2595 = vmul.f32 %v1755, %v2238
  %v2596 = vmul.f32 %v1756, %v2238
  %v2597 = vmul.f32 %v1757, %v2243
  %v2598 = vmul.f32 %v1758, %v2243
  %v2599 = vmul.f32 %v1759, %v2248
  %v2600 = vmul.f32 %v1760, %v2248
  %v2601 = vmul.f32 %v1761, %v2253
  %v2602 = vmul.f32 %v1762, %v2253
  %v2603 = vmul.f32 %v1763, %v2258
  %v2604 = vmul.f32 %v1764, %v2258
  %v2605 = vmul.f32 %v1765, %v2263
  %v2606 = vmul.f32 %v1766, %v2263
  %v2607 = vmul.f32 %v1767, %v2268
  %v2608 = vmul.f32 %v1768, %v2268
  %v2609 = vmul.f32 %v1769, %v2273
  %v2610 = vmul.f32 %v1770, %v2273
  %v2611 = vmul.f32 %v1771, %v2278
  %v2612 = vmul.f32 %v1772, %v2278
  %v2613 = vmul.f32 %v1773, %v2283
  %v2614 = vmul.f32 %v1774, %v2283
  %v2615 = vmul.f32 %v1775, %v2288
  %v2616 = vmul.f32 %v1776, %v2288
  %v2617 = vmul.f32 %v1777, %v2293
  %v2618 = vmul.f32 %v1778, %v2293
  %v2619 = vmul.f32 %v1779, %v2298
  %v2620 = vmul.f32 %v1780, %v2298
  %v2621 = vmul.f32 %v1781, %v2303
  %v2622 = vmul.f32 %v1782, %v2303
  %v2623 = vmul.f32 %v1783, %v2308
  %v2624 = vmul.f32 %v1784, %v2308
  %v2625 = vmul.f32 %v1785, %v2313
  %v2626 = vmul.f32 %v1786, %v2313
  %v2627 = vmul.f32 %v1787, %v2318
  %v2628 = vmul.f32 %v1788, %v2318
  %v2629 = vmul.f32 %v1789, %v2323
  %v2630 = vmul.f32 %v1790, %v2323
  %v2631 = vmul.f32 %v1791, %v2328
  %v2632 = vmul.f32 %v1792, %v2328
  %v2633 = vmul.f32 %v1793, %v2333
  %v2634 = vmul.f32 %v1794, %v2333
  %v2635 = vmul.f32 %v1795, %v2338
  %v2636 = vmul.f32 %v1796, %v2338
  %v2637 = vmul.f32 %v1797, %v2343
  %v2638 = vmul.f32 %v1798, %v2343
  %v2639 = vmul.f32 %v1799, %v2348
  %v2640 = vmul.f32 %v1800, %v2348
  %v2641 = vmul.f32 %v1801, %v2353
  %v2642 = vmul.f32 %v1802, %v2353
  %v2643 = vmul.f32 %v1803, %v2358
  %v2644 = vmul.f32 %v1804, %v2358
  %v2645 = vmul.f32 %v1805, %v2363
  %v2646 = vmul.f32 %v1806, %v2363
  %v2647 = vmul.f32 %v1807, %v2368
  %v2648 = vmul.f32 %v1808, %v2368
  %v2649 = vmul.f32 %v1809, %v2373
  %v2650 = vmul.f32 %v1810, %v2373
  %v2651 = vmul.f32 %v1811, %v2378
  %v2652 = vmul.f32 %v1812, %v2378
  %v2653 = vmul.f32 %v1813, %v2383
  %v2654 = vmul.f32 %v1814, %v2383
  %v2655 = vmul.f32 %v1815, %v2388
  %v2656 = vmul.f32 %v1816, %v2388
  %v2657 = vmul.f32 %v1817, %v2393
  %v2658 = vmul.f32 %v1818, %v2393
  %v2659 = vmul.f32 %v1819, %v2398
  %v2660 = vmul.f32 %v1820, %v2398
  %v2661 = vmul.f32 %v1821, %v2403
  %v2662 = vmul.f32 %v1822, %v2403
  %v2663 = vmul.f32 %v1823, %v2408
  %v2664 = vmul.f32 %v1824, %v2408
  %v2665 = vmul.f32 %v1825, %v2413
  %v2666 = vmul.f32 %v1826, %v2413
  %v2667 = vmul.f32 %v1827, %v2418
  %v2668 = vmul.f32 %v1828, %v2418
  %v2669 = vmul.f32 %v1829, %v2423
  %v2670 = vmul.f32 %v1830, %v2423
  %v2671 = vmul.f32 %v1831, %v2428
  %v2672 = vmul.f32 %v1832, %v2428
  %v2673 = vmul.f32 %v1833, %v2433
  %v2674 = vmul.f32 %v1834, %v2433
  %v2675 = vpack.c.bf16 %v2437, %v2435
  %v2676 = vpack.c.bf16 %v2438, %v2436
  %v2677 = vpack.c.bf16 %v2441, %v2439
  %v2678 = vpack.c.bf16 %v2442, %v2440
  %v2679 = vpack.c.bf16 %v2445, %v2443
  %v2680 = vpack.c.bf16 %v2446, %v2444
  %v2681 = vpack.c.bf16 %v2449, %v2447
  %v2682 = vpack.c.bf16 %v2450, %v2448
  %v2683 = vpack.c.bf16 %v2453, %v2451
  %v2684 = vpack.c.bf16 %v2454, %v2452
  %v2685 = vpack.c.bf16 %v2457, %v2455
  %v2686 = vpack.c.bf16 %v2458, %v2456
  %v2687 = vpack.c.bf16 %v2461, %v2459
  %v2688 = vpack.c.bf16 %v2462, %v2460
  %v2689 = vpack.c.bf16 %v2465, %v2463
  %v2690 = vpack.c.bf16 %v2466, %v2464
  %v2691 = vpack.c.bf16 %v2469, %v2467
  %v2692 = vpack.c.bf16 %v2470, %v2468
  %v2693 = vpack.c.bf16 %v2473, %v2471
  %v2694 = vpack.c.bf16 %v2474, %v2472
  %v2695 = vpack.c.bf16 %v2477, %v2475
  %v2696 = vpack.c.bf16 %v2478, %v2476
  %v2697 = vpack.c.bf16 %v2481, %v2479
  %v2698 = vpack.c.bf16 %v2482, %v2480
  %v2699 = vpack.c.bf16 %v2485, %v2483
  %v2700 = vpack.c.bf16 %v2486, %v2484
  %v2701 = vpack.c.bf16 %v2489, %v2487
  %v2702 = vpack.c.bf16 %v2490, %v2488
  %v2703 = vpack.c.bf16 %v2493, %v2491
  %v2704 = vpack.c.bf16 %v2494, %v2492
  %v2705 = vpack.c.bf16 %v2497, %v2495
  %v2706 = vpack.c.bf16 %v2498, %v2496
  %v2707 = vpack.c.bf16 %v2501, %v2499
  %v2708 = vpack.c.bf16 %v2502, %v2500
  %v2709 = vpack.c.bf16 %v2505, %v2503
  %v2710 = vpack.c.bf16 %v2506, %v2504
  %v2711 = vpack.c.bf16 %v2509, %v2507
  %v2712 = vpack.c.bf16 %v2510, %v2508
  %v2713 = vpack.c.bf16 %v2513, %v2511
  %v2714 = vpack.c.bf16 %v2514, %v2512
  %v2715 = vpack.c.bf16 %v2517, %v2515
  %v2716 = vpack.c.bf16 %v2518, %v2516
  %v2717 = vpack.c.bf16 %v2521, %v2519
  %v2718 = vpack.c.bf16 %v2522, %v2520
  %v2719 = vpack.c.bf16 %v2525, %v2523
  %v2720 = vpack.c.bf16 %v2526, %v2524
  %v2721 = vpack.c.bf16 %v2529, %v2527
  %v2722 = vpack.c.bf16 %v2530, %v2528
  %v2723 = vpack.c.bf16 %v2533, %v2531
  %v2724 = vpack.c.bf16 %v2534, %v2532
  %v2725 = vpack.c.bf16 %v2537, %v2535
  %v2726 = vpack.c.bf16 %v2538, %v2536
  %v2727 = vpack.c.bf16 %v2541, %v2539
  %v2728 = vpack.c.bf16 %v2542, %v2540
  %v2729 = vpack.c.bf16 %v2545, %v2543
  %v2730 = vpack.c.bf16 %v2546, %v2544
  %v2731 = vpack.c.bf16 %v2549, %v2547
  %v2732 = vpack.c.bf16 %v2550, %v2548
  %v2733 = vpack.c.bf16 %v2553, %v2551
  %v2734 = vpack.c.bf16 %v2554, %v2552
  %v2735 = vpack.c.bf16 %v2557, %v2555
  %v2736 = vpack.c.bf16 %v2558, %v2556
  %v2737 = vpack.c.bf16 %v2561, %v2559
  %v2738 = vpack.c.bf16 %v2562, %v2560
  %v2739 = vpack.c.bf16 %v2565, %v2563
  %v2740 = vpack.c.bf16 %v2566, %v2564
  %v2741 = vpack.c.bf16 %v2569, %v2567
  %v2742 = vpack.c.bf16 %v2570, %v2568
  %v2743 = vpack.c.bf16 %v2573, %v2571
  %v2744 = vpack.c.bf16 %v2574, %v2572
  %v2745 = vpack.c.bf16 %v2577, %v2575
  %v2746 = vpack.c.bf16 %v2578, %v2576
  %v2747 = vpack.c.bf16 %v2581, %v2579
  %v2748 = vpack.c.bf16 %v2582, %v2580
  %v2749 = vpack.c.bf16 %v2585, %v2583
  %v2750 = vpack.c.bf16 %v2586, %v2584
  %v2751 = vpack.c.bf16 %v2589, %v2587
  %v2752 = vpack.c.bf16 %v2590, %v2588
  %v2753 = vpack.c.bf16 %v2593, %v2591
  %v2754 = vpack.c.bf16 %v2594, %v2592
  %v2755 = vpack.c.bf16 %v2597, %v2595
  %v2756 = vpack.c.bf16 %v2598, %v2596
  %v2757 = vpack.c.bf16 %v2601, %v2599
  %v2758 = vpack.c.bf16 %v2602, %v2600
  %v2759 = vpack.c.bf16 %v2605, %v2603
  %v2760 = vpack.c.bf16 %v2606, %v2604
  %v2761 = vpack.c.bf16 %v2609, %v2607
  %v2762 = vpack.c.bf16 %v2610, %v2608
  %v2763 = vpack.c.bf16 %v2613, %v2611
  %v2764 = vpack.c.bf16 %v2614, %v2612
  %v2765 = vpack.c.bf16 %v2617, %v2615
  %v2766 = vpack.c.bf16 %v2618, %v2616
  %v2767 = vpack.c.bf16 %v2621, %v2619
  %v2768 = vpack.c.bf16 %v2622, %v2620
  %v2769 = vpack.c.bf16 %v2625, %v2623
  %v2770 = vpack.c.bf16 %v2626, %v2624
  %v2771 = vpack.c.bf16 %v2629, %v2627
  %v2772 = vpack.c.bf16 %v2630, %v2628
  %v2773 = vpack.c.bf16 %v2633, %v2631
  %v2774 = vpack.c.bf16 %v2634, %v2632
  %v2775 = vpack.c.bf16 %v2637, %v2635
  %v2776 = vpack.c.bf16 %v2638, %v2636
  %v2777 = vpack.c.bf16 %v2641, %v2639
  %v2778 = vpack.c.bf16 %v2642, %v2640
  %v2779 = vpack.c.bf16 %v2645, %v2643
  %v2780 = vpack.c.bf16 %v2646, %v2644
  %v2781 = vpack.c.bf16 %v2649, %v2647
  %v2782 = vpack.c.bf16 %v2650, %v2648
  %v2783 = vpack.c.bf16 %v2653, %v2651
  %v2784 = vpack.c.bf16 %v2654, %v2652
  %v2785 = vpack.c.bf16 %v2657, %v2655
  %v2786 = vpack.c.bf16 %v2658, %v2656
  %v2787 = vpack.c.bf16 %v2661, %v2659
  %v2788 = vpack.c.bf16 %v2662, %v2660
  %v2789 = vpack.c.bf16 %v2665, %v2663
  %v2790 = vpack.c.bf16 %v2666, %v2664
  %v2791 = vpack.c.bf16 %v2669, %v2667
  %v2792 = vpack.c.bf16 %v2670, %v2668
  %v2793 = vpack.c.bf16 %v2673, %v2671
  %v2794 = vpack.c.bf16 %v2674, %v2672
  %v2795 = vld [vmem:[%s4] sm:$0xff]
  %v2796 = vld [vmem:[%s4 + $0x8] sm:$0xff]
  %v2797 = vld [vmem:[%s4 + $0x10] sm:$0xff]
  %v2798 = vld [vmem:[%s4 + $0x18] sm:$0xff]
  %v2799 = vld [vmem:[%s4 + $0x20] sm:$0xff]
  %v2800 = vld [vmem:[%s4 + $0x28] sm:$0xff]
  %v2801 = vld [vmem:[%s4 + $0x30] sm:$0xff]
  %v2802 = vld [vmem:[%s4 + $0x38] sm:$0xff]
  %v2803 = vld [vmem:[%s4 + $0x40] sm:$0xff]
  %v2804 = vld [vmem:[%s4 + $0x48] sm:$0xff]
  %v2805 = vld [vmem:[%s4 + $0x50] sm:$0xff]
  %v2806 = vld [vmem:[%s4 + $0x58] sm:$0xff]
  %v2807 = vld [vmem:[%s4 + $0x60] sm:$0xff]
  %v2808 = vld [vmem:[%s4 + $0x68] sm:$0xff]
  %v2809 = vld [vmem:[%s4 + $0x70] sm:$0xff]
  %v2810 = vld [vmem:[%s4 + $0x78] sm:$0xff]
  %v2811 = vld [vmem:[%s4 + $0x80] sm:$0xff]
  %v2812 = vld [vmem:[%s4 + $0x88] sm:$0xff]
  %v2813 = vld [vmem:[%s4 + $0x90] sm:$0xff]
  %v2814 = vld [vmem:[%s4 + $0x98] sm:$0xff]
  %v2815 = vld [vmem:[%s4 + $0xa0] sm:$0xff]
  %v2816 = vld [vmem:[%s4 + $0xa8] sm:$0xff]
  %v2817 = vld [vmem:[%s4 + $0xb0] sm:$0xff]
  %v2818 = vld [vmem:[%s4 + $0xb8] sm:$0xff]
  %v2819 = vld [vmem:[%s4 + $0xc0] sm:$0xff]
  %v2820 = vld [vmem:[%s4 + $0xc8] sm:$0xff]
  %v2821 = vld [vmem:[%s4 + $0xd0] sm:$0xff]
  %v2822 = vld [vmem:[%s4 + $0xd8] sm:$0xff]
  %v2823 = vld [vmem:[%s4 + $0xe0] sm:$0xff]
  %v2824 = vld [vmem:[%s4 + $0xe8] sm:$0xff]
  %v2825 = vld [vmem:[%s4 + $0xf0] sm:$0xff]
  %v2826 = vld [vmem:[%s4 + $0xf8] sm:$0xff]
  %v2827 = vld [vmem:[%s4 + $0x100] sm:$0xff]
  %v2828 = vld [vmem:[%s4 + $0x108] sm:$0xff]
  %v2829 = vld [vmem:[%s4 + $0x110] sm:$0xff]
  %v2830 = vld [vmem:[%s4 + $0x118] sm:$0xff]
  %v2831 = vld [vmem:[%s4 + $0x120] sm:$0xff]
  %v2832 = vld [vmem:[%s4 + $0x128] sm:$0xff]
  %v2833 = vld [vmem:[%s4 + $0x130] sm:$0xff]
  %v2834 = vld [vmem:[%s4 + $0x138] sm:$0xff]
  %v2835 = vld [vmem:[%s4 + $0x140] sm:$0xff]
  %v2836 = vld [vmem:[%s4 + $0x148] sm:$0xff]
  %v2837 = vld [vmem:[%s4 + $0x150] sm:$0xff]
  %v2838 = vld [vmem:[%s4 + $0x158] sm:$0xff]
  %v2839 = vld [vmem:[%s4 + $0x160] sm:$0xff]
  %v2840 = vld [vmem:[%s4 + $0x168] sm:$0xff]
  %v2841 = vld [vmem:[%s4 + $0x170] sm:$0xff]
  %v2842 = vld [vmem:[%s4 + $0x178] sm:$0xff]
  %v2843 = vld [vmem:[%s4 + $0x180] sm:$0xff]
  %v2844 = vld [vmem:[%s4 + $0x188] sm:$0xff]
  %v2845 = vld [vmem:[%s4 + $0x190] sm:$0xff]
  %v2846 = vld [vmem:[%s4 + $0x198] sm:$0xff]
  %v2847 = vld [vmem:[%s4 + $0x1a0] sm:$0xff]
  %v2848 = vld [vmem:[%s4 + $0x1a8] sm:$0xff]
  %v2849 = vld [vmem:[%s4 + $0x1b0] sm:$0xff]
  %v2850 = vld [vmem:[%s4 + $0x1b8] sm:$0xff]
  %v2851 = vld [vmem:[%s4 + $0x1c0] sm:$0xff]
  %v2852 = vld [vmem:[%s4 + $0x1c8] sm:$0xff]
  %v2853 = vld [vmem:[%s4 + $0x1d0] sm:$0xff]
  %v2854 = vld [vmem:[%s4 + $0x1d8] sm:$0xff]
  %v2855 = vld [vmem:[%s4 + $0x1e0] sm:$0xff]
  %v2856 = vld [vmem:[%s4 + $0x1e8] sm:$0xff]
  %v2857 = vld [vmem:[%s4 + $0x1f0] sm:$0xff]
  %v2858 = vld [vmem:[%s4 + $0x1f8] sm:$0xff]
  %v2859 = vld [vmem:[%s4 + $0x200] sm:$0xff]
  %v2860 = vld [vmem:[%s4 + $0x208] sm:$0xff]
  %v2861 = vld [vmem:[%s4 + $0x210] sm:$0xff]
  %v2862 = vld [vmem:[%s4 + $0x218] sm:$0xff]
  %v2863 = vld [vmem:[%s4 + $0x220] sm:$0xff]
  %v2864 = vld [vmem:[%s4 + $0x228] sm:$0xff]
  %v2865 = vld [vmem:[%s4 + $0x230] sm:$0xff]
  %v2866 = vld [vmem:[%s4 + $0x238] sm:$0xff]
  %v2867 = vld [vmem:[%s4 + $0x240] sm:$0xff]
  %v2868 = vld [vmem:[%s4 + $0x248] sm:$0xff]
  %v2869 = vld [vmem:[%s4 + $0x250] sm:$0xff]
  %v2870 = vld [vmem:[%s4 + $0x258] sm:$0xff]
  %v2871 = vld [vmem:[%s4 + $0x260] sm:$0xff]
  %v2872 = vld [vmem:[%s4 + $0x268] sm:$0xff]
  %v2873 = vld [vmem:[%s4 + $0x270] sm:$0xff]
  %v2874 = vld [vmem:[%s4 + $0x278] sm:$0xff]
  %v2875 = vld [vmem:[%s4 + $0x280] sm:$0xff]
  %v2876 = vld [vmem:[%s4 + $0x288] sm:$0xff]
  %v2877 = vld [vmem:[%s4 + $0x290] sm:$0xff]
  %v2878 = vld [vmem:[%s4 + $0x298] sm:$0xff]
  %v2879 = vld [vmem:[%s4 + $0x2a0] sm:$0xff]
  %v2880 = vld [vmem:[%s4 + $0x2a8] sm:$0xff]
  %v2881 = vld [vmem:[%s4 + $0x2b0] sm:$0xff]
  %v2882 = vld [vmem:[%s4 + $0x2b8] sm:$0xff]
  %v2883 = vld [vmem:[%s4 + $0x2c0] sm:$0xff]
  %v2884 = vld [vmem:[%s4 + $0x2c8] sm:$0xff]
  %v2885 = vld [vmem:[%s4 + $0x2d0] sm:$0xff]
  %v2886 = vld [vmem:[%s4 + $0x2d8] sm:$0xff]
  %v2887 = vld [vmem:[%s4 + $0x2e0] sm:$0xff]
  %v2888 = vld [vmem:[%s4 + $0x2e8] sm:$0xff]
  %v2889 = vld [vmem:[%s4 + $0x2f0] sm:$0xff]
  %v2890 = vld [vmem:[%s4 + $0x2f8] sm:$0xff]
  %v2891 = vld [vmem:[%s4 + $0x300] sm:$0xff]
  %v2892 = vld [vmem:[%s4 + $0x308] sm:$0xff]
  %v2893 = vld [vmem:[%s4 + $0x310] sm:$0xff]
  %v2894 = vld [vmem:[%s4 + $0x318] sm:$0xff]
  %v2895 = vld [vmem:[%s4 + $0x320] sm:$0xff]
  %v2896 = vld [vmem:[%s4 + $0x328] sm:$0xff]
  %v2897 = vld [vmem:[%s4 + $0x330] sm:$0xff]
  %v2898 = vld [vmem:[%s4 + $0x338] sm:$0xff]
  %v2899 = vld [vmem:[%s4 + $0x340] sm:$0xff]
  %v2900 = vld [vmem:[%s4 + $0x348] sm:$0xff]
  %v2901 = vld [vmem:[%s4 + $0x350] sm:$0xff]
  %v2902 = vld [vmem:[%s4 + $0x358] sm:$0xff]
  %v2903 = vld [vmem:[%s4 + $0x360] sm:$0xff]
  %v2904 = vld [vmem:[%s4 + $0x368] sm:$0xff]
  %v2905 = vld [vmem:[%s4 + $0x370] sm:$0xff]
  %v2906 = vld [vmem:[%s4 + $0x378] sm:$0xff]
  %v2907 = vld [vmem:[%s4 + $0x380] sm:$0xff]
  %v2908 = vld [vmem:[%s4 + $0x388] sm:$0xff]
  %v2909 = vld [vmem:[%s4 + $0x390] sm:$0xff]
  %v2910 = vld [vmem:[%s4 + $0x398] sm:$0xff]
  %v2911 = vld [vmem:[%s4 + $0x3a0] sm:$0xff]
  %v2912 = vld [vmem:[%s4 + $0x3a8] sm:$0xff]
  %v2913 = vld [vmem:[%s4 + $0x3b0] sm:$0xff]
  %v2914 = vld [vmem:[%s4 + $0x3b8] sm:$0xff]
  %v2915 = vld [vmem:[%s4 + $0x3c0] sm:$0xff]
  %v2916 = vld [vmem:[%s4 + $0x3c8] sm:$0xff]
  %v2917 = vld [vmem:[%s4 + $0x3d0] sm:$0xff]
  %v2918 = vld [vmem:[%s4 + $0x3d8] sm:$0xff]
  %v2919 = vld [vmem:[%s4 + $0x3e0] sm:$0xff]
  %v2920 = vld [vmem:[%s4 + $0x3e8] sm:$0xff]
  %v2921 = vld [vmem:[%s4 + $0x3f0] sm:$0xff]
  %v2922 = vld [vmem:[%s4 + $0x3f8] sm:$0xff]
  %v2923 = vld [vmem:[%s4 + $0x400] sm:$0xff]
  %v2924 = vld [vmem:[%s4 + $0x408] sm:$0xff]
  %v2925 = vld [vmem:[%s4 + $0x410] sm:$0xff]
  %v2926 = vld [vmem:[%s4 + $0x418] sm:$0xff]
  %v2927 = vld [vmem:[%s4 + $0x420] sm:$0xff]
  %v2928 = vld [vmem:[%s4 + $0x428] sm:$0xff]
  %v2929 = vld [vmem:[%s4 + $0x430] sm:$0xff]
  %v2930 = vld [vmem:[%s4 + $0x438] sm:$0xff]
  %v2931 = vld [vmem:[%s4 + $0x440] sm:$0xff]
  %v2932 = vld [vmem:[%s4 + $0x448] sm:$0xff]
  %v2933 = vld [vmem:[%s4 + $0x450] sm:$0xff]
  %v2934 = vld [vmem:[%s4 + $0x458] sm:$0xff]
  %v2935 = vld [vmem:[%s4 + $0x460] sm:$0xff]
  %v2936 = vld [vmem:[%s4 + $0x468] sm:$0xff]
  %v2937 = vld [vmem:[%s4 + $0x470] sm:$0xff]
  %v2938 = vld [vmem:[%s4 + $0x478] sm:$0xff]
  %v2939 = vld [vmem:[%s4 + $0x480] sm:$0xff]
  %v2940 = vld [vmem:[%s4 + $0x488] sm:$0xff]
  %v2941 = vld [vmem:[%s4 + $0x490] sm:$0xff]
  %v2942 = vld [vmem:[%s4 + $0x498] sm:$0xff]
  %v2943 = vld [vmem:[%s4 + $0x4a0] sm:$0xff]
  %v2944 = vld [vmem:[%s4 + $0x4a8] sm:$0xff]
  %v2945 = vld [vmem:[%s4 + $0x4b0] sm:$0xff]
  %v2946 = vld [vmem:[%s4 + $0x4b8] sm:$0xff]
  %v2947 = vld [vmem:[%s4 + $0x4c0] sm:$0xff]
  %v2948 = vld [vmem:[%s4 + $0x4c8] sm:$0xff]
  %v2949 = vld [vmem:[%s4 + $0x4d0] sm:$0xff]
  %v2950 = vld [vmem:[%s4 + $0x4d8] sm:$0xff]
  %v2951 = vld [vmem:[%s4 + $0x4e0] sm:$0xff]
  %v2952 = vld [vmem:[%s4 + $0x4e8] sm:$0xff]
  %v2953 = vld [vmem:[%s4 + $0x4f0] sm:$0xff]
  %v2954 = vld [vmem:[%s4 + $0x4f8] sm:$0xff]
  %v2955 = vpack.c.bf16 %v2803, %v2795
  %v2956 = vpack.c.bf16 %v2804, %v2796
  %v2957 = vpack.c.bf16 %v2805, %v2797
  %v2958 = vpack.c.bf16 %v2806, %v2798
  %v2959 = vpack.c.bf16 %v2807, %v2799
  %v2960 = vpack.c.bf16 %v2808, %v2800
  %v2961 = vpack.c.bf16 %v2809, %v2801
  %v2962 = vpack.c.bf16 %v2810, %v2802
  %v2963 = vpack.c.bf16 %v2819, %v2811
  %v2964 = vpack.c.bf16 %v2820, %v2812
  %v2965 = vpack.c.bf16 %v2821, %v2813
  %v2966 = vpack.c.bf16 %v2822, %v2814
  %v2967 = vpack.c.bf16 %v2823, %v2815
  %v2968 = vpack.c.bf16 %v2824, %v2816
  %v2969 = vpack.c.bf16 %v2825, %v2817
  %v2970 = vpack.c.bf16 %v2826, %v2818
  %v2971 = vpack.c.bf16 %v2835, %v2827
  %v2972 = vpack.c.bf16 %v2836, %v2828
  %v2973 = vpack.c.bf16 %v2837, %v2829
  %v2974 = vpack.c.bf16 %v2838, %v2830
  %v2975 = vpack.c.bf16 %v2839, %v2831
  %v2976 = vpack.c.bf16 %v2840, %v2832
  %v2977 = vpack.c.bf16 %v2841, %v2833
  %v2978 = vpack.c.bf16 %v2842, %v2834
  %v2979 = vpack.c.bf16 %v2851, %v2843
  %v2980 = vpack.c.bf16 %v2852, %v2844
  %v2981 = vpack.c.bf16 %v2853, %v2845
  %v2982 = vpack.c.bf16 %v2854, %v2846
  %v2983 = vpack.c.bf16 %v2855, %v2847
  %v2984 = vpack.c.bf16 %v2856, %v2848
  %v2985 = vpack.c.bf16 %v2857, %v2849
  %v2986 = vpack.c.bf16 %v2858, %v2850
  %v2987 = vpack.c.bf16 %v2867, %v2859
  %v2988 = vpack.c.bf16 %v2868, %v2860
  %v2989 = vpack.c.bf16 %v2869, %v2861
  %v2990 = vpack.c.bf16 %v2870, %v2862
  %v2991 = vpack.c.bf16 %v2871, %v2863
  %v2992 = vpack.c.bf16 %v2872, %v2864
  %v2993 = vpack.c.bf16 %v2873, %v2865
  %v2994 = vpack.c.bf16 %v2874, %v2866
  %v2995 = vpack.c.bf16 %v2883, %v2875
  %v2996 = vpack.c.bf16 %v2884, %v2876
  %v2997 = vpack.c.bf16 %v2885, %v2877
  %v2998 = vpack.c.bf16 %v2886, %v2878
  %v2999 = vpack.c.bf16 %v2887, %v2879
  %v3000 = vpack.c.bf16 %v2888, %v2880
  %v3001 = vpack.c.bf16 %v2889, %v2881
  %v3002 = vpack.c.bf16 %v2890, %v2882
  %v3003 = vpack.c.bf16 %v2899, %v2891
  %v3004 = vpack.c.bf16 %v2900, %v2892
  %v3005 = vpack.c.bf16 %v2901, %v2893
  %v3006 = vpack.c.bf16 %v2902, %v2894
  %v3007 = vpack.c.bf16 %v2903, %v2895
  %v3008 = vpack.c.bf16 %v2904, %v2896
  %v3009 = vpack.c.bf16 %v2905, %v2897
  %v3010 = vpack.c.bf16 %v2906, %v2898
  %v3011 = vpack.c.bf16 %v2915, %v2907
  %v3012 = vpack.c.bf16 %v2916, %v2908
  %v3013 = vpack.c.bf16 %v2917, %v2909
  %v3014 = vpack.c.bf16 %v2918, %v2910
  %v3015 = vpack.c.bf16 %v2919, %v2911
  %v3016 = vpack.c.bf16 %v2920, %v2912
  %v3017 = vpack.c.bf16 %v2921, %v2913
  %v3018 = vpack.c.bf16 %v2922, %v2914
  %v3019 = vpack.c.bf16 %v2931, %v2923
  %v3020 = vpack.c.bf16 %v2932, %v2924
  %v3021 = vpack.c.bf16 %v2933, %v2925
  %v3022 = vpack.c.bf16 %v2934, %v2926
  %v3023 = vpack.c.bf16 %v2935, %v2927
  %v3024 = vpack.c.bf16 %v2936, %v2928
  %v3025 = vpack.c.bf16 %v2937, %v2929
  %v3026 = vpack.c.bf16 %v2938, %v2930
  %v3027 = vpack.c.bf16 %v2947, %v2939
  %v3028 = vpack.c.bf16 %v2948, %v2940
  %v3029 = vpack.c.bf16 %v2949, %v2941
  %v3030 = vpack.c.bf16 %v2950, %v2942
  %v3031 = vpack.c.bf16 %v2951, %v2943
  %v3032 = vpack.c.bf16 %v2952, %v2944
  %v3033 = vpack.c.bf16 %v2953, %v2945
  %v3034 = vpack.c.bf16 %v2954, %v2946
  %vm3035 = vcmask 523264
  %v3037 = vsel %vm3035, %v2962, 0
  %v3040 = vsel %vm3035, %v2970, 0
  %v3043 = vsel %vm3035, %v2978, 0
  %v3046 = vsel %vm3035, %v2986, 0
  %v3049 = vsel %vm3035, %v2994, 0
  %v3052 = vsel %vm3035, %v3002, 0
  %v3055 = vsel %vm3035, %v3010, 0
  %v3058 = vsel %vm3035, %v3018, 0
  %v3061 = vsel %vm3035, %v3026, 0
  %v3064 = vsel %vm3035, %v3034, 0
  %3066 = vmatprep.subr.bf16.mxu0 %v2676
  %3067 = vmatpush1.bf16.msra.mxu0 %v2675
  %3068 = vmatprep.subr.bf16.mxu0 %v2678
  %3069 = vmatpush1.bf16.msra.mxu0 %v2677
  %3070 = vmatprep.subr.bf16.mxu0 %v2680
  %3071 = vmatpush1.bf16.msra.mxu0 %v2679
  %3072 = vmatprep.subr.bf16.mxu0 %v2682
  %3073 = vmatpush1.bf16.msra.mxu0 %v2681
  %3074 = vmatprep.subr.bf16.mxu0 %v2684
  %3075 = vmatpush1.bf16.msra.mxu0 %v2683
  %3076 = vmatprep.subr.bf16.mxu0 %v2686
  %3077 = vmatpush1.bf16.msra.mxu0 %v2685
  %3078 = vmatprep.subr.bf16.mxu0 %v2688
  %3079 = vmatpush1.bf16.msra.mxu0 %v2687
  %3080 = vmatprep.subr.bf16.mxu0 %v2690
  %3081 = vmatpush1.bf16.msra.mxu0 %v2689
  %3082 = vmatprep.subr.bf16.mxu0 %v2692
  %3083 = vmatpush1.bf16.msra.mxu0 %v2691
  %3084 = vmatprep.subr.bf16.mxu0 %v2694
  %3085 = vmatpush1.bf16.msra.mxu0 %v2693
  %3086 = vmatprep.subr.bf16.mxu0 %v2696
  %3087 = vmatpush1.bf16.msra.mxu0 %v2695
  %3088 = vmatprep.subr.bf16.mxu0 %v2698
  %3089 = vmatpush1.bf16.msra.mxu0 %v2697
  %3090 = vmatprep.subr.bf16.mxu0 %v2700
  %3091 = vmatpush1.bf16.msra.mxu0 %v2699
  %3092 = vmatprep.subr.bf16.mxu0 %v2702
  %3093 = vmatpush1.bf16.msra.mxu0 %v2701
  %3094 = vmatprep.subr.bf16.mxu0 %v2704
  %3095 = vmatpush1.bf16.msra.mxu0 %v2703
  %3096 = vmatprep.subr.bf16.mxu0 %v2706
  %3097 = vmatpush1.bf16.msra.mxu0 %v2705
  %3098 = vmatprep.mubr.bf16.mxu0 %v2956
  %3099 = vmatmul.mubr.bf16.gmra.mrb[0].mxu0 %v2955
  %v3100 = vpop.f32.mrb[0].mxu0
  %v3101 = vadd.f32 0.0, %v3100
  %v3102 = vpop.f32.mrb[0].mxu0
  %v3103 = vadd.f32 0.0, %v3102
  %v3104 = vpop.f32.mrb[0].mxu0
  %v3105 = vadd.f32 0.0, %v3104
  %v3106 = vpop.f32.mrb[0].mxu0
  %v3107 = vadd.f32 0.0, %v3106
  %3108 = vmatprep.mubr.bf16.mxu0 %v2964
  %3109 = vmatmul.mubr.bf16.gmra.mrb[0].mxu0 %v2963
  %v3110 = vpop.f32.mrb[0].mxu0
  %v3111 = vadd.f32 0.0, %v3110
  %v3112 = vpop.f32.mrb[0].mxu0
  %v3113 = vadd.f32 0.0, %v3112
  %v3114 = vpop.f32.mrb[0].mxu0
  %v3115 = vadd.f32 0.0, %v3114
  %v3116 = vpop.f32.mrb[0].mxu0
  %v3117 = vadd.f32 0.0, %v3116
  %3118 = vmatprep.mubr.bf16.mxu0 %v2972
  %3119 = vmatmul.mubr.bf16.gmra.mrb[0].mxu0 %v2971
  %v3120 = vpop.f32.mrb[0].mxu0
  %v3121 = vadd.f32 0.0, %v3120
  %v3122 = vpop.f32.mrb[0].mxu0
  %v3123 = vadd.f32 0.0, %v3122
  %v3124 = vpop.f32.mrb[0].mxu0
  %v3125 = vadd.f32 0.0, %v3124
  %v3126 = vpop.f32.mrb[0].mxu0
  %v3127 = vadd.f32 0.0, %v3126
  %3128 = vmatprep.mubr.bf16.mxu0 %v2980
  %3129 = vmatmul.mubr.bf16.gmra.mrb[0].mxu0 %v2979
  %v3130 = vpop.f32.mrb[0].mxu0
  %v3131 = vadd.f32 0.0, %v3130
  %v3132 = vpop.f32.mrb[0].mxu0
  %v3133 = vadd.f32 0.0, %v3132
  %v3134 = vpop.f32.mrb[0].mxu0
  %v3135 = vadd.f32 0.0, %v3134
  %v3136 = vpop.f32.mrb[0].mxu0
  %v3137 = vadd.f32 0.0, %v3136
  %3138 = vmatprep.mubr.bf16.mxu0 %v2988
  %3139 = vmatmul.mubr.bf16.gmra.mrb[0].mxu0 %v2987
  %v3140 = vpop.f32.mrb[0].mxu0
  %v3141 = vadd.f32 0.0, %v3140
  %v3142 = vpop.f32.mrb[0].mxu0
  %v3143 = vadd.f32 0.0, %v3142
  %v3144 = vpop.f32.mrb[0].mxu0
  %v3145 = vadd.f32 0.0, %v3144
  %v3146 = vpop.f32.mrb[0].mxu0
  %v3147 = vadd.f32 0.0, %v3146
  %3148 = vmatprep.mubr.bf16.mxu0 %v2996
  %3149 = vmatmul.mubr.bf16.gmra.mrb[0].mxu0 %v2995
  %v3150 = vpop.f32.mrb[0].mxu0
  %v3151 = vadd.f32 0.0, %v3150
  %v3152 = vpop.f32.mrb[0].mxu0
  %v3153 = vadd.f32 0.0, %v3152
  %v3154 = vpop.f32.mrb[0].mxu0
  %v3155 = vadd.f32 0.0, %v3154
  %v3156 = vpop.f32.mrb[0].mxu0
  %v3157 = vadd.f32 0.0, %v3156
  %3158 = vmatprep.mubr.bf16.mxu0 %v3004
  %3159 = vmatmul.mubr.bf16.gmra.mrb[0].mxu0 %v3003
  %v3160 = vpop.f32.mrb[0].mxu0
  %v3161 = vadd.f32 0.0, %v3160
  %v3162 = vpop.f32.mrb[0].mxu0
  %v3163 = vadd.f32 0.0, %v3162
  %v3164 = vpop.f32.mrb[0].mxu0
  %v3165 = vadd.f32 0.0, %v3164
  %v3166 = vpop.f32.mrb[0].mxu0
  %v3167 = vadd.f32 0.0, %v3166
  %3168 = vmatprep.mubr.bf16.mxu0 %v3012
  %3169 = vmatmul.mubr.bf16.gmra.mrb[0].mxu0 %v3011
  %v3170 = vpop.f32.mrb[0].mxu0
  %v3171 = vadd.f32 0.0, %v3170
  %v3172 = vpop.f32.mrb[0].mxu0
  %v3173 = vadd.f32 0.0, %v3172
  %v3174 = vpop.f32.mrb[0].mxu0
  %v3175 = vadd.f32 0.0, %v3174
  %v3176 = vpop.f32.mrb[0].mxu0
  %v3177 = vadd.f32 0.0, %v3176
  %3178 = vmatprep.mubr.bf16.mxu0 %v3020
  %3179 = vmatmul.mubr.bf16.gmra.mrb[0].mxu0 %v3019
  %v3180 = vpop.f32.mrb[0].mxu0
  %v3181 = vadd.f32 0.0, %v3180
  %v3182 = vpop.f32.mrb[0].mxu0
  %v3183 = vadd.f32 0.0, %v3182
  %v3184 = vpop.f32.mrb[0].mxu0
  %v3185 = vadd.f32 0.0, %v3184
  %v3186 = vpop.f32.mrb[0].mxu0
  %v3187 = vadd.f32 0.0, %v3186
  %3188 = vmatprep.mubr.bf16.mxu0 %v3028
  %3189 = vmatmul.mubr.bf16.gmra.mrb[0].mxu0 %v3027
  %v3190 = vpop.f32.mrb[0].mxu0
  %v3191 = vadd.f32 0.0, %v3190
  %v3192 = vpop.f32.mrb[0].mxu0
  %v3193 = vadd.f32 0.0, %v3192
  %v3194 = vpop.f32.mrb[0].mxu0
  %v3195 = vadd.f32 0.0, %v3194
  %v3196 = vpop.f32.mrb[0].mxu0
  %v3197 = vadd.f32 0.0, %v3196
  %3198 = vdwg.mxu0
  %3199 = vmatprep.subr.bf16.mxu0 %v2708
  %3200 = vmatpush1.bf16.msra.mxu0 %v2707
  %3201 = vmatprep.subr.bf16.mxu0 %v2710
  %3202 = vmatpush1.bf16.msra.mxu0 %v2709
  %3203 = vmatprep.subr.bf16.mxu0 %v2712
  %3204 = vmatpush1.bf16.msra.mxu0 %v2711
  %3205 = vmatprep.subr.bf16.mxu0 %v2714
  %3206 = vmatpush1.bf16.msra.mxu0 %v2713
  %3207 = vmatprep.subr.bf16.mxu0 %v2716
  %3208 = vmatpush1.bf16.msra.mxu0 %v2715
  %3209 = vmatprep.subr.bf16.mxu0 %v2718
  %3210 = vmatpush1.bf16.msra.mxu0 %v2717
  %3211 = vmatprep.subr.bf16.mxu0 %v2720
  %3212 = vmatpush1.bf16.msra.mxu0 %v2719
  %3213 = vmatprep.subr.bf16.mxu0 %v2722
  %3214 = vmatpush1.bf16.msra.mxu0 %v2721
  %3215 = vmatprep.subr.bf16.mxu0 %v2724
  %3216 = vmatpush1.bf16.msra.mxu0 %v2723
  %3217 = vmatprep.subr.bf16.mxu0 %v2726
  %3218 = vmatpush1.bf16.msra.mxu0 %v2725
  %3219 = vmatprep.subr.bf16.mxu0 %v2728
  %3220 = vmatpush1.bf16.msra.mxu0 %v2727
  %3221 = vmatprep.subr.bf16.mxu0 %v2730
  %3222 = vmatpush1.bf16.msra.mxu0 %v2729
  %3223 = vmatprep.subr.bf16.mxu0 %v2732
  %3224 = vmatpush1.bf16.msra.mxu0 %v2731
  %3225 = vmatprep.subr.bf16.mxu0 %v2734
  %3226 = vmatpush1.bf16.msra.mxu0 %v2733
  %3227 = vmatprep.subr.bf16.mxu0 %v2736
  %3228 = vmatpush1.bf16.msra.mxu0 %v2735
  %3229 = vmatprep.subr.bf16.mxu0 %v2738
  %3230 = vmatpush1.bf16.msra.mxu0 %v2737
  %3231 = vmatprep.mubr.bf16.mxu0 %v2958
  %3232 = vmatmul.mubr.bf16.gmra.mrb[0].mxu0 %v2957
  %v3233 = vpop.f32.mrb[0].mxu0
  %v3234 = vadd.f32 %v3101, %v3233
  %v3235 = vpop.f32.mrb[0].mxu0
  %v3236 = vadd.f32 %v3103, %v3235
  %v3237 = vpop.f32.mrb[0].mxu0
  %v3238 = vadd.f32 %v3105, %v3237
  %v3239 = vpop.f32.mrb[0].mxu0
  %v3240 = vadd.f32 %v3107, %v3239
  %3241 = vmatprep.mubr.bf16.mxu0 %v2966
  %3242 = vmatmul.mubr.bf16.gmra.mrb[0].mxu0 %v2965
  %v3243 = vpop.f32.mrb[0].mxu0
  %v3244 = vadd.f32 %v3111, %v3243
  %v3245 = vpop.f32.mrb[0].mxu0
  %v3246 = vadd.f32 %v3113, %v3245
  %v3247 = vpop.f32.mrb[0].mxu0
  %v3248 = vadd.f32 %v3115, %v3247
  %v3249 = vpop.f32.mrb[0].mxu0
  %v3250 = vadd.f32 %v3117, %v3249
  %3251 = vmatprep.mubr.bf16.mxu0 %v2974
  %3252 = vmatmul.mubr.bf16.gmra.mrb[0].mxu0 %v2973
  %v3253 = vpop.f32.mrb[0].mxu0
  %v3254 = vadd.f32 %v3121, %v3253
  %v3255 = vpop.f32.mrb[0].mxu0
  %v3256 = vadd.f32 %v3123, %v3255
  %v3257 = vpop.f32.mrb[0].mxu0
  %v3258 = vadd.f32 %v3125, %v3257
  %v3259 = vpop.f32.mrb[0].mxu0
  %v3260 = vadd.f32 %v3127, %v3259
  %3261 = vmatprep.mubr.bf16.mxu0 %v2982
  %3262 = vmatmul.mubr.bf16.gmra.mrb[0].mxu0 %v2981
  %v3263 = vpop.f32.mrb[0].mxu0
  %v3264 = vadd.f32 %v3131, %v3263
  %v3265 = vpop.f32.mrb[0].mxu0
  %v3266 = vadd.f32 %v3133, %v3265
  %v3267 = vpop.f32.mrb[0].mxu0
  %v3268 = vadd.f32 %v3135, %v3267
  %v3269 = vpop.f32.mrb[0].mxu0
  %v3270 = vadd.f32 %v3137, %v3269
  %3271 = vmatprep.mubr.bf16.mxu0 %v2990
  %3272 = vmatmul.mubr.bf16.gmra.mrb[0].mxu0 %v2989
  %v3273 = vpop.f32.mrb[0].mxu0
  %v3274 = vadd.f32 %v3141, %v3273
  %v3275 = vpop.f32.mrb[0].mxu0
  %v3276 = vadd.f32 %v3143, %v3275
  %v3277 = vpop.f32.mrb[0].mxu0
  %v3278 = vadd.f32 %v3145, %v3277
  %v3279 = vpop.f32.mrb[0].mxu0
  %v3280 = vadd.f32 %v3147, %v3279
  %3281 = vmatprep.mubr.bf16.mxu0 %v2998
  %3282 = vmatmul.mubr.bf16.gmra.mrb[0].mxu0 %v2997
  %v3283 = vpop.f32.mrb[0].mxu0
  %v3284 = vadd.f32 %v3151, %v3283
  %v3285 = vpop.f32.mrb[0].mxu0
  %v3286 = vadd.f32 %v3153, %v3285
  %v3287 = vpop.f32.mrb[0].mxu0
  %v3288 = vadd.f32 %v3155, %v3287
  %v3289 = vpop.f32.mrb[0].mxu0
  %v3290 = vadd.f32 %v3157, %v3289
  %3291 = vmatprep.mubr.bf16.mxu0 %v3006
  %3292 = vmatmul.mubr.bf16.gmra.mrb[0].mxu0 %v3005
  %v3293 = vpop.f32.mrb[0].mxu0
  %v3294 = vadd.f32 %v3161, %v3293
  %v3295 = vpop.f32.mrb[0].mxu0
  %v3296 = vadd.f32 %v3163, %v3295
  %v3297 = vpop.f32.mrb[0].mxu0
  %v3298 = vadd.f32 %v3165, %v3297
  %v3299 = vpop.f32.mrb[0].mxu0
  %v3300 = vadd.f32 %v3167, %v3299
  %3301 = vmatprep.mubr.bf16.mxu0 %v3014
  %3302 = vmatmul.mubr.bf16.gmra.mrb[0].mxu0 %v3013
  %v3303 = vpop.f32.mrb[0].mxu0
  %v3304 = vadd.f32 %v3171, %v3303
  %v3305 = vpop.f32.mrb[0].mxu0
  %v3306 = vadd.f32 %v3173, %v3305
  %v3307 = vpop.f32.mrb[0].mxu0
  %v3308 = vadd.f32 %v3175, %v3307
  %v3309 = vpop.f32.mrb[0].mxu0
  %v3310 = vadd.f32 %v3177, %v3309
  %3311 = vmatprep.mubr.bf16.mxu0 %v3022
  %3312 = vmatmul.mubr.bf16.gmra.mrb[0].mxu0 %v3021
  %v3313 = vpop.f32.mrb[0].mxu0
  %v3314 = vadd.f32 %v3181, %v3313
  %v3315 = vpop.f32.mrb[0].mxu0
  %v3316 = vadd.f32 %v3183, %v3315
  %v3317 = vpop.f32.mrb[0].mxu0
  %v3318 = vadd.f32 %v3185, %v3317
  %v3319 = vpop.f32.mrb[0].mxu0
  %v3320 = vadd.f32 %v3187, %v3319
  %3321 = vmatprep.mubr.bf16.mxu0 %v3030
  %3322 = vmatmul.mubr.bf16.gmra.mrb[0].mxu0 %v3029
  %v3323 = vpop.f32.mrb[0].mxu0
  %v3324 = vadd.f32 %v3191, %v3323
  %v3325 = vpop.f32.mrb[0].mxu0
  %v3326 = vadd.f32 %v3193, %v3325
  %v3327 = vpop.f32.mrb[0].mxu0
  %v3328 = vadd.f32 %v3195, %v3327
  %v3329 = vpop.f32.mrb[0].mxu0
  %v3330 = vadd.f32 %v3197, %v3329
  %3331 = vdwg.mxu0
  %3332 = vmatprep.subr.bf16.mxu0 %v2740
  %3333 = vmatpush1.bf16.msra.mxu0 %v2739
  %3334 = vmatprep.subr.bf16.mxu0 %v2742
  %3335 = vmatpush1.bf16.msra.mxu0 %v2741
  %3336 = vmatprep.subr.bf16.mxu0 %v2744
  %3337 = vmatpush1.bf16.msra.mxu0 %v2743
  %3338 = vmatprep.subr.bf16.mxu0 %v2746
  %3339 = vmatpush1.bf16.msra.mxu0 %v2745
  %3340 = vmatprep.subr.bf16.mxu0 %v2748
  %3341 = vmatpush1.bf16.msra.mxu0 %v2747
  %3342 = vmatprep.subr.bf16.mxu0 %v2750
  %3343 = vmatpush1.bf16.msra.mxu0 %v2749
  %3344 = vmatprep.subr.bf16.mxu0 %v2752
  %3345 = vmatpush1.bf16.msra.mxu0 %v2751
  %3346 = vmatprep.subr.bf16.mxu0 %v2754
  %3347 = vmatpush1.bf16.msra.mxu0 %v2753
  %3348 = vmatprep.subr.bf16.mxu0 %v2756
  %3349 = vmatpush1.bf16.msra.mxu0 %v2755
  %3350 = vmatprep.subr.bf16.mxu0 %v2758
  %3351 = vmatpush1.bf16.msra.mxu0 %v2757
  %3352 = vmatprep.subr.bf16.mxu0 %v2760
  %3353 = vmatpush1.bf16.msra.mxu0 %v2759
  %3354 = vmatprep.subr.bf16.mxu0 %v2762
  %3355 = vmatpush1.bf16.msra.mxu0 %v2761
  %3356 = vmatprep.subr.bf16.mxu0 %v2764
  %3357 = vmatpush1.bf16.msra.mxu0 %v2763
  %3358 = vmatprep.subr.bf16.mxu0 %v2766
  %3359 = vmatpush1.bf16.msra.mxu0 %v2765
  %3360 = vmatprep.subr.bf16.mxu0 %v2768
  %3361 = vmatpush1.bf16.msra.mxu0 %v2767
  %3362 = vmatprep.subr.bf16.mxu0 %v2770
  %3363 = vmatpush1.bf16.msra.mxu0 %v2769
  %3364 = vmatprep.mubr.bf16.mxu0 %v2960
  %3365 = vmatmul.mubr.bf16.gmra.mrb[0].mxu0 %v2959
  %v3366 = vpop.f32.mrb[0].mxu0
  %v3367 = vadd.f32 %v3234, %v3366
  %v3368 = vpop.f32.mrb[0].mxu0
  %v3369 = vadd.f32 %v3236, %v3368
  %v3370 = vpop.f32.mrb[0].mxu0
  %v3371 = vadd.f32 %v3238, %v3370
  %v3372 = vpop.f32.mrb[0].mxu0
  %v3373 = vadd.f32 %v3240, %v3372
  %3374 = vmatprep.mubr.bf16.mxu0 %v2968
  %3375 = vmatmul.mubr.bf16.gmra.mrb[0].mxu0 %v2967
  %v3376 = vpop.f32.mrb[0].mxu0
  %v3377 = vadd.f32 %v3244, %v3376
  %v3378 = vpop.f32.mrb[0].mxu0
  %v3379 = vadd.f32 %v3246, %v3378
  %v3380 = vpop.f32.mrb[0].mxu0
  %v3381 = vadd.f32 %v3248, %v3380
  %v3382 = vpop.f32.mrb[0].mxu0
  %v3383 = vadd.f32 %v3250, %v3382
  %3384 = vmatprep.mubr.bf16.mxu0 %v2976
  %3385 = vmatmul.mubr.bf16.gmra.mrb[0].mxu0 %v2975
  %v3386 = vpop.f32.mrb[0].mxu0
  %v3387 = vadd.f32 %v3254, %v3386
  %v3388 = vpop.f32.mrb[0].mxu0
  %v3389 = vadd.f32 %v3256, %v3388
  %v3390 = vpop.f32.mrb[0].mxu0
  %v3391 = vadd.f32 %v3258, %v3390
  %v3392 = vpop.f32.mrb[0].mxu0
  %v3393 = vadd.f32 %v3260, %v3392
  %3394 = vmatprep.mubr.bf16.mxu0 %v2984
  %3395 = vmatmul.mubr.bf16.gmra.mrb[0].mxu0 %v2983
  %v3396 = vpop.f32.mrb[0].mxu0
  %v3397 = vadd.f32 %v3264, %v3396
  %v3398 = vpop.f32.mrb[0].mxu0
  %v3399 = vadd.f32 %v3266, %v3398
  %v3400 = vpop.f32.mrb[0].mxu0
  %v3401 = vadd.f32 %v3268, %v3400
  %v3402 = vpop.f32.mrb[0].mxu0
  %v3403 = vadd.f32 %v3270, %v3402
  %3404 = vmatprep.mubr.bf16.mxu0 %v2992
  %3405 = vmatmul.mubr.bf16.gmra.mrb[0].mxu0 %v2991
  %v3406 = vpop.f32.mrb[0].mxu0
  %v3407 = vadd.f32 %v3274, %v3406
  %v3408 = vpop.f32.mrb[0].mxu0
  %v3409 = vadd.f32 %v3276, %v3408
  %v3410 = vpop.f32.mrb[0].mxu0
  %v3411 = vadd.f32 %v3278, %v3410
  %v3412 = vpop.f32.mrb[0].mxu0
  %v3413 = vadd.f32 %v3280, %v3412
  %3414 = vmatprep.mubr.bf16.mxu0 %v3000
  %3415 = vmatmul.mubr.bf16.gmra.mrb[0].mxu0 %v2999
  %v3416 = vpop.f32.mrb[0].mxu0
  %v3417 = vadd.f32 %v3284, %v3416
  %v3418 = vpop.f32.mrb[0].mxu0
  %v3419 = vadd.f32 %v3286, %v3418
  %v3420 = vpop.f32.mrb[0].mxu0
  %v3421 = vadd.f32 %v3288, %v3420
  %v3422 = vpop.f32.mrb[0].mxu0
  %v3423 = vadd.f32 %v3290, %v3422
  %3424 = vmatprep.mubr.bf16.mxu0 %v3008
  %3425 = vmatmul.mubr.bf16.gmra.mrb[0].mxu0 %v3007
  %v3426 = vpop.f32.mrb[0].mxu0
  %v3427 = vadd.f32 %v3294, %v3426
  %v3428 = vpop.f32.mrb[0].mxu0
  %v3429 = vadd.f32 %v3296, %v3428
  %v3430 = vpop.f32.mrb[0].mxu0
  %v3431 = vadd.f32 %v3298, %v3430
  %v3432 = vpop.f32.mrb[0].mxu0
  %v3433 = vadd.f32 %v3300, %v3432
  %3434 = vmatprep.mubr.bf16.mxu0 %v3016
  %3435 = vmatmul.mubr.bf16.gmra.mrb[0].mxu0 %v3015
  %v3436 = vpop.f32.mrb[0].mxu0
  %v3437 = vadd.f32 %v3304, %v3436
  %v3438 = vpop.f32.mrb[0].mxu0
  %v3439 = vadd.f32 %v3306, %v3438
  %v3440 = vpop.f32.mrb[0].mxu0
  %v3441 = vadd.f32 %v3308, %v3440
  %v3442 = vpop.f32.mrb[0].mxu0
  %v3443 = vadd.f32 %v3310, %v3442
  %3444 = vmatprep.mubr.bf16.mxu0 %v3024
  %3445 = vmatmul.mubr.bf16.gmra.mrb[0].mxu0 %v3023
  %v3446 = vpop.f32.mrb[0].mxu0
  %v3447 = vadd.f32 %v3314, %v3446
  %v3448 = vpop.f32.mrb[0].mxu0
  %v3449 = vadd.f32 %v3316, %v3448
  %v3450 = vpop.f32.mrb[0].mxu0
  %v3451 = vadd.f32 %v3318, %v3450
  %v3452 = vpop.f32.mrb[0].mxu0
  %v3453 = vadd.f32 %v3320, %v3452
  %3454 = vmatprep.mubr.bf16.mxu0 %v3032
  %3455 = vmatmul.mubr.bf16.gmra.mrb[0].mxu0 %v3031
  %v3456 = vpop.f32.mrb[0].mxu0
  %v3457 = vadd.f32 %v3324, %v3456
  %v3458 = vpop.f32.mrb[0].mxu0
  %v3459 = vadd.f32 %v3326, %v3458
  %v3460 = vpop.f32.mrb[0].mxu0
  %v3461 = vadd.f32 %v3328, %v3460
  %v3462 = vpop.f32.mrb[0].mxu0
  %v3463 = vadd.f32 %v3330, %v3462
  %3464 = vdwg.mxu0
  %3465 = vmatprep.subr.bf16.mxu0 %v2772
  %3466 = vmatpush1.bf16.msra.mxu0 %v2771
  %3467 = vmatprep.subr.bf16.mxu0 %v2774
  %3468 = vmatpush1.bf16.msra.mxu0 %v2773
  %3469 = vmatprep.subr.bf16.mxu0 %v2776
  %3470 = vmatpush1.bf16.msra.mxu0 %v2775
  %3471 = vmatprep.subr.bf16.mxu0 %v2778
  %3472 = vmatpush1.bf16.msra.mxu0 %v2777
  %3473 = vmatprep.subr.bf16.mxu0 %v2780
  %3474 = vmatpush1.bf16.msra.mxu0 %v2779
  %3475 = vmatprep.subr.bf16.mxu0 %v2782
  %3476 = vmatpush1.bf16.msra.mxu0 %v2781
  %3477 = vmatprep.subr.bf16.mxu0 %v2784
  %3478 = vmatpush1.bf16.msra.mxu0 %v2783
  %3479 = vmatprep.subr.bf16.mxu0 %v2786
  %3480 = vmatpush1.bf16.msra.mxu0 %v2785
  %3481 = vmatprep.subr.bf16.mxu0 %v2788
  %3482 = vmatpush1.bf16.msra.mxu0 %v2787
  %3483 = vmatprep.subr.bf16.mxu0 %v2790
  %3484 = vmatpush1.bf16.msra.mxu0 %v2789
  %3485 = vmatprep.subr.bf16.mxu0 %v2792
  %3486 = vmatpush1.bf16.msra.mxu0 %v2791
  %3487 = vmatprep.subr.bf16.mxu0 %v2794
  %3488 = vmatpush1.bf16.msra.mxu0 %v2793
  %3489 = vmatprep.subr.bf16.mxu0 0
  %3490 = vmatpush1.bf16.msra.mxu0 0
  %3491 = vmatprep.subr.bf16.mxu0 0
  %3492 = vmatpush1.bf16.msra.mxu0 0
  %3493 = vmatprep.subr.bf16.mxu0 0
  %3494 = vmatpush1.bf16.msra.mxu0 0
  %3495 = vmatprep.subr.bf16.mxu0 0
  %3496 = vmatpush1.bf16.msra.mxu0 0
  %3497 = vmatprep.mubr.bf16.mxu0 %v3037
  %3498 = vmatmul.mubr.bf16.gmra.mrb[0].mxu0 %v2961
  %v3499 = vpop.f32.mrb[0].mxu0
  %v3500 = vadd.f32 %v3367, %v3499
  %v3501 = vpop.f32.mrb[0].mxu0
  %v3502 = vadd.f32 %v3369, %v3501
  %v3503 = vpop.f32.mrb[0].mxu0
  %v3504 = vadd.f32 %v3371, %v3503
  %v3505 = vpop.f32.mrb[0].mxu0
  %v3506 = vadd.f32 %v3373, %v3505
  %3507 = vmatprep.mubr.bf16.mxu0 %v3040
  %3508 = vmatmul.mubr.bf16.gmra.mrb[0].mxu0 %v2969
  %v3509 = vpop.f32.mrb[0].mxu0
  %v3510 = vadd.f32 %v3377, %v3509
  %v3511 = vpop.f32.mrb[0].mxu0
  %v3512 = vadd.f32 %v3379, %v3511
  %v3513 = vpop.f32.mrb[0].mxu0
  %v3514 = vadd.f32 %v3381, %v3513
  %v3515 = vpop.f32.mrb[0].mxu0
  %v3516 = vadd.f32 %v3383, %v3515
  %3517 = vmatprep.mubr.bf16.mxu0 %v3043
  %3518 = vmatmul.mubr.bf16.gmra.mrb[0].mxu0 %v2977
  %v3519 = vpop.f32.mrb[0].mxu0
  %v3520 = vadd.f32 %v3387, %v3519
  %v3521 = vpop.f32.mrb[0].mxu0
  %v3522 = vadd.f32 %v3389, %v3521
  %v3523 = vpop.f32.mrb[0].mxu0
  %v3524 = vadd.f32 %v3391, %v3523
  %v3525 = vpop.f32.mrb[0].mxu0
  %v3526 = vadd.f32 %v3393, %v3525
  %3527 = vmatprep.mubr.bf16.mxu0 %v3046
  %3528 = vmatmul.mubr.bf16.gmra.mrb[0].mxu0 %v2985
  %v3529 = vpop.f32.mrb[0].mxu0
  %v3530 = vadd.f32 %v3397, %v3529
  %v3531 = vpop.f32.mrb[0].mxu0
  %v3532 = vadd.f32 %v3399, %v3531
  %v3533 = vpop.f32.mrb[0].mxu0
  %v3534 = vadd.f32 %v3401, %v3533
  %v3535 = vpop.f32.mrb[0].mxu0
  %v3536 = vadd.f32 %v3403, %v3535
  %3537 = vmatprep.mubr.bf16.mxu0 %v3049
  %3538 = vmatmul.mubr.bf16.gmra.mrb[0].mxu0 %v2993
  %v3539 = vpop.f32.mrb[0].mxu0
  %v3540 = vadd.f32 %v3407, %v3539
  %v3541 = vpop.f32.mrb[0].mxu0
  %v3542 = vadd.f32 %v3409, %v3541
  %v3543 = vpop.f32.mrb[0].mxu0
  %v3544 = vadd.f32 %v3411, %v3543
  %v3545 = vpop.f32.mrb[0].mxu0
  %v3546 = vadd.f32 %v3413, %v3545
  %3547 = vmatprep.mubr.bf16.mxu0 %v3052
  %3548 = vmatmul.mubr.bf16.gmra.mrb[0].mxu0 %v3001
  %v3549 = vpop.f32.mrb[0].mxu0
  %v3550 = vadd.f32 %v3417, %v3549
  %v3551 = vpop.f32.mrb[0].mxu0
  %v3552 = vadd.f32 %v3419, %v3551
  %v3553 = vpop.f32.mrb[0].mxu0
  %v3554 = vadd.f32 %v3421, %v3553
  %v3555 = vpop.f32.mrb[0].mxu0
  %v3556 = vadd.f32 %v3423, %v3555
  %3557 = vmatprep.mubr.bf16.mxu0 %v3055
  %3558 = vmatmul.mubr.bf16.gmra.mrb[0].mxu0 %v3009
  %v3559 = vpop.f32.mrb[0].mxu0
  %v3560 = vadd.f32 %v3427, %v3559
  %v3561 = vpop.f32.mrb[0].mxu0
  %v3562 = vadd.f32 %v3429, %v3561
  %v3563 = vpop.f32.mrb[0].mxu0
  %v3564 = vadd.f32 %v3431, %v3563
  %v3565 = vpop.f32.mrb[0].mxu0
  %v3566 = vadd.f32 %v3433, %v3565
  %3567 = vmatprep.mubr.bf16.mxu0 %v3058
  %3568 = vmatmul.mubr.bf16.gmra.mrb[0].mxu0 %v3017
  %v3569 = vpop.f32.mrb[0].mxu0
  %v3570 = vadd.f32 %v3437, %v3569
  %v3571 = vpop.f32.mrb[0].mxu0
  %v3572 = vadd.f32 %v3439, %v3571
  %v3573 = vpop.f32.mrb[0].mxu0
  %v3574 = vadd.f32 %v3441, %v3573
  %v3575 = vpop.f32.mrb[0].mxu0
  %v3576 = vadd.f32 %v3443, %v3575
  %3577 = vmatprep.mubr.bf16.mxu0 %v3061
  %3578 = vmatmul.mubr.bf16.gmra.mrb[0].mxu0 %v3025
  %v3579 = vpop.f32.mrb[0].mxu0
  %v3580 = vadd.f32 %v3447, %v3579
  %v3581 = vpop.f32.mrb[0].mxu0
  %v3582 = vadd.f32 %v3449, %v3581
  %v3583 = vpop.f32.mrb[0].mxu0
  %v3584 = vadd.f32 %v3451, %v3583
  %v3585 = vpop.f32.mrb[0].mxu0
  %v3586 = vadd.f32 %v3453, %v3585
  %3587 = vmatprep.mubr.bf16.mxu0 %v3064
  %3588 = vmatmul.mubr.bf16.gmra.mrb[0].mxu0 %v3033
  %v3589 = vpop.f32.mrb[0].mxu0
  %v3590 = vadd.f32 %v3457, %v3589
  %v3591 = vpop.f32.mrb[0].mxu0
  %v3592 = vadd.f32 %v3459, %v3591
  %v3593 = vpop.f32.mrb[0].mxu0
  %v3594 = vadd.f32 %v3461, %v3593
  %v3595 = vpop.f32.mrb[0].mxu0
  %v3596 = vadd.f32 %v3463, %v3595
  %3597 = vdwg.mxu0
  %vm3598 = vcmask 556032
  %v3599 = vsel %vm3598, %v3502, 0.0
  %v3600 = vadd.f32 %v3500, %v3599
  %3601 = vadd.xlane.f32.xlu0 %v3600
  %v3602 = vpop.xlane.xlu0 %3601
  %v3603 = vsel %vm3598, %v3506, 0.0
  %v3604 = vadd.f32 %v3504, %v3603
  %3605 = vadd.xlane.f32.xlu0 %v3604
  %v3606 = vpop.xlane.xlu0 %3605
  %v3607 = vsel %vm3598, %v3512, 0.0
  %v3608 = vadd.f32 %v3510, %v3607
  %3609 = vadd.xlane.f32.xlu0 %v3608
  %v3610 = vpop.xlane.xlu0 %3609
  %v3611 = vsel %vm3598, %v3516, 0.0
  %v3612 = vadd.f32 %v3514, %v3611
  %3613 = vadd.xlane.f32.xlu0 %v3612
  %v3614 = vpop.xlane.xlu0 %3613
  %v3615 = vsel %vm3598, %v3522, 0.0
  %v3616 = vadd.f32 %v3520, %v3615
  %3617 = vadd.xlane.f32.xlu0 %v3616
  %v3618 = vpop.xlane.xlu0 %3617
  %v3619 = vsel %vm3598, %v3526, 0.0
  %v3620 = vadd.f32 %v3524, %v3619
  %3621 = vadd.xlane.f32.xlu0 %v3620
  %v3622 = vpop.xlane.xlu0 %3621
  %v3623 = vsel %vm3598, %v3532, 0.0
  %v3624 = vadd.f32 %v3530, %v3623
  %3625 = vadd.xlane.f32.xlu0 %v3624
  %v3626 = vpop.xlane.xlu0 %3625
  %v3627 = vsel %vm3598, %v3536, 0.0
  %v3628 = vadd.f32 %v3534, %v3627
  %3629 = vadd.xlane.f32.xlu0 %v3628
  %v3630 = vpop.xlane.xlu0 %3629
  %v3631 = vsel %vm3598, %v3542, 0.0
  %v3632 = vadd.f32 %v3540, %v3631
  %3633 = vadd.xlane.f32.xlu0 %v3632
  %v3634 = vpop.xlane.xlu0 %3633
  %v3635 = vsel %vm3598, %v3546, 0.0
  %v3636 = vadd.f32 %v3544, %v3635
  %3637 = vadd.xlane.f32.xlu0 %v3636
  %v3638 = vpop.xlane.xlu0 %3637
  %v3639 = vsel %vm3598, %v3552, 0.0
  %v3640 = vadd.f32 %v3550, %v3639
  %3641 = vadd.xlane.f32.xlu0 %v3640
  %v3642 = vpop.xlane.xlu0 %3641
  %v3643 = vsel %vm3598, %v3556, 0.0
  %v3644 = vadd.f32 %v3554, %v3643
  %3645 = vadd.xlane.f32.xlu0 %v3644
  %v3646 = vpop.xlane.xlu0 %3645
  %v3647 = vsel %vm3598, %v3562, 0.0
  %v3648 = vadd.f32 %v3560, %v3647
  %3649 = vadd.xlane.f32.xlu0 %v3648
  %v3650 = vpop.xlane.xlu0 %3649
  %v3651 = vsel %vm3598, %v3566, 0.0
  %v3652 = vadd.f32 %v3564, %v3651
  %3653 = vadd.xlane.f32.xlu0 %v3652
  %v3654 = vpop.xlane.xlu0 %3653
  %v3655 = vsel %vm3598, %v3572, 0.0
  %v3656 = vadd.f32 %v3570, %v3655
  %3657 = vadd.xlane.f32.xlu0 %v3656
  %v3658 = vpop.xlane.xlu0 %3657
  %v3659 = vsel %vm3598, %v3576, 0.0
  %v3660 = vadd.f32 %v3574, %v3659
  %3661 = vadd.xlane.f32.xlu0 %v3660
  %v3662 = vpop.xlane.xlu0 %3661
  %v3663 = vsel %vm3598, %v3582, 0.0
  %v3664 = vadd.f32 %v3580, %v3663
  %3665 = vadd.xlane.f32.xlu0 %v3664
  %v3666 = vpop.xlane.xlu0 %3665
  %v3667 = vsel %vm3598, %v3586, 0.0
  %v3668 = vadd.f32 %v3584, %v3667
  %3669 = vadd.xlane.f32.xlu0 %v3668
  %v3670 = vpop.xlane.xlu0 %3669
  %v3671 = vsel %vm3598, %v3592, 0.0
  %v3672 = vadd.f32 %v3590, %v3671
  %3673 = vadd.xlane.f32.xlu0 %v3672
  %v3674 = vpop.xlane.xlu0 %3673
  %v3675 = vsel %vm3598, %v3596, 0.0
  %v3676 = vadd.f32 %v3594, %v3675
  %3677 = vadd.xlane.f32.xlu0 %v3676
  %v3678 = vpop.xlane.xlu0 %3677
  %v3679 = vmul.f32 %v3500, %v3500
  %v3680 = vmul.f32 %v3502, %v3502
  %v3681 = vmul.f32 %v3504, %v3504
  %v3682 = vmul.f32 %v3506, %v3506
  %v3683 = vmul.f32 %v3510, %v3510
  %v3684 = vmul.f32 %v3512, %v3512
  %v3685 = vmul.f32 %v3514, %v3514
  %v3686 = vmul.f32 %v3516, %v3516
  %v3687 = vmul.f32 %v3520, %v3520
  %v3688 = vmul.f32 %v3522, %v3522
  %v3689 = vmul.f32 %v3524, %v3524
  %v3690 = vmul.f32 %v3526, %v3526
  %v3691 = vmul.f32 %v3530, %v3530
  %v3692 = vmul.f32 %v3532, %v3532
  %v3693 = vmul.f32 %v3534, %v3534
  %v3694 = vmul.f32 %v3536, %v3536
  %v3695 = vmul.f32 %v3540, %v3540
  %v3696 = vmul.f32 %v3542, %v3542
  %v3697 = vmul.f32 %v3544, %v3544
  %v3698 = vmul.f32 %v3546, %v3546
  %v3699 = vmul.f32 %v3550, %v3550
  %v3700 = vmul.f32 %v3552, %v3552
  %v3701 = vmul.f32 %v3554, %v3554
  %v3702 = vmul.f32 %v3556, %v3556
  %v3703 = vmul.f32 %v3560, %v3560
  %v3704 = vmul.f32 %v3562, %v3562
  %v3705 = vmul.f32 %v3564, %v3564
  %v3706 = vmul.f32 %v3566, %v3566
  %v3707 = vmul.f32 %v3570, %v3570
  %v3708 = vmul.f32 %v3572, %v3572
  %v3709 = vmul.f32 %v3574, %v3574
  %v3710 = vmul.f32 %v3576, %v3576
  %v3711 = vmul.f32 %v3580, %v3580
  %v3712 = vmul.f32 %v3582, %v3582
  %v3713 = vmul.f32 %v3584, %v3584
  %v3714 = vmul.f32 %v3586, %v3586
  %v3715 = vmul.f32 %v3590, %v3590
  %v3716 = vmul.f32 %v3592, %v3592
  %v3717 = vmul.f32 %v3594, %v3594
  %v3718 = vmul.f32 %v3596, %v3596
  %v3719 = vsel %vm3598, %v3680, 0.0
  %v3720 = vadd.f32 %v3679, %v3719
  %3721 = vadd.xlane.f32.xlu0 %v3720
  %v3722 = vpop.xlane.xlu0 %3721
  %v3723 = vsel %vm3598, %v3682, 0.0
  %v3724 = vadd.f32 %v3681, %v3723
  %3725 = vadd.xlane.f32.xlu0 %v3724
  %v3726 = vpop.xlane.xlu0 %3725
  %v3727 = vsel %vm3598, %v3684, 0.0
  %v3728 = vadd.f32 %v3683, %v3727
  %3729 = vadd.xlane.f32.xlu0 %v3728
  %v3730 = vpop.xlane.xlu0 %3729
  %v3731 = vsel %vm3598, %v3686, 0.0
  %v3732 = vadd.f32 %v3685, %v3731
  %3733 = vadd.xlane.f32.xlu0 %v3732
  %v3734 = vpop.xlane.xlu0 %3733
  %v3735 = vsel %vm3598, %v3688, 0.0
  %v3736 = vadd.f32 %v3687, %v3735
  %3737 = vadd.xlane.f32.xlu0 %v3736
  %v3738 = vpop.xlane.xlu0 %3737
  %v3739 = vsel %vm3598, %v3690, 0.0
  %v3740 = vadd.f32 %v3689, %v3739
  %3741 = vadd.xlane.f32.xlu0 %v3740
  %v3742 = vpop.xlane.xlu0 %3741
  %v3743 = vsel %vm3598, %v3692, 0.0
  %v3744 = vadd.f32 %v3691, %v3743
  %3745 = vadd.xlane.f32.xlu0 %v3744
  %v3746 = vpop.xlane.xlu0 %3745
  %v3747 = vsel %vm3598, %v3694, 0.0
  %v3748 = vadd.f32 %v3693, %v3747
  %3749 = vadd.xlane.f32.xlu0 %v3748
  %v3750 = vpop.xlane.xlu0 %3749
  %v3751 = vsel %vm3598, %v3696, 0.0
  %v3752 = vadd.f32 %v3695, %v3751
  %3753 = vadd.xlane.f32.xlu0 %v3752
  %v3754 = vpop.xlane.xlu0 %3753
  %v3755 = vsel %vm3598, %v3698, 0.0
  %v3756 = vadd.f32 %v3697, %v3755
  %3757 = vadd.xlane.f32.xlu0 %v3756
  %v3758 = vpop.xlane.xlu0 %3757
  %v3759 = vsel %vm3598, %v3700, 0.0
  %v3760 = vadd.f32 %v3699, %v3759
  %3761 = vadd.xlane.f32.xlu0 %v3760
  %v3762 = vpop.xlane.xlu0 %3761
  %v3763 = vsel %vm3598, %v3702, 0.0
  %v3764 = vadd.f32 %v3701, %v3763
  %3765 = vadd.xlane.f32.xlu0 %v3764
  %v3766 = vpop.xlane.xlu0 %3765
  %v3767 = vsel %vm3598, %v3704, 0.0
  %v3768 = vadd.f32 %v3703, %v3767
  %3769 = vadd.xlane.f32.xlu0 %v3768
  %v3770 = vpop.xlane.xlu0 %3769
  %v3771 = vsel %vm3598, %v3706, 0.0
  %v3772 = vadd.f32 %v3705, %v3771
  %3773 = vadd.xlane.f32.xlu0 %v3772
  %v3774 = vpop.xlane.xlu0 %3773
  %v3775 = vsel %vm3598, %v3708, 0.0
  %v3776 = vadd.f32 %v3707, %v3775
  %3777 = vadd.xlane.f32.xlu0 %v3776
  %v3778 = vpop.xlane.xlu0 %3777
  %v3779 = vsel %vm3598, %v3710, 0.0
  %v3780 = vadd.f32 %v3709, %v3779
  %3781 = vadd.xlane.f32.xlu0 %v3780
  %v3782 = vpop.xlane.xlu0 %3781
  %v3783 = vsel %vm3598, %v3712, 0.0
  %v3784 = vadd.f32 %v3711, %v3783
  %3785 = vadd.xlane.f32.xlu0 %v3784
  %v3786 = vpop.xlane.xlu0 %3785
  %v3787 = vsel %vm3598, %v3714, 0.0
  %v3788 = vadd.f32 %v3713, %v3787
  %3789 = vadd.xlane.f32.xlu0 %v3788
  %v3790 = vpop.xlane.xlu0 %3789
  %v3791 = vsel %vm3598, %v3716, 0.0
  %v3792 = vadd.f32 %v3715, %v3791
  %3793 = vadd.xlane.f32.xlu0 %v3792
  %v3794 = vpop.xlane.xlu0 %3793
  %v3795 = vsel %vm3598, %v3718, 0.0
  %v3796 = vadd.f32 %v3717, %v3795
  %3797 = vadd.xlane.f32.xlu0 %v3796
  %v3798 = vpop.xlane.xlu0 %3797
  %v3799 = vmul.f32 %v3602, 0.0051020407
  %v3800 = vmul.f32 %v3606, 0.0051020407
  %v3801 = vmul.f32 %v3610, 0.0051020407
  %v3802 = vmul.f32 %v3614, 0.0051020407
  %v3803 = vmul.f32 %v3618, 0.0051020407
  %v3804 = vmul.f32 %v3622, 0.0051020407
  %v3805 = vmul.f32 %v3626, 0.0051020407
  %v3806 = vmul.f32 %v3630, 0.0051020407
  %v3807 = vmul.f32 %v3634, 0.0051020407
  %v3808 = vmul.f32 %v3638, 0.0051020407
  %v3809 = vmul.f32 %v3642, 0.0051020407
  %v3810 = vmul.f32 %v3646, 0.0051020407
  %v3811 = vmul.f32 %v3650, 0.0051020407
  %v3812 = vmul.f32 %v3654, 0.0051020407
  %v3813 = vmul.f32 %v3658, 0.0051020407
  %v3814 = vmul.f32 %v3662, 0.0051020407
  %v3815 = vmul.f32 %v3666, 0.0051020407
  %v3816 = vmul.f32 %v3670, 0.0051020407
  %v3817 = vmul.f32 %v3674, 0.0051020407
  %v3818 = vmul.f32 %v3678, 0.0051020407
  %v3819 = vmul.f32 %v3722, 0.0051020407
  %v3820 = vmul.f32 %v3726, 0.0051020407
  %v3821 = vmul.f32 %v3730, 0.0051020407
  %v3822 = vmul.f32 %v3734, 0.0051020407
  %v3823 = vmul.f32 %v3738, 0.0051020407
  %v3824 = vmul.f32 %v3742, 0.0051020407
  %v3825 = vmul.f32 %v3746, 0.0051020407
  %v3826 = vmul.f32 %v3750, 0.0051020407
  %v3827 = vmul.f32 %v3754, 0.0051020407
  %v3828 = vmul.f32 %v3758, 0.0051020407
  %v3829 = vmul.f32 %v3762, 0.0051020407
  %v3830 = vmul.f32 %v3766, 0.0051020407
  %v3831 = vmul.f32 %v3770, 0.0051020407
  %v3832 = vmul.f32 %v3774, 0.0051020407
  %v3833 = vmul.f32 %v3778, 0.0051020407
  %v3834 = vmul.f32 %v3782, 0.0051020407
  %v3835 = vmul.f32 %v3786, 0.0051020407
  %v3836 = vmul.f32 %v3790, 0.0051020407
  %v3837 = vmul.f32 %v3794, 0.0051020407
  %v3838 = vmul.f32 %v3798, 0.0051020407
  %v3839 = vmul.f32 %v3799, %v3799
  %v3840 = vmul.f32 %v3800, %v3800
  %v3841 = vmul.f32 %v3801, %v3801
  %v3842 = vmul.f32 %v3802, %v3802
  %v3843 = vmul.f32 %v3803, %v3803
  %v3844 = vmul.f32 %v3804, %v3804
  %v3845 = vmul.f32 %v3805, %v3805
  %v3846 = vmul.f32 %v3806, %v3806
  %v3847 = vmul.f32 %v3807, %v3807
  %v3848 = vmul.f32 %v3808, %v3808
  %v3849 = vmul.f32 %v3809, %v3809
  %v3850 = vmul.f32 %v3810, %v3810
  %v3851 = vmul.f32 %v3811, %v3811
  %v3852 = vmul.f32 %v3812, %v3812
  %v3853 = vmul.f32 %v3813, %v3813
  %v3854 = vmul.f32 %v3814, %v3814
  %v3855 = vmul.f32 %v3815, %v3815
  %v3856 = vmul.f32 %v3816, %v3816
  %v3857 = vmul.f32 %v3817, %v3817
  %v3858 = vmul.f32 %v3818, %v3818
  %v3859 = vsub.f32 %v3819, %v3839
  %v3860 = vsub.f32 %v3820, %v3840
  %v3861 = vsub.f32 %v3821, %v3841
  %v3862 = vsub.f32 %v3822, %v3842
  %v3863 = vsub.f32 %v3823, %v3843
  %v3864 = vsub.f32 %v3824, %v3844
  %v3865 = vsub.f32 %v3825, %v3845
  %v3866 = vsub.f32 %v3826, %v3846
  %v3867 = vsub.f32 %v3827, %v3847
  %v3868 = vsub.f32 %v3828, %v3848
  %v3869 = vsub.f32 %v3829, %v3849
  %v3870 = vsub.f32 %v3830, %v3850
  %v3871 = vsub.f32 %v3831, %v3851
  %v3872 = vsub.f32 %v3832, %v3852
  %v3873 = vsub.f32 %v3833, %v3853
  %v3874 = vsub.f32 %v3834, %v3854
  %v3875 = vsub.f32 %v3835, %v3855
  %v3876 = vsub.f32 %v3836, %v3856
  %v3877 = vsub.f32 %v3837, %v3857
  %v3878 = vsub.f32 %v3838, %v3858
  %v3879 = vld [vmem:[%s5] sm:$0xff]
  %v3880 = vld [vmem:[%s5 + $0x8] sm:$0xff]
  %v3881 = vld [vmem:[%s5 + $0x10] sm:$0xff]
  %v3882 = vld [vmem:[%s5 + $0x18] sm:$0xff]
  %v3883 = vld [vmem:[%s5 + $0x20] sm:$0xff]
  %v3884 = vld [vmem:[%s5 + $0x28] sm:$0xff]
  %v3885 = vld [vmem:[%s5 + $0x30] sm:$0xff]
  %v3886 = vld [vmem:[%s5 + $0x38] sm:$0xff]
  %v3887 = vld [vmem:[%s5 + $0x40] sm:$0xff]
  %v3888 = vld [vmem:[%s5 + $0x48] sm:$0xff]
  %v3889 = vld [vmem:[%s5 + $0x50] sm:$0xff]
  %v3890 = vld [vmem:[%s5 + $0x58] sm:$0xff]
  %v3891 = vld [vmem:[%s5 + $0x60] sm:$0xff]
  %v3892 = vld [vmem:[%s5 + $0x68] sm:$0xff]
  %v3893 = vld [vmem:[%s5 + $0x70] sm:$0xff]
  %v3894 = vld [vmem:[%s5 + $0x78] sm:$0xff]
  %v3895 = vld [vmem:[%s5 + $0x80] sm:$0xff]
  %v3896 = vld [vmem:[%s5 + $0x88] sm:$0xff]
  %v3897 = vld [vmem:[%s5 + $0x90] sm:$0xff]
  %v3898 = vld [vmem:[%s5 + $0x98] sm:$0xff]
  %v3899 = vadd.f32 %v3859, 0.001
  %v3900 = vadd.f32 %v3860, 0.001
  %v3901 = vadd.f32 %v3861, 0.001
  %v3902 = vadd.f32 %v3862, 0.001
  %v3903 = vadd.f32 %v3863, 0.001
  %v3904 = vadd.f32 %v3864, 0.001
  %v3905 = vadd.f32 %v3865, 0.001
  %v3906 = vadd.f32 %v3866, 0.001
  %v3907 = vadd.f32 %v3867, 0.001
  %v3908 = vadd.f32 %v3868, 0.001
  %v3909 = vadd.f32 %v3869, 0.001
  %v3910 = vadd.f32 %v3870, 0.001
  %v3911 = vadd.f32 %v3871, 0.001
  %v3912 = vadd.f32 %v3872, 0.001
  %v3913 = vadd.f32 %v3873, 0.001
  %v3914 = vadd.f32 %v3874, 0.001
  %v3915 = vadd.f32 %v3875, 0.001
  %v3916 = vadd.f32 %v3876, 0.001
  %v3917 = vadd.f32 %v3877, 0.001
  %v3918 = vadd.f32 %v3878, 0.001
  %v3919 = vrsqrt.pop %v3899
  %v3920 = vrsqrt.pop %v3900
  %v3921 = vrsqrt.pop %v3901
  %v3922 = vrsqrt.pop %v3902
  %v3923 = vrsqrt.pop %v3903
  %v3924 = vrsqrt.pop %v3904
  %v3925 = vrsqrt.pop %v3905
  %v3926 = vrsqrt.pop %v3906
  %v3927 = vrsqrt.pop %v3907
  %v3928 = vrsqrt.pop %v3908
  %v3929 = vrsqrt.pop %v3909
  %v3930 = vrsqrt.pop %v3910
  %v3931 = vrsqrt.pop %v3911
  %v3932 = vrsqrt.pop %v3912
  %v3933 = vrsqrt.pop %v3913
  %v3934 = vrsqrt.pop %v3914
  %v3935 = vrsqrt.pop %v3915
  %v3936 = vrsqrt.pop %v3916
  %v3937 = vrsqrt.pop %v3917
  %v3938 = vrsqrt.pop %v3918
  %v3939 = vmul.f32 %v3879, %v3919
  %v3940 = vmul.f32 %v3880, %v3920
  %v3941 = vmul.f32 %v3881, %v3921
  %v3942 = vmul.f32 %v3882, %v3922
  %v3943 = vmul.f32 %v3883, %v3923
  %v3944 = vmul.f32 %v3884, %v3924
  %v3945 = vmul.f32 %v3885, %v3925
  %v3946 = vmul.f32 %v3886, %v3926
  %v3947 = vmul.f32 %v3887, %v3927
  %v3948 = vmul.f32 %v3888, %v3928
  %v3949 = vmul.f32 %v3889, %v3929
  %v3950 = vmul.f32 %v3890, %v3930
  %v3951 = vmul.f32 %v3891, %v3931
  %v3952 = vmul.f32 %v3892, %v3932
  %v3953 = vmul.f32 %v3893, %v3933
  %v3954 = vmul.f32 %v3894, %v3934
  %v3955 = vmul.f32 %v3895, %v3935
  %v3956 = vmul.f32 %v3896, %v3936
  %v3957 = vmul.f32 %v3897, %v3937
  %v3958 = vmul.f32 %v3898, %v3938
  %v3959 = vld [vmem:[%s6] sm:$0xff]
  %v3960 = vld [vmem:[%s6 + $0x8] sm:$0xff]
  %v3961 = vld [vmem:[%s6 + $0x10] sm:$0xff]
  %v3962 = vld [vmem:[%s6 + $0x18] sm:$0xff]
  %v3963 = vld [vmem:[%s6 + $0x20] sm:$0xff]
  %v3964 = vld [vmem:[%s6 + $0x28] sm:$0xff]
  %v3965 = vld [vmem:[%s6 + $0x30] sm:$0xff]
  %v3966 = vld [vmem:[%s6 + $0x38] sm:$0xff]
  %v3967 = vld [vmem:[%s6 + $0x40] sm:$0xff]
  %v3968 = vld [vmem:[%s6 + $0x48] sm:$0xff]
  %v3969 = vld [vmem:[%s6 + $0x50] sm:$0xff]
  %v3970 = vld [vmem:[%s6 + $0x58] sm:$0xff]
  %v3971 = vld [vmem:[%s6 + $0x60] sm:$0xff]
  %v3972 = vld [vmem:[%s6 + $0x68] sm:$0xff]
  %v3973 = vld [vmem:[%s6 + $0x70] sm:$0xff]
  %v3974 = vld [vmem:[%s6 + $0x78] sm:$0xff]
  %v3975 = vld [vmem:[%s6 + $0x80] sm:$0xff]
  %v3976 = vld [vmem:[%s6 + $0x88] sm:$0xff]
  %v3977 = vld [vmem:[%s6 + $0x90] sm:$0xff]
  %v3978 = vld [vmem:[%s6 + $0x98] sm:$0xff]
  %v3979 = vmul.f32 %v3799, %v3939
  %v3980 = vmul.f32 %v3800, %v3940
  %v3981 = vmul.f32 %v3801, %v3941
  %v3982 = vmul.f32 %v3802, %v3942
  %v3983 = vmul.f32 %v3803, %v3943
  %v3984 = vmul.f32 %v3804, %v3944
  %v3985 = vmul.f32 %v3805, %v3945
  %v3986 = vmul.f32 %v3806, %v3946
  %v3987 = vmul.f32 %v3807, %v3947
  %v3988 = vmul.f32 %v3808, %v3948
  %v3989 = vmul.f32 %v3809, %v3949
  %v3990 = vmul.f32 %v3810, %v3950
  %v3991 = vmul.f32 %v3811, %v3951
  %v3992 = vmul.f32 %v3812, %v3952
  %v3993 = vmul.f32 %v3813, %v3953
  %v3994 = vmul.f32 %v3814, %v3954
  %v3995 = vmul.f32 %v3815, %v3955
  %v3996 = vmul.f32 %v3816, %v3956
  %v3997 = vmul.f32 %v3817, %v3957
  %v3998 = vmul.f32 %v3818, %v3958
  %v3999 = vsub.f32 %v3959, %v3979
  %v4000 = vsub.f32 %v3960, %v3980
  %v4001 = vsub.f32 %v3961, %v3981
  %v4002 = vsub.f32 %v3962, %v3982
  %v4003 = vsub.f32 %v3963, %v3983
  %v4004 = vsub.f32 %v3964, %v3984
  %v4005 = vsub.f32 %v3965, %v3985
  %v4006 = vsub.f32 %v3966, %v3986
  %v4007 = vsub.f32 %v3967, %v3987
  %v4008 = vsub.f32 %v3968, %v3988
  %v4009 = vsub.f32 %v3969, %v3989
  %v4010 = vsub.f32 %v3970, %v3990
  %v4011 = vsub.f32 %v3971, %v3991
  %v4012 = vsub.f32 %v3972, %v3992
  %v4013 = vsub.f32 %v3973, %v3993
  %v4014 = vsub.f32 %v3974, %v3994
  %v4015 = vsub.f32 %v3975, %v3995
  %v4016 = vsub.f32 %v3976, %v3996
  %v4017 = vsub.f32 %v3977, %v3997
  %v4018 = vsub.f32 %v3978, %v3998
  %4020 = vset.pattern.permute.xlu0 0
  %4021 = vperm.xlu0 %4020, %v3939
  %v4022 = vpop.permute.xlu0 %4021
  %4025 = vset.pattern.permute.xlu0 0
  %4026 = vperm.xlu0 %4025, %v3940
  %v4027 = vpop.permute.xlu0 %4026
  %4030 = vset.pattern.permute.xlu0 0
  %4031 = vperm.xlu0 %4030, %v3941
  %v4032 = vpop.permute.xlu0 %4031
  %4035 = vset.pattern.permute.xlu0 0
  %4036 = vperm.xlu0 %4035, %v3942
  %v4037 = vpop.permute.xlu0 %4036
  %4040 = vset.pattern.permute.xlu0 0
  %4041 = vperm.xlu0 %4040, %v3943
  %v4042 = vpop.permute.xlu0 %4041
  %4045 = vset.pattern.permute.xlu0 0
  %4046 = vperm.xlu0 %4045, %v3944
  %v4047 = vpop.permute.xlu0 %4046
  %4050 = vset.pattern.permute.xlu0 0
  %4051 = vperm.xlu0 %4050, %v3945
  %v4052 = vpop.permute.xlu0 %4051
  %4055 = vset.pattern.permute.xlu0 0
  %4056 = vperm.xlu0 %4055, %v3946
  %v4057 = vpop.permute.xlu0 %4056
  %4060 = vset.pattern.permute.xlu0 0
  %4061 = vperm.xlu0 %4060, %v3947
  %v4062 = vpop.permute.xlu0 %4061
  %4065 = vset.pattern.permute.xlu0 0
  %4066 = vperm.xlu0 %4065, %v3948
  %v4067 = vpop.permute.xlu0 %4066
  %4070 = vset.pattern.permute.xlu0 0
  %4071 = vperm.xlu0 %4070, %v3949
  %v4072 = vpop.permute.xlu0 %4071
  %4075 = vset.pattern.permute.xlu0 0
  %4076 = vperm.xlu0 %4075, %v3950
  %v4077 = vpop.permute.xlu0 %4076
  %4080 = vset.pattern.permute.xlu0 0
  %4081 = vperm.xlu0 %4080, %v3951
  %v4082 = vpop.permute.xlu0 %4081
  %4085 = vset.pattern.permute.xlu0 0
  %4086 = vperm.xlu0 %4085, %v3952
  %v4087 = vpop.permute.xlu0 %4086
  %4090 = vset.pattern.permute.xlu0 0
  %4091 = vperm.xlu0 %4090, %v3953
  %v4092 = vpop.permute.xlu0 %4091
  %4095 = vset.pattern.permute.xlu0 0
  %4096 = vperm.xlu0 %4095, %v3954
  %v4097 = vpop.permute.xlu0 %4096
  %4100 = vset.pattern.permute.xlu0 0
  %4101 = vperm.xlu0 %4100, %v3955
  %v4102 = vpop.permute.xlu0 %4101
  %4105 = vset.pattern.permute.xlu0 0
  %4106 = vperm.xlu0 %4105, %v3956
  %v4107 = vpop.permute.xlu0 %4106
  %4110 = vset.pattern.permute.xlu0 0
  %4111 = vperm.xlu0 %4110, %v3957
  %v4112 = vpop.permute.xlu0 %4111
  %4115 = vset.pattern.permute.xlu0 0
  %4116 = vperm.xlu0 %4115, %v3958
  %v4117 = vpop.permute.xlu0 %4116
  %v4119 = vmul.f32 %v3500, %v4022
  %v4120 = vmul.f32 %v3502, %v4022
  %v4121 = vmul.f32 %v3504, %v4027
  %v4122 = vmul.f32 %v3506, %v4027
  %v4123 = vmul.f32 %v3510, %v4032
  %v4124 = vmul.f32 %v3512, %v4032
  %v4125 = vmul.f32 %v3514, %v4037
  %v4126 = vmul.f32 %v3516, %v4037
  %v4127 = vmul.f32 %v3520, %v4042
  %v4128 = vmul.f32 %v3522, %v4042
  %v4129 = vmul.f32 %v3524, %v4047
  %v4130 = vmul.f32 %v3526, %v4047
  %v4131 = vmul.f32 %v3530, %v4052
  %v4132 = vmul.f32 %v3532, %v4052
  %v4133 = vmul.f32 %v3534, %v4057
  %v4134 = vmul.f32 %v3536, %v4057
  %v4135 = vmul.f32 %v3540, %v4062
  %v4136 = vmul.f32 %v3542, %v4062
  %v4137 = vmul.f32 %v3544, %v4067
  %v4138 = vmul.f32 %v3546, %v4067
  %v4139 = vmul.f32 %v3550, %v4072
  %v4140 = vmul.f32 %v3552, %v4072
  %v4141 = vmul.f32 %v3554, %v4077
  %v4142 = vmul.f32 %v3556, %v4077
  %v4143 = vmul.f32 %v3560, %v4082
  %v4144 = vmul.f32 %v3562, %v4082
  %v4145 = vmul.f32 %v3564, %v4087
  %v4146 = vmul.f32 %v3566, %v4087
  %v4147 = vmul.f32 %v3570, %v4092
  %v4148 = vmul.f32 %v3572, %v4092
  %v4149 = vmul.f32 %v3574, %v4097
  %v4150 = vmul.f32 %v3576, %v4097
  %v4151 = vmul.f32 %v3580, %v4102
  %v4152 = vmul.f32 %v3582, %v4102
  %v4153 = vmul.f32 %v3584, %v4107
  %v4154 = vmul.f32 %v3586, %v4107
  %v4155 = vmul.f32 %v3590, %v4112
  %v4156 = vmul.f32 %v3592, %v4112
  %v4157 = vmul.f32 %v3594, %v4117
  %v4158 = vmul.f32 %v3596, %v4117
  %4160 = vset.pattern.permute.xlu0 0
  %4161 = vperm.xlu0 %4160, %v3999
  %v4162 = vpop.permute.xlu0 %4161
  %4165 = vset.pattern.permute.xlu0 0
  %4166 = vperm.xlu0 %4165, %v4000
  %v4167 = vpop.permute.xlu0 %4166
  %4170 = vset.pattern.permute.xlu0 0
  %4171 = vperm.xlu0 %4170, %v4001
  %v4172 = vpop.permute.xlu0 %4171
  %4175 = vset.pattern.permute.xlu0 0
  %4176 = vperm.xlu0 %4175, %v4002
  %v4177 = vpop.permute.xlu0 %4176
  %4180 = vset.pattern.permute.xlu0 0
  %4181 = vperm.xlu0 %4180, %v4003
  %v4182 = vpop.permute.xlu0 %4181
  %4185 = vset.pattern.permute.xlu0 0
  %4186 = vperm.xlu0 %4185, %v4004
  %v4187 = vpop.permute.xlu0 %4186
  %4190 = vset.pattern.permute.xlu0 0
  %4191 = vperm.xlu0 %4190, %v4005
  %v4192 = vpop.permute.xlu0 %4191
  %4195 = vset.pattern.permute.xlu0 0
  %4196 = vperm.xlu0 %4195, %v4006
  %v4197 = vpop.permute.xlu0 %4196
  %4200 = vset.pattern.permute.xlu0 0
  %4201 = vperm.xlu0 %4200, %v4007
  %v4202 = vpop.permute.xlu0 %4201
  %4205 = vset.pattern.permute.xlu0 0
  %4206 = vperm.xlu0 %4205, %v4008
  %v4207 = vpop.permute.xlu0 %4206
  %4210 = vset.pattern.permute.xlu0 0
  %4211 = vperm.xlu0 %4210, %v4009
  %v4212 = vpop.permute.xlu0 %4211
  %4215 = vset.pattern.permute.xlu0 0
  %4216 = vperm.xlu0 %4215, %v4010
  %v4217 = vpop.permute.xlu0 %4216
  %4220 = vset.pattern.permute.xlu0 0
  %4221 = vperm.xlu0 %4220, %v4011
  %v4222 = vpop.permute.xlu0 %4221
  %4225 = vset.pattern.permute.xlu0 0
  %4226 = vperm.xlu0 %4225, %v4012
  %v4227 = vpop.permute.xlu0 %4226
  %4230 = vset.pattern.permute.xlu0 0
  %4231 = vperm.xlu0 %4230, %v4013
  %v4232 = vpop.permute.xlu0 %4231
  %4235 = vset.pattern.permute.xlu0 0
  %4236 = vperm.xlu0 %4235, %v4014
  %v4237 = vpop.permute.xlu0 %4236
  %4240 = vset.pattern.permute.xlu0 0
  %4241 = vperm.xlu0 %4240, %v4015
  %v4242 = vpop.permute.xlu0 %4241
  %4245 = vset.pattern.permute.xlu0 0
  %4246 = vperm.xlu0 %4245, %v4016
  %v4247 = vpop.permute.xlu0 %4246
  %4250 = vset.pattern.permute.xlu0 0
  %4251 = vperm.xlu0 %4250, %v4017
  %v4252 = vpop.permute.xlu0 %4251
  %4255 = vset.pattern.permute.xlu0 0
  %4256 = vperm.xlu0 %4255, %v4018
  %v4257 = vpop.permute.xlu0 %4256
  %v4259 = vadd.f32 %v4119, %v4162
  %v4260 = vadd.f32 %v4120, %v4162
  %v4261 = vadd.f32 %v4121, %v4167
  %v4262 = vadd.f32 %v4122, %v4167
  %v4263 = vadd.f32 %v4123, %v4172
  %v4264 = vadd.f32 %v4124, %v4172
  %v4265 = vadd.f32 %v4125, %v4177
  %v4266 = vadd.f32 %v4126, %v4177
  %v4267 = vadd.f32 %v4127, %v4182
  %v4268 = vadd.f32 %v4128, %v4182
  %v4269 = vadd.f32 %v4129, %v4187
  %v4270 = vadd.f32 %v4130, %v4187
  %v4271 = vadd.f32 %v4131, %v4192
  %v4272 = vadd.f32 %v4132, %v4192
  %v4273 = vadd.f32 %v4133, %v4197
  %v4274 = vadd.f32 %v4134, %v4197
  %v4275 = vadd.f32 %v4135, %v4202
  %v4276 = vadd.f32 %v4136, %v4202
  %v4277 = vadd.f32 %v4137, %v4207
  %v4278 = vadd.f32 %v4138, %v4207
  %v4279 = vadd.f32 %v4139, %v4212
  %v4280 = vadd.f32 %v4140, %v4212
  %v4281 = vadd.f32 %v4141, %v4217
  %v4282 = vadd.f32 %v4142, %v4217
  %v4283 = vadd.f32 %v4143, %v4222
  %v4284 = vadd.f32 %v4144, %v4222
  %v4285 = vadd.f32 %v4145, %v4227
  %v4286 = vadd.f32 %v4146, %v4227
  %v4287 = vadd.f32 %v4147, %v4232
  %v4288 = vadd.f32 %v4148, %v4232
  %v4289 = vadd.f32 %v4149, %v4237
  %v4290 = vadd.f32 %v4150, %v4237
  %v4291 = vadd.f32 %v4151, %v4242
  %v4292 = vadd.f32 %v4152, %v4242
  %v4293 = vadd.f32 %v4153, %v4247
  %v4294 = vadd.f32 %v4154, %v4247
  %v4295 = vadd.f32 %v4155, %v4252
  %v4296 = vadd.f32 %v4156, %v4252
  %v4297 = vadd.f32 %v4157, %v4257
  %v4298 = vadd.f32 %v4158, %v4257
  %4299 = vst [vmem:[%s7] sm:$0xff] %v4259
  %4300 = vst.msk [vmem:[%s7 + $0x8] sm:$0xff] %vm3598, %v4260
  %4301 = vst [vmem:[%s7 + $0x10] sm:$0xff] %v4261
  %4302 = vst.msk [vmem:[%s7 + $0x18] sm:$0xff] %vm3598, %v4262
  %4303 = vst [vmem:[%s7 + $0x20] sm:$0xff] %v4263
  %4304 = vst.msk [vmem:[%s7 + $0x28] sm:$0xff] %vm3598, %v4264
  %4305 = vst [vmem:[%s7 + $0x30] sm:$0xff] %v4265
  %4306 = vst.msk [vmem:[%s7 + $0x38] sm:$0xff] %vm3598, %v4266
  %4307 = vst [vmem:[%s7 + $0x40] sm:$0xff] %v4267
  %4308 = vst.msk [vmem:[%s7 + $0x48] sm:$0xff] %vm3598, %v4268
  %4309 = vst [vmem:[%s7 + $0x50] sm:$0xff] %v4269
  %4310 = vst.msk [vmem:[%s7 + $0x58] sm:$0xff] %vm3598, %v4270
  %4311 = vst [vmem:[%s7 + $0x60] sm:$0xff] %v4271
  %4312 = vst.msk [vmem:[%s7 + $0x68] sm:$0xff] %vm3598, %v4272
  %4313 = vst [vmem:[%s7 + $0x70] sm:$0xff] %v4273
  %4314 = vst.msk [vmem:[%s7 + $0x78] sm:$0xff] %vm3598, %v4274
  %4315 = vst [vmem:[%s7 + $0x80] sm:$0xff] %v4275
  %4316 = vst.msk [vmem:[%s7 + $0x88] sm:$0xff] %vm3598, %v4276
  %4317 = vst [vmem:[%s7 + $0x90] sm:$0xff] %v4277
  %4318 = vst.msk [vmem:[%s7 + $0x98] sm:$0xff] %vm3598, %v4278
  %4319 = vst [vmem:[%s7 + $0xa0] sm:$0xff] %v4279
  %4320 = vst.msk [vmem:[%s7 + $0xa8] sm:$0xff] %vm3598, %v4280
  %4321 = vst [vmem:[%s7 + $0xb0] sm:$0xff] %v4281
  %4322 = vst.msk [vmem:[%s7 + $0xb8] sm:$0xff] %vm3598, %v4282
  %4323 = vst [vmem:[%s7 + $0xc0] sm:$0xff] %v4283
  %4324 = vst.msk [vmem:[%s7 + $0xc8] sm:$0xff] %vm3598, %v4284
  %4325 = vst [vmem:[%s7 + $0xd0] sm:$0xff] %v4285
  %4326 = vst.msk [vmem:[%s7 + $0xd8] sm:$0xff] %vm3598, %v4286
  %4327 = vst [vmem:[%s7 + $0xe0] sm:$0xff] %v4287
  %4328 = vst.msk [vmem:[%s7 + $0xe8] sm:$0xff] %vm3598, %v4288
  %4329 = vst [vmem:[%s7 + $0xf0] sm:$0xff] %v4289
  %4330 = vst.msk [vmem:[%s7 + $0xf8] sm:$0xff] %vm3598, %v4290
  %4331 = vst [vmem:[%s7 + $0x100] sm:$0xff] %v4291
  %4332 = vst.msk [vmem:[%s7 + $0x108] sm:$0xff] %vm3598, %v4292
  %4333 = vst [vmem:[%s7 + $0x110] sm:$0xff] %v4293
  %4334 = vst.msk [vmem:[%s7 + $0x118] sm:$0xff] %vm3598, %v4294
  %4335 = vst [vmem:[%s7 + $0x120] sm:$0xff] %v4295
  %4336 = vst.msk [vmem:[%s7 + $0x128] sm:$0xff] %vm3598, %v4296
  %4337 = vst [vmem:[%s7 + $0x130] sm:$0xff] %v4297
  %4338 = vst.msk [vmem:[%s7 + $0x138] sm:$0xff] %vm3598, %v4298
  // Predicated region
  $region30: #{se_conv_bn.1} parent=0 // pred_check
    _
  $region31: #{se_conv_bn.1} parent=0 // pred_check_branch
    %4340 = sbr.rel (0) target = $region33
  $region32: #{se_conv_bn.1} parent=0 // pred_region
    _
  $region33: #{se_conv_bn.1} parent=0 // pred_fallthru
    _
  // Predicated region
  $region34: #{se_conv_bn.1} parent=0 // pred_check
    _
  $region35: #{se_conv_bn.1} parent=0 // pred_check_branch
    %4342 = sbr.rel (0) target = $region37
  $region36: #{se_conv_bn.1} parent=0 // pred_region
    _
  $region37: #{se_conv_bn.1} parent=0 // pred_fallthru
    _

</llo_original>
